<compile_context>
chip_gen: v7x
topology: tpu7x:2x2x1
jax: 0.10.0
libtpu: 0.0.40
codegen_flags: <defaults>
</compile_context>

<pallas_src>
import jax
import jax.numpy as jnp
from jax.experimental import pallas as pl
from jax.experimental.pallas import tpu as pltpu

_BN_EPS = 1e-5
_COMPUTE_DTYPE = jnp.bfloat16   # MXU operand dtype (f32 accumulation)
_TILE_M_CAP = 512               # matmul tile rows (sublane dim)
_TILE_LANE_CAP = 512            # lane-tile width for the operand-swapped tanh head

# kernel taps per output parity for the k=4 / stride=2 / pad=1 sub-pixel decomposition:
#   even output rows use taps (ky=3, ky=1) on padded-input rows (t,   t+1)
#   odd  output rows use taps (ky=2, ky=0) on padded-input rows (t+1, t+2)
_TAP_SEL = ((3, 1), (2, 0))


def _pick_tile(m, cap, align):
    """Largest tile <= cap that divides m and is `align`-aligned (or the full dim)."""
    if m <= cap:
        return m
    for t in range(cap, 0, -1):
        if m % t == 0 and t % align == 0:
            return t
    return m


# ---------------------------------------------------------------------------
# Pallas kernels
# ---------------------------------------------------------------------------
def _matmul_bias_stats_kernel(p_ref, w_ref, b_ref, y_ref, sum_ref, sq_ref):
    """bf16 matmul (f32 accum) + bias; accumulates per-channel sum / sum-of-squares
    in resident (1, C) output blocks across the whole grid (pass 1 of BatchNorm)."""
    @pl.when((pl.program_id(0) == 0) & (pl.program_id(1) == 0))
    def _init():
        sum_ref[...] = jnp.zeros_like(sum_ref)
        sq_ref[...] = jnp.zeros_like(sq_ref)

    y = jnp.dot(p_ref[...], w_ref[...], preferred_element_type=jnp.float32)
    y = y + b_ref[...]
    y_ref[...] = y
    sum_ref[...] += jnp.sum(y, axis=0, keepdims=True)
    sq_ref[...] += jnp.sum(y * y, axis=0, keepdims=True)


def _bn_relu_kernel(y_ref, mean_ref, inv_ref, o_ref):
    """Pass 2 of BatchNorm: normalize with precomputed batch mean / inv-std, then ReLU."""
    o_ref[...] = jnp.maximum(
        (y_ref[...] - mean_ref[...]) * inv_ref[...], 0.0).astype(o_ref.dtype)


def _tanh_head_kernel(w_ref, p_ref, b_ref, o_ref):
    """Operand-swapped Cout=1 head: (1, K) @ (K, TILE_M) + bias, tanh. Lane-dense output."""
    y = jnp.dot(w_ref[...], p_ref[...], preferred_element_type=jnp.float32)
    o_ref[...] = jnp.tanh(y + b_ref[...])


# ---------------------------------------------------------------------------
# pallas_call wrappers
# ---------------------------------------------------------------------------
def _grouped_matmul_stats(patches, weights, bias_row):
    """patches (G, M, K) bf16, weights (G, K, C) bf16, bias_row (1, C) f32
       -> y (G, M, C) f32, colsum (1, C) f32, colsumsq (1, C) f32."""
    G, M, K = patches.shape
    C = weights.shape[2]
    tm = _pick_tile(M, _TILE_M_CAP, 8)
    y, s, sq = pl.pallas_call(
        _matmul_bias_stats_kernel,
        grid=(G, M // tm),
        in_specs=[
            pl.BlockSpec((None, tm, K), lambda g, i: (g, i, 0)),
            pl.BlockSpec((None, K, C), lambda g, i: (g, 0, 0)),
            pl.BlockSpec((1, C), lambda g, i: (0, 0)),
        ],
        out_specs=[
            pl.BlockSpec((None, tm, C), lambda g, i: (g, i, 0)),
            pl.BlockSpec((1, C), lambda g, i: (0, 0)),   # resident accumulator
            pl.BlockSpec((1, C), lambda g, i: (0, 0)),   # resident accumulator
        ],
        out_shape=[
            jax.ShapeDtypeStruct((G, M, C), jnp.float32),
            jax.ShapeDtypeStruct((1, C), jnp.float32),
            jax.ShapeDtypeStruct((1, C), jnp.float32),
        ],
        compiler_params=pltpu.CompilerParams(
            dimension_semantics=("arbitrary", "arbitrary")),
    )(patches, weights, bias_row)
    return y, s, sq


def _bn_relu(y_all, mean_row, inv_row):
    """Elementwise normalize + ReLU over (G, M, C), tiled over M; bf16 activations out."""
    G, M, C = y_all.shape
    tm = _pick_tile(M, _TILE_M_CAP, 8)
    return pl.pallas_call(
        _bn_relu_kernel,
        grid=(G, M // tm),
        in_specs=[
            pl.BlockSpec((None, tm, C), lambda g, i: (g, i, 0)),
            pl.BlockSpec((1, C), lambda g, i: (0, 0)),
            pl.BlockSpec((1, C), lambda g, i: (0, 0)),
        ],
        out_specs=pl.BlockSpec((None, tm, C), lambda g, i: (g, i, 0)),
        out_shape=jax.ShapeDtypeStruct((G, M, C), _COMPUTE_DTYPE),
        compiler_params=pltpu.CompilerParams(
            dimension_semantics=("parallel", "parallel")),
    )(y_all, mean_row, inv_row)


def _tanh_head(w_rows, patches_t, bias_scalar):
    """w_rows (G, 1, K) bf16, patches_t (G, K, M) bf16, bias (1, 1) f32 -> (G, 1, M) f32."""
    G, _, K = w_rows.shape
    M = patches_t.shape[2]
    tm = _pick_tile(M, _TILE_LANE_CAP, 128)
    return pl.pallas_call(
        _tanh_head_kernel,
        grid=(G, M // tm),
        in_specs=[
            pl.BlockSpec((None, 1, K), lambda g, i: (g, 0, 0)),
            pl.BlockSpec((None, K, tm), lambda g, i: (g, 0, i)),
            pl.BlockSpec((1, 1), lambda g, i: (0, 0)),
        ],
        out_specs=pl.BlockSpec((None, 1, tm), lambda g, i: (g, 0, i)),
        out_shape=jax.ShapeDtypeStruct((G, 1, M), jnp.float32),
        compiler_params=pltpu.CompilerParams(
            dimension_semantics=("parallel", "parallel")),
    )(w_rows, patches_t, bias_scalar)


# ---------------------------------------------------------------------------
# Layer glue (sub-pixel decomposition of ConvTranspose2d k=4, s=2, p=1)
# ---------------------------------------------------------------------------
def _bn_finalize(colsum, colsq, count):
    mean = colsum / count
    var = jnp.maximum(colsq / count - mean * mean, 0.0)   # biased batch variance
    inv = jax.lax.rsqrt(var + _BN_EPS)                    # gamma=1, beta=0 (default init)
    return mean, inv


def _subpixel_patches(x_nhwc, transposed=False):
    """x (N, H, W, Cin) -> patches (4, N*H*W, 4*Cin), or (4, 4*Cin, N*H*W) if transposed."""
    N, H, W, Cin = x_nhwc.shape
    xp = jnp.pad(x_nhwc, ((0, 0), (1, 1), (1, 1), (0, 0)))
    groups = []
    for py in (0, 1):
        for px in (0, 1):
            taps = [xp[:, py + a: py + a + H, px + b: px + b + W, :]
                    for a in (0, 1) for b in (0, 1)]
            p = jnp.stack(taps, axis=3)                    # (N, H, W, 4, Cin)
            if transposed:
                groups.append(p.transpose(3, 4, 0, 1, 2).reshape(4 * Cin, N * H * W))
            else:
                groups.append(p.reshape(N * H * W, 4 * Cin))
    return jnp.stack(groups, axis=0)


def _subpixel_weights(w):
    """w (Cin, Cout, 4, 4) -> (4, 4*Cin, Cout): effective 2x2 kernels per output parity."""
    groups = []
    for py in (0, 1):
        for px in (0, 1):
            taps = [w[:, :, _TAP_SEL[py][a], _TAP_SEL[px][b]]
                    for a in (0, 1) for b in (0, 1)]       # each (Cin, Cout)
            groups.append(jnp.concatenate(taps, axis=0))   # (4*Cin, Cout)
    return jnp.stack(groups, axis=0)


def _first_layer(z2, w, b):
    """ConvTranspose2d(z_dim, C, 4, 1, 0) on a 1x1 input + BN + ReLU, as 16 dense matmuls.
    z2 (N, z_dim), w (z_dim, C, 4, 4), b (C,) -> NHWC (N, 4, 4, C) bf16."""
    N, z_dim = z2.shape
    C, k = w.shape[1], w.shape[2]
    K = ((z_dim + 127) // 128) * 128                       # lane-align K (100 -> 128)
    if K != z_dim:
        z2 = jnp.pad(z2, ((0, 0), (0, K - z_dim)))
        w = jnp.pad(w, ((0, K - z_dim), (0, 0), (0, 0), (0, 0)))
    G = k * k
    patches = jnp.broadcast_to(z2.astype(_COMPUTE_DTYPE)[None], (G, N, K))
    weights = w.transpose(2, 3, 0, 1).reshape(G, K, C).astype(_COMPUTE_DTYPE)
    bias_row = b.reshape(1, C).astype(jnp.float32)
    y, s, sq = _grouped_matmul_stats(patches, weights, bias_row)
    mean, inv = _bn_finalize(s, sq, float(G * N))
    act = _bn_relu(y, mean, inv)                           # (16, N, C)
    return act.reshape(k, k, N, C).transpose(2, 0, 1, 3)   # (N, 4, 4, C)


def _deconv_bn_relu_s2(x_nhwc, w, b):
    """ConvTranspose2d(Cin, Cout, 4, 2, 1) + BatchNorm2d + ReLU; NHWC in/out, bf16 out."""
    N, H, W, Cin = x_nhwc.shape
    Cout = w.shape[1]
    patches = _subpixel_patches(x_nhwc).astype(_COMPUTE_DTYPE)   # (4, N*H*W, 4*Cin)
    weights = _subpixel_weights(w).astype(_COMPUTE_DTYPE)        # (4, 4*Cin, Cout)
    bias_row = b.reshape(1, Cout).astype(jnp.float32)
    y, s, sq = _grouped_matmul_stats(patches, weights, bias_row)
    mean, inv = _bn_finalize(s, sq, float(4 * N * H * W))
    act = _bn_relu(y, mean, inv)                                 # (4, N*H*W, Cout)
    act = act.reshape(2, 2, N, H, W, Cout).transpose(2, 3, 0, 4, 1, 5)
    return act.reshape(N, 2 * H, 2 * W, Cout)


def _deconv_tanh_s2(x_nhwc, w, b):
    """Final ConvTranspose2d(Cin, 1, 4, 2, 1) + tanh, operand-swapped (Cout=1)."""
    N, H, W, Cin = x_nhwc.shape
    patches_t = _subpixel_patches(x_nhwc, transposed=True).astype(_COMPUTE_DTYPE)  # (4, 4*Cin, M)
    w_rows = _subpixel_weights(w).transpose(0, 2, 1).astype(_COMPUTE_DTYPE)        # (4, 1, 4*Cin)
    bias = jnp.asarray(b, jnp.float32).reshape(1, 1)
    y = _tanh_head(w_rows, patches_t, bias)                      # (4, 1, N*H*W) f32
    y = y.reshape(2, 2, N, H, W).transpose(2, 3, 0, 4, 1)        # (N, H, 2, W, 2)
    return y.reshape(N, 2 * H, 2 * W)[:, None, :, :]             # NCHW (N, 1, 2H, 2W)


# ---------------------------------------------------------------------------
# Generator (same structure as the PyTorch module; d is the width hyperparameter)
# ---------------------------------------------------------------------------
def init_generator_params(key, d=16, z_dim=100):
    specs = [
        (z_dim, d * 8, 4),   # deconv1: k=4, s=1, p=0
        (d * 8, d * 4, 4),   # deconv2: k=4, s=2, p=1
        (d * 4, d * 2, 4),   # deconv3
        (d * 2, d, 4),       # deconv4
        (d, 1, 4),           # deconv5
    ]
    params = []
    for cin, cout, k in specs:
        key, kw, kb = jax.random.split(key, 3)
        bound = 1.0 / float(cin * k * k) ** 0.5
        w = jax.random.uniform(kw, (cin, cout, k, k), jnp.float32, -bound, bound)
        b = jax.random.uniform(kb, (cout,), jnp.float32, -bound, bound)
        params.append((w, b))
    return params


@jax.jit
def generator_forward(z, params):
    (w1, b1), (w2, b2), (w3, b3), (w4, b4), (w5, b5) = params
    N = z.shape[0]
    x = _first_layer(z.reshape(N, -1), w1, b1)   # (N,  4,  4, 8d)
    x = _deconv_bn_relu_s2(x, w2, b2)            # (N,  8,  8, 4d)
    x = _deconv_bn_relu_s2(x, w3, b3)            # (N, 16, 16, 2d)
    x = _deconv_bn_relu_s2(x, w4, b4)            # (N, 32, 32,  d)
    return _deconv_tanh_s2(x, w5, b5)            # (N,  1, 64, 64) NCHW


if __name__ == "__main__":
    key = jax.random.PRNGKey(0)
    k_z, k_p = jax.random.split(key)
    d = 16            # small width for the synthetic run (module default is 128)
    N = 2
    z = jax.random.normal(k_z, (N, 100, 1, 1), jnp.float32)   # DCGAN latent, NCHW
    params = init_generator_params(k_p, d=d)

    out = generator_forward(z, params)
    out = jax.block_until_ready(out)

    assert out.shape == (N, 1, 64, 64), out.shape
    assert bool(jnp.all(jnp.isfinite(out)))
    assert bool(jnp.all(jnp.abs(out) <= 1.0))   # tanh range
    print("KERNEL_OK")
</pallas_src>

<mosaic_0001>
module attributes {stable_mosaic.version = 11 : i64} {
  func.func @_bn_relu_kernel(%arg0: i32, %arg1: i32, %arg2: memref<1x2x128xf32, #tpu.memory_space<vmem>>, %arg3: memref<1x128xf32, #tpu.memory_space<vmem>>, %arg4: memref<1x128xf32, #tpu.memory_space<vmem>>, %arg5: memref<1x2x128xbf16, #tpu.memory_space<vmem>>) attributes {dimension_semantics = [#tpu.dimension_semantics<parallel>, #tpu.dimension_semantics<parallel>], iteration_bounds = array<i64: 16, 1>, scalar_prefetch = 0 : i64, scratch_operands = 0 : i64, tpu.core_type = #tpu.core_type<tc>, window_params = [{transform_indices = @transform_0, window_bounds = array<i64: 1, 2, 128>}, {pipeline_mode = #tpu.pipeline_mode<synchronous>, transform_indices = @transform_1, window_bounds = array<i64: 1, 128>}, {pipeline_mode = #tpu.pipeline_mode<synchronous>, transform_indices = @transform_2, window_bounds = array<i64: 1, 128>}, {transform_indices = @transform_3, window_bounds = array<i64: 1, 2, 128>}]} {
    %c0 = arith.constant 0 : index
    %c0_0 = arith.constant 0 : index
    %c0_1 = arith.constant 0 : index
    %0 = vector.load %arg2[%c0, %c0_0, %c0_1] : memref<1x2x128xf32, #tpu.memory_space<vmem>>, vector<1x2x128xf32>
    %1 = vector.shape_cast %0 : vector<1x2x128xf32> to vector<2x128xf32>
    %c0_2 = arith.constant 0 : index
    %c0_3 = arith.constant 0 : index
    %2 = vector.load %arg3[%c0_2, %c0_3] : memref<1x128xf32, #tpu.memory_space<vmem>>, vector<1x128xf32>
    %3 = vector.broadcast %2 : vector<1x128xf32> to vector<2x128xf32>
    %4 = arith.subf %1, %3 : vector<2x128xf32>
    %c0_4 = arith.constant 0 : index
    %c0_5 = arith.constant 0 : index
    %5 = vector.load %arg4[%c0_4, %c0_5] : memref<1x128xf32, #tpu.memory_space<vmem>>, vector<1x128xf32>
    %6 = vector.broadcast %5 : vector<1x128xf32> to vector<2x128xf32>
    %7 = arith.mulf %4, %6 : vector<2x128xf32>
    %cst = arith.constant 0.000000e+00 : f32
    %8 = vector.broadcast %cst : f32 to vector<2x128xf32>
    %9 = arith.maximumf %7, %8 : vector<2x128xf32>
    %10 = arith.truncf %9 : vector<2x128xf32> to vector<2x128xbf16>
    %c0_6 = arith.constant 0 : index
    %c0_7 = arith.constant 0 : index
    %c0_8 = arith.constant 0 : index
    %11 = vector.load %arg5[%c0_6, %c0_7, %c0_8] : memref<1x2x128xbf16, #tpu.memory_space<vmem>>, vector<1x2x128xbf16>
    %12 = vector.shape_cast %11 : vector<1x2x128xbf16> to vector<2x128xbf16>
    %13 = vector.shape_cast %10 : vector<2x128xbf16> to vector<1x2x128xbf16>
    tpu.vector_store %arg5[%c0_6, %c0_7, %c0_8], %13 {strides = array<i32>} : memref<1x2x128xbf16, #tpu.memory_space<vmem>>, vector<1x2x128xbf16>,
    return
  }
  func.func @transform_0(%arg0: i32, %arg1: i32) -> (i32, i32, i32) {
    %c0_i32 = arith.constant 0 : i32
    %c0_i32_0 = arith.constant 0 : i32
    return %arg0, %arg1, %c0_i32 : i32, i32, i32
  }
  func.func @transform_1(%arg0: i32, %arg1: i32) -> (i32, i32) {
    %c0_i32 = arith.constant 0 : i32
    %c0_i32_0 = arith.constant 0 : i32
    %c0_i32_1 = arith.constant 0 : i32
    return %c0_i32, %c0_i32_0 : i32, i32
  }
  func.func @transform_2(%arg0: i32, %arg1: i32) -> (i32, i32) {
    %c0_i32 = arith.constant 0 : i32
    %c0_i32_0 = arith.constant 0 : i32
    %c0_i32_1 = arith.constant 0 : i32
    return %c0_i32, %c0_i32_0 : i32, i32
  }
  func.func @transform_3(%arg0: i32, %arg1: i32) -> (i32, i32, i32) {
    %c0_i32 = arith.constant 0 : i32
    %c0_i32_0 = arith.constant 0 : i32
    return %arg0, %arg1, %c0_i32 : i32, i32, i32
  }
}

module attributes {stable_mosaic.version = 11 : i64} {
  func.func @_matmul_bias_stats_kernel(%arg0: i32, %arg1: i32, %arg2: memref<1x2x128xbf16, #tpu.memory_space<vmem>>, %arg3: memref<1x128x128xbf16, #tpu.memory_space<vmem>>, %arg4: memref<1x128xf32, #tpu.memory_space<vmem>>, %arg5: memref<1x2x128xf32, #tpu.memory_space<vmem>>, %arg6: memref<1x128xf32, #tpu.memory_space<vmem>>, %arg7: memref<1x128xf32, #tpu.memory_space<vmem>>) attributes {dimension_semantics = [#tpu.dimension_semantics<arbitrary>, #tpu.dimension_semantics<arbitrary>], iteration_bounds = array<i64: 16, 1>, scalar_prefetch = 0 : i64, scratch_operands = 0 : i64, tpu.core_type = #tpu.core_type<tc>, window_params = [{transform_indices = @transform_0, window_bounds = array<i64: 1, 2, 128>}, {transform_indices = @transform_1, window_bounds = array<i64: 1, 128, 128>}, {pipeline_mode = #tpu.pipeline_mode<synchronous>, transform_indices = @transform_2, window_bounds = array<i64: 1, 128>}, {transform_indices = @transform_3, window_bounds = array<i64: 1, 2, 128>}, {pipeline_mode = #tpu.pipeline_mode<synchronous>, transform_indices = @transform_4, window_bounds = array<i64: 1, 128>}, {pipeline_mode = #tpu.pipeline_mode<synchronous>, transform_indices = @transform_5, window_bounds = array<i64: 1, 128>}]} {
    %c0_i32 = arith.constant 0 : i32
    %0 = arith.cmpi eq, %arg0, %c0_i32 : i32
    %c0_i32_0 = arith.constant 0 : i32
    %1 = arith.cmpi eq, %arg1, %c0_i32_0 : i32
    %2 = arith.andi %0, %1 : i1
    %3 = arith.extui %2 : i1 to i32
    %c0_i32_1 = arith.constant 0 : i32
    %4 = arith.cmpi ne, %3, %c0_i32_1 : i32
    scf.if %4 {
      %cst_22 = arith.constant 0.000000e+00 : f32
      %27 = vector.broadcast %cst_22 : f32 to vector<1x128xf32>
      %c0_23 = arith.constant 0 : index
      %c0_24 = arith.constant 0 : index
      %28 = vector.load %arg6[%c0_23, %c0_24] : memref<1x128xf32, #tpu.memory_space<vmem>>, vector<1x128xf32>
      tpu.vector_store %arg6[%c0_23, %c0_24], %27 {strides = array<i32>} : memref<1x128xf32, #tpu.memory_space<vmem>>, vector<1x128xf32>,
      %cst_25 = arith.constant 0.000000e+00 : f32
      %29 = vector.broadcast %cst_25 : f32 to vector<1x128xf32>
      %c0_26 = arith.constant 0 : index
      %c0_27 = arith.constant 0 : index
      %30 = vector.load %arg7[%c0_26, %c0_27] : memref<1x128xf32, #tpu.memory_space<vmem>>, vector<1x128xf32>
      tpu.vector_store %arg7[%c0_26, %c0_27], %29 {strides = array<i32>} : memref<1x128xf32, #tpu.memory_space<vmem>>, vector<1x128xf32>,
    } else {
    }
    %c0 = arith.constant 0 : index
    %c0_2 = arith.constant 0 : index
    %c0_3 = arith.constant 0 : index
    %5 = vector.load %arg2[%c0, %c0_2, %c0_3] : memref<1x2x128xbf16, #tpu.memory_space<vmem>>, vector<1x2x128xbf16>
    %6 = vector.shape_cast %5 : vector<1x2x128xbf16> to vector<2x128xbf16>
    %c0_4 = arith.constant 0 : index
    %c0_5 = arith.constant 0 : index
    %c0_6 = arith.constant 0 : index
    %7 = vector.load %arg3[%c0_4, %c0_5, %c0_6] : memref<1x128x128xbf16, #tpu.memory_space<vmem>>, vector<1x128x128xbf16>
    %8 = vector.shape_cast %7 : vector<1x128x128xbf16> to vector<128x128xbf16>
    %cst = arith.constant dense<0.000000e+00> : vector<2x128xf32>
    %9 = tpu.matmul %6, %8, %cst {dimension_numbers = #tpu.dot_dimension_numbers<[1], [0], [0], [1], [0, 0, 1, 1], [], []>} : vector<2x128xbf16>, vector<128x128xbf16>, vector<2x128xf32> -> vector<2x128xf32>
    %c0_7 = arith.constant 0 : index
    %c0_8 = arith.constant 0 : index
    %10 = vector.load %arg4[%c0_7, %c0_8] : memref<1x128xf32, #tpu.memory_space<vmem>>, vector<1x128xf32>
    %11 = vector.broadcast %10 : vector<1x128xf32> to vector<2x128xf32>
    %12 = arith.addf %9, %11 : vector<2x128xf32>
    %c0_9 = arith.constant 0 : index
    %c0_10 = arith.constant 0 : index
    %c0_11 = arith.constant 0 : index
    %13 = vector.load %arg5[%c0_9, %c0_10, %c0_11] : memref<1x2x128xf32, #tpu.memory_space<vmem>>, vector<1x2x128xf32>
    %14 = vector.shape_cast %13 : vector<1x2x128xf32> to vector<2x128xf32>
    %15 = vector.shape_cast %12 : vector<2x128xf32> to vector<1x2x128xf32>
    tpu.vector_store %arg5[%c0_9, %c0_10, %c0_11], %15 {strides = array<i32>} : memref<1x2x128xf32, #tpu.memory_space<vmem>>, vector<1x2x128xf32>,
    %c0_12 = arith.constant 0 : index
    %c0_13 = arith.constant 0 : index
    %16 = vector.load %arg6[%c0_12, %c0_13] : memref<1x128xf32, #tpu.memory_space<vmem>>, vector<1x128xf32>
    %cst_14 = arith.constant dense<0.000000e+00> : vector<128xf32>
    %17 = vector.multi_reduction <add>, %12, %cst_14 [0] : vector<2x128xf32> to vector<128xf32>
    %18 = vector.shape_cast %17 : vector<128xf32> to vector<1x128xf32>
    %19 = arith.addf %16, %18 : vector<1x128xf32>
    %c0_15 = arith.constant 0 : index
    %c0_16 = arith.constant 0 : index
    %20 = vector.load %arg6[%c0_15, %c0_16] : memref<1x128xf32, #tpu.memory_space<vmem>>, vector<1x128xf32>
    tpu.vector_store %arg6[%c0_15, %c0_16], %19 {strides = array<i32>} : memref<1x128xf32, #tpu.memory_space<vmem>>, vector<1x128xf32>,
    %c0_17 = arith.constant 0 : index
    %c0_18 = arith.constant 0 : index
    %21 = vector.load %arg7[%c0_17, %c0_18] : memref<1x128xf32, #tpu.memory_space<vmem>>, vector<1x128xf32>
    %22 = arith.mulf %12, %12 : vector<2x128xf32>
    %cst_19 = arith.constant dense<0.000000e+00> : vector<128xf32>
    %23 = vector.multi_reduction <add>, %22, %cst_19 [0] : vector<2x128xf32> to vector<128xf32>
    %24 = vector.shape_cast %23 : vector<128xf32> to vector<1x128xf32>
    %25 = arith.addf %21, %24 : vector<1x128xf32>
    %c0_20 = arith.constant 0 : index
    %c0_21 = arith.constant 0 : index
    %26 = vector.load %arg7[%c0_20, %c0_21] : memref<1x128xf32, #tpu.memory_space<vmem>>, vector<1x128xf32>
    tpu.vector_store %arg7[%c0_20, %c0_21], %25 {strides = array<i32>} : memref<1x128xf32, #tpu.memory_space<vmem>>, vector<1x128xf32>,
    return
  }
  func.func @transform_0(%arg0: i32, %arg1: i32) -> (i32, i32, i32) {
    %c0_i32 = arith.constant 0 : i32
    %c0_i32_0 = arith.constant 0 : i32
    return %arg0, %arg1, %c0_i32 : i32, i32, i32
  }
  func.func @transform_1(%arg0: i32, %arg1: i32) -> (i32, i32, i32) {
    %c0_i32 = arith.constant 0 : i32
    %c0_i32_0 = arith.constant 0 : i32
    %c0_i32_1 = arith.constant 0 : i32
    return %arg0, %c0_i32, %c0_i32_0 : i32, i32, i32
  }
  func.func @transform_2(%arg0: i32, %arg1: i32) -> (i32, i32) {
    %c0_i32 = arith.constant 0 : i32
    %c0_i32_0 = arith.constant 0 : i32
    %c0_i32_1 = arith.constant 0 : i32
    return %c0_i32, %c0_i32_0 : i32, i32
  }
  func.func @transform_3(%arg0: i32, %arg1: i32) -> (i32, i32, i32) {
    %c0_i32 = arith.constant 0 : i32
    %c0_i32_0 = arith.constant 0 : i32
    return %arg0, %arg1, %c0_i32 : i32, i32, i32
  }
  func.func @transform_4(%arg0: i32, %arg1: i32) -> (i32, i32) {
    %c0_i32 = arith.constant 0 : i32
    %c0_i32_0 = arith.constant 0 : i32
    %c0_i32_1 = arith.constant 0 : i32
    return %c0_i32, %c0_i32_0 : i32, i32
  }
  func.func @transform_5(%arg0: i32, %arg1: i32) -> (i32, i32) {
    %c0_i32 = arith.constant 0 : i32
    %c0_i32_0 = arith.constant 0 : i32
    %c0_i32_1 = arith.constant 0 : i32
    return %c0_i32, %c0_i32_0 : i32, i32
  }
}

module attributes {stable_mosaic.version = 11 : i64} {
  func.func @_matmul_bias_stats_kernel(%arg0: i32, %arg1: i32, %arg2: memref<1x32x512xbf16, #tpu.memory_space<vmem>>, %arg3: memref<1x512x64xbf16, #tpu.memory_space<vmem>>, %arg4: memref<1x64xf32, #tpu.memory_space<vmem>>, %arg5: memref<1x32x64xf32, #tpu.memory_space<vmem>>, %arg6: memref<1x64xf32, #tpu.memory_space<vmem>>, %arg7: memref<1x64xf32, #tpu.memory_space<vmem>>) attributes {dimension_semantics = [#tpu.dimension_semantics<arbitrary>, #tpu.dimension_semantics<arbitrary>], iteration_bounds = array<i64: 4, 1>, scalar_prefetch = 0 : i64, scratch_operands = 0 : i64, tpu.core_type = #tpu.core_type<tc>, window_params = [{transform_indices = @transform_0, window_bounds = array<i64: 1, 32, 512>}, {transform_indices = @transform_1, window_bounds = array<i64: 1, 512, 64>}, {pipeline_mode = #tpu.pipeline_mode<synchronous>, transform_indices = @transform_2, window_bounds = array<i64: 1, 64>}, {transform_indices = @transform_3, window_bounds = array<i64: 1, 32, 64>}, {pipeline_mode = #tpu.pipeline_mode<synchronous>, transform_indices = @transform_4, window_bounds = array<i64: 1, 64>}, {pipeline_mode = #tpu.pipeline_mode<synchronous>, transform_indices = @transform_5, window_bounds = array<i64: 1, 64>}]} {
    %c0_i32 = arith.constant 0 : i32
    %0 = arith.cmpi eq, %arg0, %c0_i32 : i32
    %c0_i32_0 = arith.constant 0 : i32
    %1 = arith.cmpi eq, %arg1, %c0_i32_0 : i32
    %2 = arith.andi %0, %1 : i1
    %3 = arith.extui %2 : i1 to i32
    %c0_i32_1 = arith.constant 0 : i32
    %4 = arith.cmpi ne, %3, %c0_i32_1 : i32
    scf.if %4 {
      %cst_22 = arith.constant 0.000000e+00 : f32
      %27 = vector.broadcast %cst_22 : f32 to vector<1x64xf32>
      %c0_23 = arith.constant 0 : index
      %c0_24 = arith.constant 0 : index
      %28 = vector.load %arg6[%c0_23, %c0_24] : memref<1x64xf32, #tpu.memory_space<vmem>>, vector<1x64xf32>
      tpu.vector_store %arg6[%c0_23, %c0_24], %27 {strides = array<i32>} : memref<1x64xf32, #tpu.memory_space<vmem>>, vector<1x64xf32>,
      %cst_25 = arith.constant 0.000000e+00 : f32
      %29 = vector.broadcast %cst_25 : f32 to vector<1x64xf32>
      %c0_26 = arith.constant 0 : index
      %c0_27 = arith.constant 0 : index
      %30 = vector.load %arg7[%c0_26, %c0_27] : memref<1x64xf32, #tpu.memory_space<vmem>>, vector<1x64xf32>
      tpu.vector_store %arg7[%c0_26, %c0_27], %29 {strides = array<i32>} : memref<1x64xf32, #tpu.memory_space<vmem>>, vector<1x64xf32>,
    } else {
    }
    %c0 = arith.constant 0 : index
    %c0_2 = arith.constant 0 : index
    %c0_3 = arith.constant 0 : index
    %5 = vector.load %arg2[%c0, %c0_2, %c0_3] : memref<1x32x512xbf16, #tpu.memory_space<vmem>>, vector<1x32x512xbf16>
    %6 = vector.shape_cast %5 : vector<1x32x512xbf16> to vector<32x512xbf16>
    %c0_4 = arith.constant 0 : index
    %c0_5 = arith.constant 0 : index
    %c0_6 = arith.constant 0 : index
    %7 = vector.load %arg3[%c0_4, %c0_5, %c0_6] : memref<1x512x64xbf16, #tpu.memory_space<vmem>>, vector<1x512x64xbf16>
    %8 = vector.shape_cast %7 : vector<1x512x64xbf16> to vector<512x64xbf16>
    %cst = arith.constant dense<0.000000e+00> : vector<32x64xf32>
    %9 = tpu.matmul %6, %8, %cst {dimension_numbers = #tpu.dot_dimension_numbers<[1], [0], [0], [1], [0, 0, 1, 1], [], []>} : vector<32x512xbf16>, vector<512x64xbf16>, vector<32x64xf32> -> vector<32x64xf32>
    %c0_7 = arith.constant 0 : index
    %c0_8 = arith.constant 0 : index
    %10 = vector.load %arg4[%c0_7, %c0_8] : memref<1x64xf32, #tpu.memory_space<vmem>>, vector<1x64xf32>
    %11 = vector.broadcast %10 : vector<1x64xf32> to vector<32x64xf32>
    %12 = arith.addf %9, %11 : vector<32x64xf32>
    %c0_9 = arith.constant 0 : index
    %c0_10 = arith.constant 0 : index
    %c0_11 = arith.constant 0 : index
    %13 = vector.load %arg5[%c0_9, %c0_10, %c0_11] : memref<1x32x64xf32, #tpu.memory_space<vmem>>, vector<1x32x64xf32>
    %14 = vector.shape_cast %13 : vector<1x32x64xf32> to vector<32x64xf32>
    %15 = vector.shape_cast %12 : vector<32x64xf32> to vector<1x32x64xf32>
    tpu.vector_store %arg5[%c0_9, %c0_10, %c0_11], %15 {strides = array<i32>} : memref<1x32x64xf32, #tpu.memory_space<vmem>>, vector<1x32x64xf32>,
    %c0_12 = arith.constant 0 : index
    %c0_13 = arith.constant 0 : index
    %16 = vector.load %arg6[%c0_12, %c0_13] : memref<1x64xf32, #tpu.memory_space<vmem>>, vector<1x64xf32>
    %cst_14 = arith.constant dense<0.000000e+00> : vector<64xf32>
    %17 = vector.multi_reduction <add>, %12, %cst_14 [0] : vector<32x64xf32> to vector<64xf32>
    %18 = vector.shape_cast %17 : vector<64xf32> to vector<1x64xf32>
    %19 = arith.addf %16, %18 : vector<1x64xf32>
    %c0_15 = arith.constant 0 : index
    %c0_16 = arith.constant 0 : index
    %20 = vector.load %arg6[%c0_15, %c0_16] : memref<1x64xf32, #tpu.memory_space<vmem>>, vector<1x64xf32>
    tpu.vector_store %arg6[%c0_15, %c0_16], %19 {strides = array<i32>} : memref<1x64xf32, #tpu.memory_space<vmem>>, vector<1x64xf32>,
    %c0_17 = arith.constant 0 : index
    %c0_18 = arith.constant 0 : index
    %21 = vector.load %arg7[%c0_17, %c0_18] : memref<1x64xf32, #tpu.memory_space<vmem>>, vector<1x64xf32>
    %22 = arith.mulf %12, %12 : vector<32x64xf32>
    %cst_19 = arith.constant dense<0.000000e+00> : vector<64xf32>
    %23 = vector.multi_reduction <add>, %22, %cst_19 [0] : vector<32x64xf32> to vector<64xf32>
    %24 = vector.shape_cast %23 : vector<64xf32> to vector<1x64xf32>
    %25 = arith.addf %21, %24 : vector<1x64xf32>
    %c0_20 = arith.constant 0 : index
    %c0_21 = arith.constant 0 : index
    %26 = vector.load %arg7[%c0_20, %c0_21] : memref<1x64xf32, #tpu.memory_space<vmem>>, vector<1x64xf32>
    tpu.vector_store %arg7[%c0_20, %c0_21], %25 {strides = array<i32>} : memref<1x64xf32, #tpu.memory_space<vmem>>, vector<1x64xf32>,
    return
  }
  func.func @transform_0(%arg0: i32, %arg1: i32) -> (i32, i32, i32) {
    %c0_i32 = arith.constant 0 : i32
    %c0_i32_0 = arith.constant 0 : i32
    return %arg0, %arg1, %c0_i32 : i32, i32, i32
  }
  func.func @transform_1(%arg0: i32, %arg1: i32) -> (i32, i32, i32) {
    %c0_i32 = arith.constant 0 : i32
    %c0_i32_0 = arith.constant 0 : i32
    %c0_i32_1 = arith.constant 0 : i32
    return %arg0, %c0_i32, %c0_i32_0 : i32, i32, i32
  }
  func.func @transform_2(%arg0: i32, %arg1: i32) -> (i32, i32) {
    %c0_i32 = arith.constant 0 : i32
    %c0_i32_0 = arith.constant 0 : i32
    %c0_i32_1 = arith.constant 0 : i32
    return %c0_i32, %c0_i32_0 : i32, i32
  }
  func.func @transform_3(%arg0: i32, %arg1: i32) -> (i32, i32, i32) {
    %c0_i32 = arith.constant 0 : i32
    %c0_i32_0 = arith.constant 0 : i32
    return %arg0, %arg1, %c0_i32 : i32, i32, i32
  }
  func.func @transform_4(%arg0: i32, %arg1: i32) -> (i32, i32) {
    %c0_i32 = arith.constant 0 : i32
    %c0_i32_0 = arith.constant 0 : i32
    %c0_i32_1 = arith.constant 0 : i32
    return %c0_i32, %c0_i32_0 : i32, i32
  }
  func.func @transform_5(%arg0: i32, %arg1: i32) -> (i32, i32) {
    %c0_i32 = arith.constant 0 : i32
    %c0_i32_0 = arith.constant 0 : i32
    %c0_i32_1 = arith.constant 0 : i32
    return %c0_i32, %c0_i32_0 : i32, i32
  }
}

module attributes {stable_mosaic.version = 11 : i64} {
  func.func @_bn_relu_kernel(%arg0: i32, %arg1: i32, %arg2: memref<1x32x64xf32, #tpu.memory_space<vmem>>, %arg3: memref<1x64xf32, #tpu.memory_space<vmem>>, %arg4: memref<1x64xf32, #tpu.memory_space<vmem>>, %arg5: memref<1x32x64xbf16, #tpu.memory_space<vmem>>) attributes {dimension_semantics = [#tpu.dimension_semantics<parallel>, #tpu.dimension_semantics<parallel>], iteration_bounds = array<i64: 4, 1>, scalar_prefetch = 0 : i64, scratch_operands = 0 : i64, tpu.core_type = #tpu.core_type<tc>, window_params = [{transform_indices = @transform_0, window_bounds = array<i64: 1, 32, 64>}, {pipeline_mode = #tpu.pipeline_mode<synchronous>, transform_indices = @transform_1, window_bounds = array<i64: 1, 64>}, {pipeline_mode = #tpu.pipeline_mode<synchronous>, transform_indices = @transform_2, window_bounds = array<i64: 1, 64>}, {transform_indices = @transform_3, window_bounds = array<i64: 1, 32, 64>}]} {
    %c0 = arith.constant 0 : index
    %c0_0 = arith.constant 0 : index
    %c0_1 = arith.constant 0 : index
    %0 = vector.load %arg2[%c0, %c0_0, %c0_1] : memref<1x32x64xf32, #tpu.memory_space<vmem>>, vector<1x32x64xf32>
    %1 = vector.shape_cast %0 : vector<1x32x64xf32> to vector<32x64xf32>
    %c0_2 = arith.constant 0 : index
    %c0_3 = arith.constant 0 : index
    %2 = vector.load %arg3[%c0_2, %c0_3] : memref<1x64xf32, #tpu.memory_space<vmem>>, vector<1x64xf32>
    %3 = vector.broadcast %2 : vector<1x64xf32> to vector<32x64xf32>
    %4 = arith.subf %1, %3 : vector<32x64xf32>
    %c0_4 = arith.constant 0 : index
    %c0_5 = arith.constant 0 : index
    %5 = vector.load %arg4[%c0_4, %c0_5] : memref<1x64xf32, #tpu.memory_space<vmem>>, vector<1x64xf32>
    %6 = vector.broadcast %5 : vector<1x64xf32> to vector<32x64xf32>
    %7 = arith.mulf %4, %6 : vector<32x64xf32>
    %cst = arith.constant 0.000000e+00 : f32
    %8 = vector.broadcast %cst : f32 to vector<32x64xf32>
    %9 = arith.maximumf %7, %8 : vector<32x64xf32>
    %10 = arith.truncf %9 : vector<32x64xf32> to vector<32x64xbf16>
    %c0_6 = arith.constant 0 : index
    %c0_7 = arith.constant 0 : index
    %c0_8 = arith.constant 0 : index
    %11 = vector.load %arg5[%c0_6, %c0_7, %c0_8] : memref<1x32x64xbf16, #tpu.memory_space<vmem>>, vector<1x32x64xbf16>
    %12 = vector.shape_cast %11 : vector<1x32x64xbf16> to vector<32x64xbf16>
    %13 = vector.shape_cast %10 : vector<32x64xbf16> to vector<1x32x64xbf16>
    tpu.vector_store %arg5[%c0_6, %c0_7, %c0_8], %13 {strides = array<i32>} : memref<1x32x64xbf16, #tpu.memory_space<vmem>>, vector<1x32x64xbf16>,
    return
  }
  func.func @transform_0(%arg0: i32, %arg1: i32) -> (i32, i32, i32) {
    %c0_i32 = arith.constant 0 : i32
    %c0_i32_0 = arith.constant 0 : i32
    return %arg0, %arg1, %c0_i32 : i32, i32, i32
  }
  func.func @transform_1(%arg0: i32, %arg1: i32) -> (i32, i32) {
    %c0_i32 = arith.constant 0 : i32
    %c0_i32_0 = arith.constant 0 : i32
    %c0_i32_1 = arith.constant 0 : i32
    return %c0_i32, %c0_i32_0 : i32, i32
  }
  func.func @transform_2(%arg0: i32, %arg1: i32) -> (i32, i32) {
    %c0_i32 = arith.constant 0 : i32
    %c0_i32_0 = arith.constant 0 : i32
    %c0_i32_1 = arith.constant 0 : i32
    return %c0_i32, %c0_i32_0 : i32, i32
  }
  func.func @transform_3(%arg0: i32, %arg1: i32) -> (i32, i32, i32) {
    %c0_i32 = arith.constant 0 : i32
    %c0_i32_0 = arith.constant 0 : i32
    return %arg0, %arg1, %c0_i32 : i32, i32, i32
  }
}

module attributes {stable_mosaic.version = 11 : i64} {
  func.func @_matmul_bias_stats_kernel(%arg0: i32, %arg1: i32, %arg2: memref<1x128x256xbf16, #tpu.memory_space<vmem>>, %arg3: memref<1x256x32xbf16, #tpu.memory_space<vmem>>, %arg4: memref<1x32xf32, #tpu.memory_space<vmem>>, %arg5: memref<1x128x32xf32, #tpu.memory_space<vmem>>, %arg6: memref<1x32xf32, #tpu.memory_space<vmem>>, %arg7: memref<1x32xf32, #tpu.memory_space<vmem>>) attributes {dimension_semantics = [#tpu.dimension_semantics<arbitrary>, #tpu.dimension_semantics<arbitrary>], iteration_bounds = array<i64: 4, 1>, scalar_prefetch = 0 : i64, scratch_operands = 0 : i64, tpu.core_type = #tpu.core_type<tc>, window_params = [{transform_indices = @transform_0, window_bounds = array<i64: 1, 128, 256>}, {transform_indices = @transform_1, window_bounds = array<i64: 1, 256, 32>}, {pipeline_mode = #tpu.pipeline_mode<synchronous>, transform_indices = @transform_2, window_bounds = array<i64: 1, 32>}, {transform_indices = @transform_3, window_bounds = array<i64: 1, 128, 32>}, {pipeline_mode = #tpu.pipeline_mode<synchronous>, transform_indices = @transform_4, window_bounds = array<i64: 1, 32>}, {pipeline_mode = #tpu.pipeline_mode<synchronous>, transform_indices = @transform_5, window_bounds = array<i64: 1, 32>}]} {
    %c0_i32 = arith.constant 0 : i32
    %0 = arith.cmpi eq, %arg0, %c0_i32 : i32
    %c0_i32_0 = arith.constant 0 : i32
    %1 = arith.cmpi eq, %arg1, %c0_i32_0 : i32
    %2 = arith.andi %0, %1 : i1
    %3 = arith.extui %2 : i1 to i32
    %c0_i32_1 = arith.constant 0 : i32
    %4 = arith.cmpi ne, %3, %c0_i32_1 : i32
    scf.if %4 {
      %cst_22 = arith.constant 0.000000e+00 : f32
      %27 = vector.broadcast %cst_22 : f32 to vector<1x32xf32>
      %c0_23 = arith.constant 0 : index
      %c0_24 = arith.constant 0 : index
      %28 = vector.load %arg6[%c0_23, %c0_24] : memref<1x32xf32, #tpu.memory_space<vmem>>, vector<1x32xf32>
      tpu.vector_store %arg6[%c0_23, %c0_24], %27 {strides = array<i32>} : memref<1x32xf32, #tpu.memory_space<vmem>>, vector<1x32xf32>,
      %cst_25 = arith.constant 0.000000e+00 : f32
      %29 = vector.broadcast %cst_25 : f32 to vector<1x32xf32>
      %c0_26 = arith.constant 0 : index
      %c0_27 = arith.constant 0 : index
      %30 = vector.load %arg7[%c0_26, %c0_27] : memref<1x32xf32, #tpu.memory_space<vmem>>, vector<1x32xf32>
      tpu.vector_store %arg7[%c0_26, %c0_27], %29 {strides = array<i32>} : memref<1x32xf32, #tpu.memory_space<vmem>>, vector<1x32xf32>,
    } else {
    }
    %c0 = arith.constant 0 : index
    %c0_2 = arith.constant 0 : index
    %c0_3 = arith.constant 0 : index
    %5 = vector.load %arg2[%c0, %c0_2, %c0_3] : memref<1x128x256xbf16, #tpu.memory_space<vmem>>, vector<1x128x256xbf16>
    %6 = vector.shape_cast %5 : vector<1x128x256xbf16> to vector<128x256xbf16>
    %c0_4 = arith.constant 0 : index
    %c0_5 = arith.constant 0 : index
    %c0_6 = arith.constant 0 : index
    %7 = vector.load %arg3[%c0_4, %c0_5, %c0_6] : memref<1x256x32xbf16, #tpu.memory_space<vmem>>, vector<1x256x32xbf16>
    %8 = vector.shape_cast %7 : vector<1x256x32xbf16> to vector<256x32xbf16>
    %cst = arith.constant dense<0.000000e+00> : vector<128x32xf32>
    %9 = tpu.matmul %6, %8, %cst {dimension_numbers = #tpu.dot_dimension_numbers<[1], [0], [0], [1], [0, 0, 1, 1], [], []>} : vector<128x256xbf16>, vector<256x32xbf16>, vector<128x32xf32> -> vector<128x32xf32>
    %c0_7 = arith.constant 0 : index
    %c0_8 = arith.constant 0 : index
    %10 = vector.load %arg4[%c0_7, %c0_8] : memref<1x32xf32, #tpu.memory_space<vmem>>, vector<1x32xf32>
    %11 = vector.broadcast %10 : vector<1x32xf32> to vector<128x32xf32>
    %12 = arith.addf %9, %11 : vector<128x32xf32>
    %c0_9 = arith.constant 0 : index
    %c0_10 = arith.constant 0 : index
    %c0_11 = arith.constant 0 : index
    %13 = vector.load %arg5[%c0_9, %c0_10, %c0_11] : memref<1x128x32xf32, #tpu.memory_space<vmem>>, vector<1x128x32xf32>
    %14 = vector.shape_cast %13 : vector<1x128x32xf32> to vector<128x32xf32>
    %15 = vector.shape_cast %12 : vector<128x32xf32> to vector<1x128x32xf32>
    tpu.vector_store %arg5[%c0_9, %c0_10, %c0_11], %15 {strides = array<i32>} : memref<1x128x32xf32, #tpu.memory_space<vmem>>, vector<1x128x32xf32>,
    %c0_12 = arith.constant 0 : index
    %c0_13 = arith.constant 0 : index
    %16 = vector.load %arg6[%c0_12, %c0_13] : memref<1x32xf32, #tpu.memory_space<vmem>>, vector<1x32xf32>
    %cst_14 = arith.constant dense<0.000000e+00> : vector<32xf32>
    %17 = vector.multi_reduction <add>, %12, %cst_14 [0] : vector<128x32xf32> to vector<32xf32>
    %18 = vector.shape_cast %17 : vector<32xf32> to vector<1x32xf32>
    %19 = arith.addf %16, %18 : vector<1x32xf32>
    %c0_15 = arith.constant 0 : index
    %c0_16 = arith.constant 0 : index
    %20 = vector.load %arg6[%c0_15, %c0_16] : memref<1x32xf32, #tpu.memory_space<vmem>>, vector<1x32xf32>
    tpu.vector_store %arg6[%c0_15, %c0_16], %19 {strides = array<i32>} : memref<1x32xf32, #tpu.memory_space<vmem>>, vector<1x32xf32>,
    %c0_17 = arith.constant 0 : index
    %c0_18 = arith.constant 0 : index
    %21 = vector.load %arg7[%c0_17, %c0_18] : memref<1x32xf32, #tpu.memory_space<vmem>>, vector<1x32xf32>
    %22 = arith.mulf %12, %12 : vector<128x32xf32>
    %cst_19 = arith.constant dense<0.000000e+00> : vector<32xf32>
    %23 = vector.multi_reduction <add>, %22, %cst_19 [0] : vector<128x32xf32> to vector<32xf32>
    %24 = vector.shape_cast %23 : vector<32xf32> to vector<1x32xf32>
    %25 = arith.addf %21, %24 : vector<1x32xf32>
    %c0_20 = arith.constant 0 : index
    %c0_21 = arith.constant 0 : index
    %26 = vector.load %arg7[%c0_20, %c0_21] : memref<1x32xf32, #tpu.memory_space<vmem>>, vector<1x32xf32>
    tpu.vector_store %arg7[%c0_20, %c0_21], %25 {strides = array<i32>} : memref<1x32xf32, #tpu.memory_space<vmem>>, vector<1x32xf32>,
    return
  }
  func.func @transform_0(%arg0: i32, %arg1: i32) -> (i32, i32, i32) {
    %c0_i32 = arith.constant 0 : i32
    %c0_i32_0 = arith.constant 0 : i32
    return %arg0, %arg1, %c0_i32 : i32, i32, i32
  }
  func.func @transform_1(%arg0: i32, %arg1: i32) -> (i32, i32, i32) {
    %c0_i32 = arith.constant 0 : i32
    %c0_i32_0 = arith.constant 0 : i32
    %c0_i32_1 = arith.constant 0 : i32
    return %arg0, %c0_i32, %c0_i32_0 : i32, i32, i32
  }
  func.func @transform_2(%arg0: i32, %arg1: i32) -> (i32, i32) {
    %c0_i32 = arith.constant 0 : i32
    %c0_i32_0 = arith.constant 0 : i32
    %c0_i32_1 = arith.constant 0 : i32
    return %c0_i32, %c0_i32_0 : i32, i32
  }
  func.func @transform_3(%arg0: i32, %arg1: i32) -> (i32, i32, i32) {
    %c0_i32 = arith.constant 0 : i32
    %c0_i32_0 = arith.constant 0 : i32
    return %arg0, %arg1, %c0_i32 : i32, i32, i32
  }
  func.func @transform_4(%arg0: i32, %arg1: i32) -> (i32, i32) {
    %c0_i32 = arith.constant 0 : i32
    %c0_i32_0 = arith.constant 0 : i32
    %c0_i32_1 = arith.constant 0 : i32
    return %c0_i32, %c0_i32_0 : i32, i32
  }
  func.func @transform_5(%arg0: i32, %arg1: i32) -> (i32, i32) {
    %c0_i32 = arith.constant 0 : i32
    %c0_i32_0 = arith.constant 0 : i32
    %c0_i32_1 = arith.constant 0 : i32
    return %c0_i32, %c0_i32_0 : i32, i32
  }
}

module attributes {stable_mosaic.version = 11 : i64} {
  func.func @_bn_relu_kernel(%arg0: i32, %arg1: i32, %arg2: memref<1x128x32xf32, #tpu.memory_space<vmem>>, %arg3: memref<1x32xf32, #tpu.memory_space<vmem>>, %arg4: memref<1x32xf32, #tpu.memory_space<vmem>>, %arg5: memref<1x128x32xbf16, #tpu.memory_space<vmem>>) attributes {dimension_semantics = [#tpu.dimension_semantics<parallel>, #tpu.dimension_semantics<parallel>], iteration_bounds = array<i64: 4, 1>, scalar_prefetch = 0 : i64, scratch_operands = 0 : i64, tpu.core_type = #tpu.core_type<tc>, window_params = [{transform_indices = @transform_0, window_bounds = array<i64: 1, 128, 32>}, {pipeline_mode = #tpu.pipeline_mode<synchronous>, transform_indices = @transform_1, window_bounds = array<i64: 1, 32>}, {pipeline_mode = #tpu.pipeline_mode<synchronous>, transform_indices = @transform_2, window_bounds = array<i64: 1, 32>}, {transform_indices = @transform_3, window_bounds = array<i64: 1, 128, 32>}]} {
    %c0 = arith.constant 0 : index
    %c0_0 = arith.constant 0 : index
    %c0_1 = arith.constant 0 : index
    %0 = vector.load %arg2[%c0, %c0_0, %c0_1] : memref<1x128x32xf32, #tpu.memory_space<vmem>>, vector<1x128x32xf32>
    %1 = vector.shape_cast %0 : vector<1x128x32xf32> to vector<128x32xf32>
    %c0_2 = arith.constant 0 : index
    %c0_3 = arith.constant 0 : index
    %2 = vector.load %arg3[%c0_2, %c0_3] : memref<1x32xf32, #tpu.memory_space<vmem>>, vector<1x32xf32>
    %3 = vector.broadcast %2 : vector<1x32xf32> to vector<128x32xf32>
    %4 = arith.subf %1, %3 : vector<128x32xf32>
    %c0_4 = arith.constant 0 : index
    %c0_5 = arith.constant 0 : index
    %5 = vector.load %arg4[%c0_4, %c0_5] : memref<1x32xf32, #tpu.memory_space<vmem>>, vector<1x32xf32>
    %6 = vector.broadcast %5 : vector<1x32xf32> to vector<128x32xf32>
    %7 = arith.mulf %4, %6 : vector<128x32xf32>
    %cst = arith.constant 0.000000e+00 : f32
    %8 = vector.broadcast %cst : f32 to vector<128x32xf32>
    %9 = arith.maximumf %7, %8 : vector<128x32xf32>
    %10 = arith.truncf %9 : vector<128x32xf32> to vector<128x32xbf16>
    %c0_6 = arith.constant 0 : index
    %c0_7 = arith.constant 0 : index
    %c0_8 = arith.constant 0 : index
    %11 = vector.load %arg5[%c0_6, %c0_7, %c0_8] : memref<1x128x32xbf16, #tpu.memory_space<vmem>>, vector<1x128x32xbf16>
    %12 = vector.shape_cast %11 : vector<1x128x32xbf16> to vector<128x32xbf16>
    %13 = vector.shape_cast %10 : vector<128x32xbf16> to vector<1x128x32xbf16>
    tpu.vector_store %arg5[%c0_6, %c0_7, %c0_8], %13 {strides = array<i32>} : memref<1x128x32xbf16, #tpu.memory_space<vmem>>, vector<1x128x32xbf16>,
    return
  }
  func.func @transform_0(%arg0: i32, %arg1: i32) -> (i32, i32, i32) {
    %c0_i32 = arith.constant 0 : i32
    %c0_i32_0 = arith.constant 0 : i32
    return %arg0, %arg1, %c0_i32 : i32, i32, i32
  }
  func.func @transform_1(%arg0: i32, %arg1: i32) -> (i32, i32) {
    %c0_i32 = arith.constant 0 : i32
    %c0_i32_0 = arith.constant 0 : i32
    %c0_i32_1 = arith.constant 0 : i32
    return %c0_i32, %c0_i32_0 : i32, i32
  }
  func.func @transform_2(%arg0: i32, %arg1: i32) -> (i32, i32) {
    %c0_i32 = arith.constant 0 : i32
    %c0_i32_0 = arith.constant 0 : i32
    %c0_i32_1 = arith.constant 0 : i32
    return %c0_i32, %c0_i32_0 : i32, i32
  }
  func.func @transform_3(%arg0: i32, %arg1: i32) -> (i32, i32, i32) {
    %c0_i32 = arith.constant 0 : i32
    %c0_i32_0 = arith.constant 0 : i32
    return %arg0, %arg1, %c0_i32 : i32, i32, i32
  }
}

module attributes {stable_mosaic.version = 11 : i64} {
  func.func @_matmul_bias_stats_kernel(%arg0: i32, %arg1: i32, %arg2: memref<1x512x128xbf16, #tpu.memory_space<vmem>>, %arg3: memref<1x128x16xbf16, #tpu.memory_space<vmem>>, %arg4: memref<1x16xf32, #tpu.memory_space<vmem>>, %arg5: memref<1x512x16xf32, #tpu.memory_space<vmem>>, %arg6: memref<1x16xf32, #tpu.memory_space<vmem>>, %arg7: memref<1x16xf32, #tpu.memory_space<vmem>>) attributes {dimension_semantics = [#tpu.dimension_semantics<arbitrary>, #tpu.dimension_semantics<arbitrary>], iteration_bounds = array<i64: 4, 1>, scalar_prefetch = 0 : i64, scratch_operands = 0 : i64, tpu.core_type = #tpu.core_type<tc>, window_params = [{transform_indices = @transform_0, window_bounds = array<i64: 1, 512, 128>}, {transform_indices = @transform_1, window_bounds = array<i64: 1, 128, 16>}, {pipeline_mode = #tpu.pipeline_mode<synchronous>, transform_indices = @transform_2, window_bounds = array<i64: 1, 16>}, {transform_indices = @transform_3, window_bounds = array<i64: 1, 512, 16>}, {pipeline_mode = #tpu.pipeline_mode<synchronous>, transform_indices = @transform_4, window_bounds = array<i64: 1, 16>}, {pipeline_mode = #tpu.pipeline_mode<synchronous>, transform_indices = @transform_5, window_bounds = array<i64: 1, 16>}]} {
    %c0_i32 = arith.constant 0 : i32
    %0 = arith.cmpi eq, %arg0, %c0_i32 : i32
    %c0_i32_0 = arith.constant 0 : i32
    %1 = arith.cmpi eq, %arg1, %c0_i32_0 : i32
    %2 = arith.andi %0, %1 : i1
    %3 = arith.extui %2 : i1 to i32
    %c0_i32_1 = arith.constant 0 : i32
    %4 = arith.cmpi ne, %3, %c0_i32_1 : i32
    scf.if %4 {
      %cst_22 = arith.constant 0.000000e+00 : f32
      %27 = vector.broadcast %cst_22 : f32 to vector<1x16xf32>
      %c0_23 = arith.constant 0 : index
      %c0_24 = arith.constant 0 : index
      %28 = vector.load %arg6[%c0_23, %c0_24] : memref<1x16xf32, #tpu.memory_space<vmem>>, vector<1x16xf32>
      tpu.vector_store %arg6[%c0_23, %c0_24], %27 {strides = array<i32>} : memref<1x16xf32, #tpu.memory_space<vmem>>, vector<1x16xf32>,
      %cst_25 = arith.constant 0.000000e+00 : f32
      %29 = vector.broadcast %cst_25 : f32 to vector<1x16xf32>
      %c0_26 = arith.constant 0 : index
      %c0_27 = arith.constant 0 : index
      %30 = vector.load %arg7[%c0_26, %c0_27] : memref<1x16xf32, #tpu.memory_space<vmem>>, vector<1x16xf32>
      tpu.vector_store %arg7[%c0_26, %c0_27], %29 {strides = array<i32>} : memref<1x16xf32, #tpu.memory_space<vmem>>, vector<1x16xf32>,
    } else {
    }
    %c0 = arith.constant 0 : index
    %c0_2 = arith.constant 0 : index
    %c0_3 = arith.constant 0 : index
    %5 = vector.load %arg2[%c0, %c0_2, %c0_3] : memref<1x512x128xbf16, #tpu.memory_space<vmem>>, vector<1x512x128xbf16>
    %6 = vector.shape_cast %5 : vector<1x512x128xbf16> to vector<512x128xbf16>
    %c0_4 = arith.constant 0 : index
    %c0_5 = arith.constant 0 : index
    %c0_6 = arith.constant 0 : index
    %7 = vector.load %arg3[%c0_4, %c0_5, %c0_6] : memref<1x128x16xbf16, #tpu.memory_space<vmem>>, vector<1x128x16xbf16>
    %8 = vector.shape_cast %7 : vector<1x128x16xbf16> to vector<128x16xbf16>
    %cst = arith.constant dense<0.000000e+00> : vector<512x16xf32>
    %9 = tpu.matmul %6, %8, %cst {dimension_numbers = #tpu.dot_dimension_numbers<[1], [0], [0], [1], [0, 0, 1, 1], [], []>} : vector<512x128xbf16>, vector<128x16xbf16>, vector<512x16xf32> -> vector<512x16xf32>
    %c0_7 = arith.constant 0 : index
    %c0_8 = arith.constant 0 : index
    %10 = vector.load %arg4[%c0_7, %c0_8] : memref<1x16xf32, #tpu.memory_space<vmem>>, vector<1x16xf32>
    %11 = vector.broadcast %10 : vector<1x16xf32> to vector<512x16xf32>
    %12 = arith.addf %9, %11 : vector<512x16xf32>
    %c0_9 = arith.constant 0 : index
    %c0_10 = arith.constant 0 : index
    %c0_11 = arith.constant 0 : index
    %13 = vector.load %arg5[%c0_9, %c0_10, %c0_11] : memref<1x512x16xf32, #tpu.memory_space<vmem>>, vector<1x512x16xf32>
    %14 = vector.shape_cast %13 : vector<1x512x16xf32> to vector<512x16xf32>
    %15 = vector.shape_cast %12 : vector<512x16xf32> to vector<1x512x16xf32>
    tpu.vector_store %arg5[%c0_9, %c0_10, %c0_11], %15 {strides = array<i32>} : memref<1x512x16xf32, #tpu.memory_space<vmem>>, vector<1x512x16xf32>,
    %c0_12 = arith.constant 0 : index
    %c0_13 = arith.constant 0 : index
    %16 = vector.load %arg6[%c0_12, %c0_13] : memref<1x16xf32, #tpu.memory_space<vmem>>, vector<1x16xf32>
    %cst_14 = arith.constant dense<0.000000e+00> : vector<16xf32>
    %17 = vector.multi_reduction <add>, %12, %cst_14 [0] : vector<512x16xf32> to vector<16xf32>
    %18 = vector.shape_cast %17 : vector<16xf32> to vector<1x16xf32>
    %19 = arith.addf %16, %18 : vector<1x16xf32>
    %c0_15 = arith.constant 0 : index
    %c0_16 = arith.constant 0 : index
    %20 = vector.load %arg6[%c0_15, %c0_16] : memref<1x16xf32, #tpu.memory_space<vmem>>, vector<1x16xf32>
    tpu.vector_store %arg6[%c0_15, %c0_16], %19 {strides = array<i32>} : memref<1x16xf32, #tpu.memory_space<vmem>>, vector<1x16xf32>,
    %c0_17 = arith.constant 0 : index
    %c0_18 = arith.constant 0 : index
    %21 = vector.load %arg7[%c0_17, %c0_18] : memref<1x16xf32, #tpu.memory_space<vmem>>, vector<1x16xf32>
    %22 = arith.mulf %12, %12 : vector<512x16xf32>
    %cst_19 = arith.constant dense<0.000000e+00> : vector<16xf32>
    %23 = vector.multi_reduction <add>, %22, %cst_19 [0] : vector<512x16xf32> to vector<16xf32>
    %24 = vector.shape_cast %23 : vector<16xf32> to vector<1x16xf32>
    %25 = arith.addf %21, %24 : vector<1x16xf32>
    %c0_20 = arith.constant 0 : index
    %c0_21 = arith.constant 0 : index
    %26 = vector.load %arg7[%c0_20, %c0_21] : memref<1x16xf32, #tpu.memory_space<vmem>>, vector<1x16xf32>
    tpu.vector_store %arg7[%c0_20, %c0_21], %25 {strides = array<i32>} : memref<1x16xf32, #tpu.memory_space<vmem>>, vector<1x16xf32>,
    return
  }
  func.func @transform_0(%arg0: i32, %arg1: i32) -> (i32, i32, i32) {
    %c0_i32 = arith.constant 0 : i32
    %c0_i32_0 = arith.constant 0 : i32
    return %arg0, %arg1, %c0_i32 : i32, i32, i32
  }
  func.func @transform_1(%arg0: i32, %arg1: i32) -> (i32, i32, i32) {
    %c0_i32 = arith.constant 0 : i32
    %c0_i32_0 = arith.constant 0 : i32
    %c0_i32_1 = arith.constant 0 : i32
    return %arg0, %c0_i32, %c0_i32_0 : i32, i32, i32
  }
  func.func @transform_2(%arg0: i32, %arg1: i32) -> (i32, i32) {
    %c0_i32 = arith.constant 0 : i32
    %c0_i32_0 = arith.constant 0 : i32
    %c0_i32_1 = arith.constant 0 : i32
    return %c0_i32, %c0_i32_0 : i32, i32
  }
  func.func @transform_3(%arg0: i32, %arg1: i32) -> (i32, i32, i32) {
    %c0_i32 = arith.constant 0 : i32
    %c0_i32_0 = arith.constant 0 : i32
    return %arg0, %arg1, %c0_i32 : i32, i32, i32
  }
  func.func @transform_4(%arg0: i32, %arg1: i32) -> (i32, i32) {
    %c0_i32 = arith.constant 0 : i32
    %c0_i32_0 = arith.constant 0 : i32
    %c0_i32_1 = arith.constant 0 : i32
    return %c0_i32, %c0_i32_0 : i32, i32
  }
  func.func @transform_5(%arg0: i32, %arg1: i32) -> (i32, i32) {
    %c0_i32 = arith.constant 0 : i32
    %c0_i32_0 = arith.constant 0 : i32
    %c0_i32_1 = arith.constant 0 : i32
    return %c0_i32, %c0_i32_0 : i32, i32
  }
}

module attributes {stable_mosaic.version = 11 : i64} {
  func.func @_bn_relu_kernel(%arg0: i32, %arg1: i32, %arg2: memref<1x512x16xf32, #tpu.memory_space<vmem>>, %arg3: memref<1x16xf32, #tpu.memory_space<vmem>>, %arg4: memref<1x16xf32, #tpu.memory_space<vmem>>, %arg5: memref<1x512x16xbf16, #tpu.memory_space<vmem>>) attributes {dimension_semantics = [#tpu.dimension_semantics<parallel>, #tpu.dimension_semantics<parallel>], iteration_bounds = array<i64: 4, 1>, scalar_prefetch = 0 : i64, scratch_operands = 0 : i64, tpu.core_type = #tpu.core_type<tc>, window_params = [{transform_indices = @transform_0, window_bounds = array<i64: 1, 512, 16>}, {pipeline_mode = #tpu.pipeline_mode<synchronous>, transform_indices = @transform_1, window_bounds = array<i64: 1, 16>}, {pipeline_mode = #tpu.pipeline_mode<synchronous>, transform_indices = @transform_2, window_bounds = array<i64: 1, 16>}, {transform_indices = @transform_3, window_bounds = array<i64: 1, 512, 16>}]} {
    %c0 = arith.constant 0 : index
    %c0_0 = arith.constant 0 : index
    %c0_1 = arith.constant 0 : index
    %0 = vector.load %arg2[%c0, %c0_0, %c0_1] : memref<1x512x16xf32, #tpu.memory_space<vmem>>, vector<1x512x16xf32>
    %1 = vector.shape_cast %0 : vector<1x512x16xf32> to vector<512x16xf32>
    %c0_2 = arith.constant 0 : index
    %c0_3 = arith.constant 0 : index
    %2 = vector.load %arg3[%c0_2, %c0_3] : memref<1x16xf32, #tpu.memory_space<vmem>>, vector<1x16xf32>
    %3 = vector.broadcast %2 : vector<1x16xf32> to vector<512x16xf32>
    %4 = arith.subf %1, %3 : vector<512x16xf32>
    %c0_4 = arith.constant 0 : index
    %c0_5 = arith.constant 0 : index
    %5 = vector.load %arg4[%c0_4, %c0_5] : memref<1x16xf32, #tpu.memory_space<vmem>>, vector<1x16xf32>
    %6 = vector.broadcast %5 : vector<1x16xf32> to vector<512x16xf32>
    %7 = arith.mulf %4, %6 : vector<512x16xf32>
    %cst = arith.constant 0.000000e+00 : f32
    %8 = vector.broadcast %cst : f32 to vector<512x16xf32>
    %9 = arith.maximumf %7, %8 : vector<512x16xf32>
    %10 = arith.truncf %9 : vector<512x16xf32> to vector<512x16xbf16>
    %c0_6 = arith.constant 0 : index
    %c0_7 = arith.constant 0 : index
    %c0_8 = arith.constant 0 : index
    %11 = vector.load %arg5[%c0_6, %c0_7, %c0_8] : memref<1x512x16xbf16, #tpu.memory_space<vmem>>, vector<1x512x16xbf16>
    %12 = vector.shape_cast %11 : vector<1x512x16xbf16> to vector<512x16xbf16>
    %13 = vector.shape_cast %10 : vector<512x16xbf16> to vector<1x512x16xbf16>
    tpu.vector_store %arg5[%c0_6, %c0_7, %c0_8], %13 {strides = array<i32>} : memref<1x512x16xbf16, #tpu.memory_space<vmem>>, vector<1x512x16xbf16>,
    return
  }
  func.func @transform_0(%arg0: i32, %arg1: i32) -> (i32, i32, i32) {
    %c0_i32 = arith.constant 0 : i32
    %c0_i32_0 = arith.constant 0 : i32
    return %arg0, %arg1, %c0_i32 : i32, i32, i32
  }
  func.func @transform_1(%arg0: i32, %arg1: i32) -> (i32, i32) {
    %c0_i32 = arith.constant 0 : i32
    %c0_i32_0 = arith.constant 0 : i32
    %c0_i32_1 = arith.constant 0 : i32
    return %c0_i32, %c0_i32_0 : i32, i32
  }
  func.func @transform_2(%arg0: i32, %arg1: i32) -> (i32, i32) {
    %c0_i32 = arith.constant 0 : i32
    %c0_i32_0 = arith.constant 0 : i32
    %c0_i32_1 = arith.constant 0 : i32
    return %c0_i32, %c0_i32_0 : i32, i32
  }
  func.func @transform_3(%arg0: i32, %arg1: i32) -> (i32, i32, i32) {
    %c0_i32 = arith.constant 0 : i32
    %c0_i32_0 = arith.constant 0 : i32
    return %arg0, %arg1, %c0_i32 : i32, i32, i32
  }
}

module attributes {stable_mosaic.version = 11 : i64} {
  func.func @_tanh_head_kernel(%arg0: i32, %arg1: i32, %arg2: memref<1x1x64xbf16, #tpu.memory_space<vmem>>, %arg3: memref<1x64x512xbf16, #tpu.memory_space<vmem>>, %arg4: memref<1x1xf32, #tpu.memory_space<vmem>>, %arg5: memref<1x1x512xf32, #tpu.memory_space<vmem>>) attributes {dimension_semantics = [#tpu.dimension_semantics<parallel>, #tpu.dimension_semantics<parallel>], iteration_bounds = array<i64: 4, 4>, scalar_prefetch = 0 : i64, scratch_operands = 0 : i64, tpu.core_type = #tpu.core_type<tc>, window_params = [{transform_indices = @transform_0, window_bounds = array<i64: 1, 1, 64>}, {transform_indices = @transform_1, window_bounds = array<i64: 1, 64, 512>}, {pipeline_mode = #tpu.pipeline_mode<synchronous>, transform_indices = @transform_2, window_bounds = array<i64: 1, 1>}, {transform_indices = @transform_3, window_bounds = array<i64: 1, 1, 512>}]} {
    %c0 = arith.constant 0 : index
    %c0_0 = arith.constant 0 : index
    %c0_1 = arith.constant 0 : index
    %0 = vector.load %arg2[%c0, %c0_0, %c0_1] : memref<1x1x64xbf16, #tpu.memory_space<vmem>>, vector<1x1x64xbf16>
    %1 = vector.shape_cast %0 : vector<1x1x64xbf16> to vector<1x64xbf16>
    %c0_2 = arith.constant 0 : index
    %c0_3 = arith.constant 0 : index
    %c0_4 = arith.constant 0 : index
    %2 = vector.load %arg3[%c0_2, %c0_3, %c0_4] : memref<1x64x512xbf16, #tpu.memory_space<vmem>>, vector<1x64x512xbf16>
    %3 = vector.shape_cast %2 : vector<1x64x512xbf16> to vector<64x512xbf16>
    %cst = arith.constant dense<0.000000e+00> : vector<1x512xf32>
    %4 = tpu.matmul %1, %3, %cst {dimension_numbers = #tpu.dot_dimension_numbers<[1], [0], [0], [1], [0, 0, 1, 1], [], []>} : vector<1x64xbf16>, vector<64x512xbf16>, vector<1x512xf32> -> vector<1x512xf32>
    %c0_5 = arith.constant 0 : index
    %c0_6 = arith.constant 0 : index
    %5 = vector.load %arg4[%c0_5, %c0_6] : memref<1x1xf32, #tpu.memory_space<vmem>>, vector<1x1xf32>
    %6 = vector.broadcast %5 : vector<1x1xf32> to vector<1x512xf32>
    %7 = arith.addf %4, %6 : vector<1x512xf32>
    %8 = math.tanh %7 : vector<1x512xf32>
    %c0_7 = arith.constant 0 : index
    %c0_8 = arith.constant 0 : index
    %c0_9 = arith.constant 0 : index
    %9 = vector.load %arg5[%c0_7, %c0_8, %c0_9] : memref<1x1x512xf32, #tpu.memory_space<vmem>>, vector<1x1x512xf32>
    %10 = vector.shape_cast %9 : vector<1x1x512xf32> to vector<1x512xf32>
    %11 = vector.shape_cast %8 : vector<1x512xf32> to vector<1x1x512xf32>
    tpu.vector_store %arg5[%c0_7, %c0_8, %c0_9], %11 {strides = array<i32>} : memref<1x1x512xf32, #tpu.memory_space<vmem>>, vector<1x1x512xf32>,
    return
  }
  func.func @transform_0(%arg0: i32, %arg1: i32) -> (i32, i32, i32) {
    %c0_i32 = arith.constant 0 : i32
    %c0_i32_0 = arith.constant 0 : i32
    %c0_i32_1 = arith.constant 0 : i32
    return %arg0, %c0_i32, %c0_i32_0 : i32, i32, i32
  }
  func.func @transform_1(%arg0: i32, %arg1: i32) -> (i32, i32, i32) {
    %c0_i32 = arith.constant 0 : i32
    %c0_i32_0 = arith.constant 0 : i32
    return %arg0, %c0_i32, %arg1 : i32, i32, i32
  }
  func.func @transform_2(%arg0: i32, %arg1: i32) -> (i32, i32) {
    %c0_i32 = arith.constant 0 : i32
    %c0_i32_0 = arith.constant 0 : i32
    %c0_i32_1 = arith.constant 0 : i32
    return %c0_i32, %c0_i32_0 : i32, i32
  }
  func.func @transform_3(%arg0: i32, %arg1: i32) -> (i32, i32, i32) {
    %c0_i32 = arith.constant 0 : i32
    %c0_i32_0 = arith.constant 0 : i32
    return %arg0, %c0_i32, %arg1 : i32, i32, i32
  }
}

</mosaic_0001>

<llo_original>
// kernel: generator_forward.10
$region0: #{generator_forward.10}
  #allocation0 [shape = 'u32[]', space=smem, size = 0x4, offset = 0x4, fixed_abs, tag = 'smem constant byte address 0x4 - core index']
  #allocation1 [shape = 'u32[144,128]{1,0:T(1,128)}', space=vmem, size = 0x12000, scoped, tag = 'internal scratch']
  %s0 = inlined_call_operand.vmem [shape: f32[16,2,128], index: 0, kind: input, shape index: {}]
  %s1 = inlined_call_operand.vmem [shape: f32[1,128], index: 1, kind: input, shape index: {}]
  %s2 = inlined_call_operand.vmem [shape: f32[1,128], index: 2, kind: input, shape index: {}]
  %s3 = inlined_call_operand.vmem [shape: bf16[16,2,128], index: 3, kind: output, shape index: {}]
  %s4 = sld [smem:[#allocation0]]
  $region45: #{generator_forward.10} parent=0
    _
  %s6 = ssub.s32 1, %s4
  %s7 = scalar_select 0, %s6, %s4
  loop: start=0, step=1, limit=18
  $region2: #{generator_forward.10} parent=0 // loop_pre_header
    _
  $region3: #{generator_forward.10} parent=0 // loop_header
    %s9 = sphi 0, %s13
    %p10 = scmp.ge.s32.totalorder %s9, 18
    %s16 = sphi 0, %s28
    %s17 = sphi 0, %s24
    %s18 = sphi 0, %s16
    %s19 = sphi 0, %s17
    %s20 = sphi 0, %s18
    %s21 = sphi 0, %s19
    %s33 = sphi 0, %s35
    %s36 = sphi 0, %s33
    %s37 = sphi 0, %s36
    %s53 = sphi 0, %s37
    %s57 = sphi 0, %s57
    %s59 = sphi 0, %s57
    %s60 = sphi 0, %s59
    %s74 = sphi 0, %s60
    %s78 = sphi 0, %s78
    %s80 = sphi 0, %s78
    %s81 = sphi 0, %s80
    %s95 = sphi 0, %s81
    %s103 = sphi 0, %s105
    %s106 = sphi 0, %s103
    %s107 = sphi 0, %s106
    %s123 = sphi 0, %s107
  $region4: #{generator_forward.10} parent=0 // loop_header_branch
    %12 = sbr.rel (%p10) target = $region8
  $region5: #{generator_forward.10} parent=0 // loop_body
    %s14 = ssub.s32 %s9, 1
    %s15 = ssub.s32 %s9, 2
    %s22 = sadd.s32 1, %s17
    %p23 = scmp.ge.s32.totalorder %s22, 1
    %s24 = scalar_select %p23, 0, %s22
    %s25 = sadd.s32 1, %s16
    %s26 = scalar_select %p23, %s25, %s16
    %p27 = scmp.ge.s32.totalorder %s26, 16
    %s28 = scalar_select %p27, 0, %s26
    %s29 = ssub.s32 %s16, %s28
    %s30 = ssub.s32 %s17, %s24
    %s31 = sor.u32 %s29, %s30
    %p32 = scmp.eq.s32.totalorder %s31, 0
    %s34 = sadd.s32 %s33, 1
    %s35 = scalar_select %p32, %s33, %s34
    %p38 = pneg %p32
    %p39 = scmp.eq.s32.totalorder %s9, 15
    %p40 = por %p38, %p39
    %p41 = scmp.ne.s32.totalorder %s33, %s36
    %p42 = scmp.eq.s32.totalorder %s9, 0
    %p43 = por %p41, %p42
    %p44 = scmp.ne.s32.totalorder %s33, %s36
    %p45 = scmp.eq.s32.totalorder %s14, 15
    %p46 = por %p44, %p45
    %p47 = scmp.ne.s32.totalorder %s36, %s37
    %p48 = scmp.eq.s32.totalorder %s14, 0
    %p49 = por %p47, %p48
    %p50 = scmp.ne.s32.totalorder %s36, %s37
    %p51 = scmp.eq.s32.totalorder %s15, 15
    %p52 = por %p50, %p51
    %p54 = scmp.ne.s32.totalorder %s37, %s53
    %p55 = scmp.eq.s32.totalorder %s15, 0
    %p56 = por %p54, %p55
    %s58 = sadd.s32 %s57, 1
    %p61 = scmp.eq.s32.totalorder %s9, 15
    %p62 = scmp.ne.s32.totalorder %s57, %s59
    %p63 = scmp.eq.s32.totalorder %s9, 0
    %p64 = por %p62, %p63
    %p65 = scmp.ne.s32.totalorder %s57, %s59
    %p66 = scmp.eq.s32.totalorder %s14, 15
    %p67 = por %p65, %p66
    %p68 = scmp.ne.s32.totalorder %s59, %s60
    %p69 = scmp.eq.s32.totalorder %s14, 0
    %p70 = por %p68, %p69
    %p71 = scmp.ne.s32.totalorder %s59, %s60
    %p72 = scmp.eq.s32.totalorder %s15, 15
    %p73 = por %p71, %p72
    %p75 = scmp.ne.s32.totalorder %s60, %s74
    %p76 = scmp.eq.s32.totalorder %s15, 0
    %p77 = por %p75, %p76
    %s79 = sadd.s32 %s78, 1
    %p82 = scmp.eq.s32.totalorder %s9, 15
    %p83 = scmp.ne.s32.totalorder %s78, %s80
    %p84 = scmp.eq.s32.totalorder %s9, 0
    %p85 = por %p83, %p84
    %p86 = scmp.ne.s32.totalorder %s78, %s80
    %p87 = scmp.eq.s32.totalorder %s14, 15
    %p88 = por %p86, %p87
    %p89 = scmp.ne.s32.totalorder %s80, %s81
    %p90 = scmp.eq.s32.totalorder %s14, 0
    %p91 = por %p89, %p90
    %p92 = scmp.ne.s32.totalorder %s80, %s81
    %p93 = scmp.eq.s32.totalorder %s15, 15
    %p94 = por %p92, %p93
    %p96 = scmp.ne.s32.totalorder %s81, %s95
    %p97 = scmp.eq.s32.totalorder %s15, 0
    %p98 = por %p96, %p97
    %s99 = ssub.s32 %s16, %s28
    %s100 = ssub.s32 %s17, %s24
    %s101 = sor.u32 %s99, %s100
    %p102 = scmp.eq.s32.totalorder %s101, 0
    %s104 = sadd.s32 %s103, 1
    %s105 = scalar_select %p102, %s103, %s104
    %p108 = pneg %p102
    %p109 = scmp.eq.s32.totalorder %s9, 15
    %p110 = por %p108, %p109
    %p111 = scmp.ne.s32.totalorder %s103, %s106
    %p112 = scmp.eq.s32.totalorder %s9, 0
    %p113 = por %p111, %p112
    %p114 = scmp.ne.s32.totalorder %s103, %s106
    %p115 = scmp.eq.s32.totalorder %s14, 15
    %p116 = por %p114, %p115
    %p117 = scmp.ne.s32.totalorder %s106, %s107
    %p118 = scmp.eq.s32.totalorder %s14, 0
    %p119 = por %p117, %p118
    %p120 = scmp.ne.s32.totalorder %s106, %s107
    %p121 = scmp.eq.s32.totalorder %s15, 15
    %p122 = por %p120, %p121
    %p124 = scmp.ne.s32.totalorder %s107, %s123
    %p125 = scmp.eq.s32.totalorder %s15, 0
    %p126 = por %p124, %p125
    %p127 = scmp.le.s32.totalorder 1, %s9
    %p128 = scmp.lt.s32.totalorder %s9, 17
    %p129 = pnand %p127, %p128
    %p130 = pneg %p129
    // Predicated region
    $region9: #{generator_forward.10} parent=5 // pred_check
      _
    $region10: #{generator_forward.10} parent=5 // pred_check_branch
      %132 = sbr.rel (%p129) target = $region12
    $region11: #{generator_forward.10} parent=5 // pred_region
      %s133 = ssub.s32 %s9, 1
      // Predicated region
      $region13: #{generator_forward.10} parent=11 // pred_check
        %p134 = pneg %p70
      $region14: #{generator_forward.10} parent=11 // pred_check_branch
        %136 = sbr.rel (%p134) target = $region16
      $region15: #{generator_forward.10} parent=11 // pred_region
        _
      $region16: #{generator_forward.10} parent=11 // pred_fallthru
        _
      // Predicated region
      $region17: #{generator_forward.10} parent=11 // pred_check
        %p137 = pneg %p91
      $region18: #{generator_forward.10} parent=11 // pred_check_branch
        %139 = sbr.rel (%p137) target = $region20
      $region19: #{generator_forward.10} parent=11 // pred_region
        _
      $region20: #{generator_forward.10} parent=11 // pred_fallthru
        _
    $region12: #{generator_forward.10} parent=5 // pred_fallthru
      _
    %p140 = scmp.lt.s32.totalorder %s9, 16
    // Predicated region
    $region21: #{generator_forward.10} parent=5 // pred_check
      %p141 = pneg %p140
    $region22: #{generator_forward.10} parent=5 // pred_check_branch
      %143 = sbr.rel (%p141) target = $region24
    $region23: #{generator_forward.10} parent=5 // pred_region
      // Predicated region
      $region25: #{generator_forward.10} parent=23 // pred_check
        %p144 = pneg %p43
      $region26: #{generator_forward.10} parent=23 // pred_check_branch
        %146 = sbr.rel (%p144) target = $region28
      $region27: #{generator_forward.10} parent=23 // pred_region
        %p147 = scmp.lt.s32.totalorder %s16, 15
        %s148 = scalar_select %p147, %s16, 15
        %p149 = scmp.lt.s32.totalorder %s17, 0
        %s150 = scalar_select %p149, %s17, 0
        %s151 = sadd.s32 %s150, %s148
        %s152 = smul.addr %s151, 2
        %s153 = scalar_lea.vmem %s0, %s152
      $region28: #{generator_forward.10} parent=23 // pred_fallthru
        _
    $region24: #{generator_forward.10} parent=5 // pred_fallthru
      _
    %p154 = scmp.le.s32.totalorder 1, %s9
    %p155 = scmp.lt.s32.totalorder %s9, 17
    %p156 = pnand %p154, %p155
    %p157 = pneg %p156
    // Predicated region
    $region29: #{generator_forward.10} parent=5 // pred_check
      _
    $region30: #{generator_forward.10} parent=5 // pred_check_branch
      %159 = sbr.rel (%p156) target = $region32
    $region31: #{generator_forward.10} parent=5 // pred_region
      %s160 = ssub.s32 %s9, 1
      %p161 = scmp.lt.s32.totalorder %s18, 15
      %s162 = scalar_select %p161, %s18, 15
      %p163 = scmp.lt.s32.totalorder %s19, 0
      %s164 = scalar_select %p163, %s19, 0
      %s165 = sadd.s32 %s164, %s162
      %s166 = smul.addr %s165, 2
      %s167 = scalar_lea.vmem %s0, %s166
      %p168 = pneg %p49
      %p169 = pneg %p46
      %p170 = pneg %p70
      %p171 = pneg %p67
      %p172 = pneg %p91
      %p173 = pneg %p88
      %p174 = pneg %p119
      %p175 = pneg %p116
      %p176 = scmp.lt.s32.totalorder %s18, 15
      %s177 = scalar_select %p176, %s18, 15
      %p178 = scmp.lt.s32.totalorder %s19, 0
      %s179 = scalar_select %p178, %s19, 0
      %s180 = sadd.s32 %s179, %s177
      %s181 = scalar_lea.vmem %s3, %s180
      %p182 = scmp.lt.s32.totalorder %s18, 15
      %s183 = scalar_select %p182, %s18, 15
      %p184 = scmp.lt.s32.totalorder %s19, 0
      %s185 = scalar_select %p184, %s19, 0
      %s186 = sadd.s32 %s185, %s183
      %s187 = smul.addr %s186, 2
      %s188 = scalar_lea.vmem %s0, %s187
      %p189 = scmp.lt.s32.totalorder %s18, 15
      %s190 = scalar_select %p189, %s18, 15
      %p191 = scmp.lt.s32.totalorder %s19, 0
      %s192 = scalar_select %p191, %s19, 0
      %s193 = sadd.s32 %s192, %s190
      %s194 = scalar_lea.vmem %s3, %s193
      %v195 = vld [vmem:[%s188] sm:$0x3]
      %v196 = vld [vmem:[%s1] sm:$0x1]
      %v198 = vlaneseq
      %v199 = vshrl.u32 %v198, 7
      %v200 = vsub.s32 0, %v199
      %v201 = vrot.slane %v196, %v200
      %v203 = vsub.f32 %v195, %v201
      %v204 = vld [vmem:[%s2] sm:$0x1]
      %v206 = vlaneseq
      %v207 = vshrl.u32 %v206, 7
      %v208 = vsub.s32 0, %v207
      %v209 = vrot.slane %v204, %v208
      %v211 = vmul.f32 %v203, %v209
      %v212 = vmax.f32 %v211, 0.0
      %v213 = vpack.c.bf16 %v212, %v212
      %214 = vst [vmem:[%s194] sm:$0x1] %v213
      %p215 = scmp.lt.s32.totalorder %s18, 15
      %s216 = scalar_select %p215, %s18, 15
      %p217 = scmp.lt.s32.totalorder %s19, 0
      %s218 = scalar_select %p217, %s19, 0
      %s219 = sadd.s32 %s218, %s216
      %s220 = scalar_lea.vmem %s3, %s219
      // Predicated region
      $region33: #{generator_forward.10} parent=31 // pred_check
        %p221 = pneg %p116
      $region34: #{generator_forward.10} parent=31 // pred_check_branch
        %223 = sbr.rel (%p221) target = $region36
      $region35: #{generator_forward.10} parent=31 // pred_region
        _
      $region36: #{generator_forward.10} parent=31 // pred_fallthru
        _
    $region32: #{generator_forward.10} parent=5 // pred_fallthru
      _
    %p224 = scmp.le.s32.totalorder 2, %s9
    // Predicated region
    $region37: #{generator_forward.10} parent=5 // pred_check
      %p225 = pneg %p224
    $region38: #{generator_forward.10} parent=5 // pred_check_branch
      %227 = sbr.rel (%p225) target = $region40
    $region39: #{generator_forward.10} parent=5 // pred_region
      %s228 = ssub.s32 %s9, 2
      // Predicated region
      $region41: #{generator_forward.10} parent=39 // pred_check
        %p229 = pneg %p122
      $region42: #{generator_forward.10} parent=39 // pred_check_branch
        %231 = sbr.rel (%p229) target = $region44
      $region43: #{generator_forward.10} parent=39 // pred_region
        %p232 = scmp.lt.s32.totalorder %s20, 15
        %s233 = scalar_select %p232, %s20, 15
        %p234 = scmp.lt.s32.totalorder %s21, 0
        %s235 = scalar_select %p234, %s21, 0
        %s236 = sadd.s32 %s235, %s233
        %s237 = scalar_lea.vmem %s3, %s236
      $region44: #{generator_forward.10} parent=39 // pred_fallthru
        _
    $region40: #{generator_forward.10} parent=5 // pred_fallthru
      _
  $region6: #{generator_forward.10} parent=0 // loop_footer
    %s13 = sadd.s32 1, %s9
  $region7: #{generator_forward.10} parent=0 // loop_footer_branch
    %8 = sbr.rel target = $region3
  $region8: #{generator_forward.10} parent=0 // loop_exit
    _

// kernel: generator_forward.9
$region0: #{generator_forward.9}
  #allocation0 [shape = 'u32[]', space=smem, size = 0x4, offset = 0x4, fixed_abs, tag = 'smem constant byte address 0x4 - core index']
  #allocation1 [shape = 'u32[144,128]{1,0:T(1,128)}', space=vmem, size = 0x12000, scoped, tag = 'internal scratch']
  %s0 = inlined_call_operand.vmem [shape: bf16[16,2,128], index: 0, kind: input, shape index: {}]
  %s1 = inlined_call_operand.vmem [shape: bf16[16,128,128], index: 1, kind: input, shape index: {}]
  %s2 = inlined_call_operand.vmem [shape: f32[1,128], index: 2, kind: input, shape index: {}]
  %s3 = inlined_call_operand.vmem [shape: f32[16,2,128], index: 3, kind: output, shape index: {0}]
  %s4 = inlined_call_operand.vmem [shape: f32[1,128], index: 4, kind: output, shape index: {1}]
  %s5 = inlined_call_operand.vmem [shape: f32[1,128], index: 5, kind: output, shape index: {2}]
  %6 = xla_tuple %s3, %s4, %s5
  %s7 = sld [smem:[#allocation0]]
  $region65: #{generator_forward.9} parent=0
    _
  %s9 = ssub.s32 1, %s7
  %s10 = scalar_select 0, %s9, %s7
  loop: start=0, step=1, limit=18
  $region2: #{generator_forward.9} parent=0 // loop_pre_header
    _
  $region3: #{generator_forward.9} parent=0 // loop_header
    %s12 = sphi 0, %s16
    %p13 = scmp.ge.s32.totalorder %s12, 18
    %s19 = sphi 0, %s31
    %s20 = sphi 0, %s27
    %s21 = sphi 0, %s19
    %s22 = sphi 0, %s20
    %s23 = sphi 0, %s21
    %s24 = sphi 0, %s22
    %s36 = sphi 0, %s38
    %s39 = sphi 0, %s36
    %s40 = sphi 0, %s39
    %s56 = sphi 0, %s40
    %s62 = sphi 0, %s64
    %s65 = sphi 0, %s62
    %s66 = sphi 0, %s65
    %s82 = sphi 0, %s66
    %s86 = sphi 0, %s86
    %s88 = sphi 0, %s86
    %s89 = sphi 0, %s88
    %s103 = sphi 0, %s89
    %s111 = sphi 0, %s113
    %s114 = sphi 0, %s111
    %s115 = sphi 0, %s114
    %s131 = sphi 0, %s115
    %s135 = sphi 0, %s135
    %s137 = sphi 0, %s135
    %s138 = sphi 0, %s137
    %s152 = sphi 0, %s138
    %s156 = sphi 0, %s156
    %s158 = sphi 0, %s156
    %s159 = sphi 0, %s158
    %s173 = sphi 0, %s159
  $region4: #{generator_forward.9} parent=0 // loop_header_branch
    %15 = sbr.rel (%p13) target = $region8
  $region5: #{generator_forward.9} parent=0 // loop_body
    %s17 = ssub.s32 %s12, 1
    %s18 = ssub.s32 %s12, 2
    %s25 = sadd.s32 1, %s20
    %p26 = scmp.ge.s32.totalorder %s25, 1
    %s27 = scalar_select %p26, 0, %s25
    %s28 = sadd.s32 1, %s19
    %s29 = scalar_select %p26, %s28, %s19
    %p30 = scmp.ge.s32.totalorder %s29, 16
    %s31 = scalar_select %p30, 0, %s29
    %s32 = ssub.s32 %s19, %s31
    %s33 = ssub.s32 %s20, %s27
    %s34 = sor.u32 %s32, %s33
    %p35 = scmp.eq.s32.totalorder %s34, 0
    %s37 = sadd.s32 %s36, 1
    %s38 = scalar_select %p35, %s36, %s37
    %p41 = pneg %p35
    %p42 = scmp.eq.s32.totalorder %s12, 15
    %p43 = por %p41, %p42
    %p44 = scmp.ne.s32.totalorder %s36, %s39
    %p45 = scmp.eq.s32.totalorder %s12, 0
    %p46 = por %p44, %p45
    %p47 = scmp.ne.s32.totalorder %s36, %s39
    %p48 = scmp.eq.s32.totalorder %s17, 15
    %p49 = por %p47, %p48
    %p50 = scmp.ne.s32.totalorder %s39, %s40
    %p51 = scmp.eq.s32.totalorder %s17, 0
    %p52 = por %p50, %p51
    %p53 = scmp.ne.s32.totalorder %s39, %s40
    %p54 = scmp.eq.s32.totalorder %s18, 15
    %p55 = por %p53, %p54
    %p57 = scmp.ne.s32.totalorder %s40, %s56
    %p58 = scmp.eq.s32.totalorder %s18, 0
    %p59 = por %p57, %p58
    %s60 = ssub.s32 %s19, %s31
    %p61 = scmp.eq.s32.totalorder %s60, 0
    %s63 = sadd.s32 %s62, 1
    %s64 = scalar_select %p61, %s62, %s63
    %p67 = pneg %p61
    %p68 = scmp.eq.s32.totalorder %s12, 15
    %p69 = por %p67, %p68
    %p70 = scmp.ne.s32.totalorder %s62, %s65
    %p71 = scmp.eq.s32.totalorder %s12, 0
    %p72 = por %p70, %p71
    %p73 = scmp.ne.s32.totalorder %s62, %s65
    %p74 = scmp.eq.s32.totalorder %s17, 15
    %p75 = por %p73, %p74
    %p76 = scmp.ne.s32.totalorder %s65, %s66
    %p77 = scmp.eq.s32.totalorder %s17, 0
    %p78 = por %p76, %p77
    %p79 = scmp.ne.s32.totalorder %s65, %s66
    %p80 = scmp.eq.s32.totalorder %s18, 15
    %p81 = por %p79, %p80
    %p83 = scmp.ne.s32.totalorder %s66, %s82
    %p84 = scmp.eq.s32.totalorder %s18, 0
    %p85 = por %p83, %p84
    %s87 = sadd.s32 %s86, 1
    %p90 = scmp.eq.s32.totalorder %s12, 15
    %p91 = scmp.ne.s32.totalorder %s86, %s88
    %p92 = scmp.eq.s32.totalorder %s12, 0
    %p93 = por %p91, %p92
    %p94 = scmp.ne.s32.totalorder %s86, %s88
    %p95 = scmp.eq.s32.totalorder %s17, 15
    %p96 = por %p94, %p95
    %p97 = scmp.ne.s32.totalorder %s88, %s89
    %p98 = scmp.eq.s32.totalorder %s17, 0
    %p99 = por %p97, %p98
    %p100 = scmp.ne.s32.totalorder %s88, %s89
    %p101 = scmp.eq.s32.totalorder %s18, 15
    %p102 = por %p100, %p101
    %p104 = scmp.ne.s32.totalorder %s89, %s103
    %p105 = scmp.eq.s32.totalorder %s18, 0
    %p106 = por %p104, %p105
    %s107 = ssub.s32 %s19, %s31
    %s108 = ssub.s32 %s20, %s27
    %s109 = sor.u32 %s107, %s108
    %p110 = scmp.eq.s32.totalorder %s109, 0
    %s112 = sadd.s32 %s111, 1
    %s113 = scalar_select %p110, %s111, %s112
    %p116 = pneg %p110
    %p117 = scmp.eq.s32.totalorder %s12, 15
    %p118 = por %p116, %p117
    %p119 = scmp.ne.s32.totalorder %s111, %s114
    %p120 = scmp.eq.s32.totalorder %s12, 0
    %p121 = por %p119, %p120
    %p122 = scmp.ne.s32.totalorder %s111, %s114
    %p123 = scmp.eq.s32.totalorder %s17, 15
    %p124 = por %p122, %p123
    %p125 = scmp.ne.s32.totalorder %s114, %s115
    %p126 = scmp.eq.s32.totalorder %s17, 0
    %p127 = por %p125, %p126
    %p128 = scmp.ne.s32.totalorder %s114, %s115
    %p129 = scmp.eq.s32.totalorder %s18, 15
    %p130 = por %p128, %p129
    %p132 = scmp.ne.s32.totalorder %s115, %s131
    %p133 = scmp.eq.s32.totalorder %s18, 0
    %p134 = por %p132, %p133
    %s136 = sadd.s32 %s135, 1
    %p139 = scmp.eq.s32.totalorder %s12, 15
    %p140 = scmp.ne.s32.totalorder %s135, %s137
    %p141 = scmp.eq.s32.totalorder %s12, 0
    %p142 = por %p140, %p141
    %p143 = scmp.ne.s32.totalorder %s135, %s137
    %p144 = scmp.eq.s32.totalorder %s17, 15
    %p145 = por %p143, %p144
    %p146 = scmp.ne.s32.totalorder %s137, %s138
    %p147 = scmp.eq.s32.totalorder %s17, 0
    %p148 = por %p146, %p147
    %p149 = scmp.ne.s32.totalorder %s137, %s138
    %p150 = scmp.eq.s32.totalorder %s18, 15
    %p151 = por %p149, %p150
    %p153 = scmp.ne.s32.totalorder %s138, %s152
    %p154 = scmp.eq.s32.totalorder %s18, 0
    %p155 = por %p153, %p154
    %s157 = sadd.s32 %s156, 1
    %p160 = scmp.eq.s32.totalorder %s12, 15
    %p161 = scmp.ne.s32.totalorder %s156, %s158
    %p162 = scmp.eq.s32.totalorder %s12, 0
    %p163 = por %p161, %p162
    %p164 = scmp.ne.s32.totalorder %s156, %s158
    %p165 = scmp.eq.s32.totalorder %s17, 15
    %p166 = por %p164, %p165
    %p167 = scmp.ne.s32.totalorder %s158, %s159
    %p168 = scmp.eq.s32.totalorder %s17, 0
    %p169 = por %p167, %p168
    %p170 = scmp.ne.s32.totalorder %s158, %s159
    %p171 = scmp.eq.s32.totalorder %s18, 15
    %p172 = por %p170, %p171
    %p174 = scmp.ne.s32.totalorder %s159, %s173
    %p175 = scmp.eq.s32.totalorder %s18, 0
    %p176 = por %p174, %p175
    %p177 = scmp.le.s32.totalorder 1, %s12
    %p178 = scmp.lt.s32.totalorder %s12, 17
    %p179 = pnand %p177, %p178
    %p180 = pneg %p179
    // Predicated region
    $region9: #{generator_forward.9} parent=5 // pred_check
      _
    $region10: #{generator_forward.9} parent=5 // pred_check_branch
      %182 = sbr.rel (%p179) target = $region12
    $region11: #{generator_forward.9} parent=5 // pred_region
      %s183 = ssub.s32 %s12, 1
      // Predicated region
      $region13: #{generator_forward.9} parent=11 // pred_check
        %p184 = pneg %p99
      $region14: #{generator_forward.9} parent=11 // pred_check_branch
        %186 = sbr.rel (%p184) target = $region16
      $region15: #{generator_forward.9} parent=11 // pred_region
        _
      $region16: #{generator_forward.9} parent=11 // pred_fallthru
        _
    $region12: #{generator_forward.9} parent=5 // pred_fallthru
      _
    %p187 = scmp.lt.s32.totalorder %s12, 16
    // Predicated region
    $region17: #{generator_forward.9} parent=5 // pred_check
      %p188 = pneg %p187
    $region18: #{generator_forward.9} parent=5 // pred_check_branch
      %190 = sbr.rel (%p188) target = $region20
    $region19: #{generator_forward.9} parent=5 // pred_region
      // Predicated region
      $region21: #{generator_forward.9} parent=19 // pred_check
        %p191 = pneg %p46
      $region22: #{generator_forward.9} parent=19 // pred_check_branch
        %193 = sbr.rel (%p191) target = $region24
      $region23: #{generator_forward.9} parent=19 // pred_region
        %p194 = scmp.lt.s32.totalorder %s19, 15
        %s195 = scalar_select %p194, %s19, 15
        %p196 = scmp.lt.s32.totalorder %s20, 0
        %s197 = scalar_select %p196, %s20, 0
        %s198 = sadd.s32 %s197, %s195
        %s199 = scalar_lea.vmem %s0, %s198
      $region24: #{generator_forward.9} parent=19 // pred_fallthru
        _
      // Predicated region
      $region25: #{generator_forward.9} parent=19 // pred_check
        %p200 = pneg %p72
      $region26: #{generator_forward.9} parent=19 // pred_check_branch
        %202 = sbr.rel (%p200) target = $region28
      $region27: #{generator_forward.9} parent=19 // pred_region
        %p203 = scmp.lt.s32.totalorder %s19, 15
        %s204 = scalar_select %p203, %s19, 15
        %s205 = smul.addr %s204, 16
        %s206 = smul.addr %s205, 4
        %s207 = scalar_lea.vmem %s1, %s206
      $region28: #{generator_forward.9} parent=19 // pred_fallthru
        _
    $region20: #{generator_forward.9} parent=5 // pred_fallthru
      _
    %p208 = scmp.le.s32.totalorder 1, %s12
    %p209 = scmp.lt.s32.totalorder %s12, 17
    %p210 = pnand %p208, %p209
    %p211 = pneg %p210
    // Predicated region
    $region29: #{generator_forward.9} parent=5 // pred_check
      _
    $region30: #{generator_forward.9} parent=5 // pred_check_branch
      %213 = sbr.rel (%p210) target = $region32
    $region31: #{generator_forward.9} parent=5 // pred_region
      %s214 = ssub.s32 %s12, 1
      %p215 = scmp.lt.s32.totalorder %s21, 15
      %s216 = scalar_select %p215, %s21, 15
      %p217 = scmp.lt.s32.totalorder %s22, 0
      %s218 = scalar_select %p217, %s22, 0
      %s219 = sadd.s32 %s218, %s216
      %s220 = scalar_lea.vmem %s0, %s219
      %p221 = pneg %p52
      %p222 = pneg %p49
      %p223 = scmp.lt.s32.totalorder %s21, 15
      %s224 = scalar_select %p223, %s21, 15
      %s225 = smul.addr %s224, 16
      %s226 = smul.addr %s225, 4
      %s227 = scalar_lea.vmem %s1, %s226
      %p228 = pneg %p78
      %p229 = pneg %p75
      %p230 = pneg %p99
      %p231 = pneg %p96
      %p232 = pneg %p127
      %p233 = pneg %p124
      %p234 = scmp.lt.s32.totalorder %s21, 15
      %s235 = scalar_select %p234, %s21, 15
      %p236 = scmp.lt.s32.totalorder %s22, 0
      %s237 = scalar_select %p236, %s22, 0
      %s238 = sadd.s32 %s237, %s235
      %s239 = smul.addr %s238, 2
      %s240 = scalar_lea.vmem %s3, %s239
      %p241 = pneg %p148
      %p242 = pneg %p145
      %p243 = pneg %p169
      %p244 = pneg %p166
      %p245 = scmp.lt.s32.totalorder %s21, 15
      %s246 = scalar_select %p245, %s21, 15
      %p247 = scmp.lt.s32.totalorder %s22, 0
      %s248 = scalar_select %p247, %s22, 0
      %s249 = sadd.s32 %s248, %s246
      %s250 = scalar_lea.vmem %s0, %s249
      %p251 = scmp.lt.s32.totalorder %s21, 15
      %s252 = scalar_select %p251, %s21, 15
      %s253 = smul.addr %s252, 16
      %s254 = smul.addr %s253, 4
      %s255 = scalar_lea.vmem %s1, %s254
      %p256 = scmp.lt.s32.totalorder %s21, 15
      %s257 = scalar_select %p256, %s21, 15
      %p258 = scmp.lt.s32.totalorder %s22, 0
      %s259 = scalar_select %p258, %s22, 0
      %s260 = sadd.s32 %s259, %s257
      %s261 = smul.addr %s260, 2
      %s262 = scalar_lea.vmem %s3, %s261
      %p264 = scmp.eq.s32.totalorder %s21, 0
      %p265 = scmp.eq.s32.totalorder %s22, 0
      %p266 = pnand %p264, %p265
      %p267 = pneg %p266
      // Predicated region
      $region33: #{generator_forward.9} parent=31 // pred_check
        _
      $region34: #{generator_forward.9} parent=31 // pred_check_branch
        %269 = sbr.rel (%p266) target = $region36
      $region35: #{generator_forward.9} parent=31 // pred_region
        %270 = vst [vmem:[%s4] sm:$0x1] 0.0
        %271 = vst [vmem:[%s5] sm:$0x1] 0.0
      $region36: #{generator_forward.9} parent=31 // pred_fallthru
        _
      %v272 = vld [vmem:[%s250] sm:$0x1]
      %v273 = vld [vmem:[%s255] sm:$0xf]
      %v274 = vld [vmem:[%s255 + $0x4] sm:$0xf]
      %v275 = vld [vmem:[%s255 + $0x8] sm:$0xf]
      %v276 = vld [vmem:[%s255 + $0xc] sm:$0xf]
      %v277 = vld [vmem:[%s255 + $0x10] sm:$0xf]
      %v278 = vld [vmem:[%s255 + $0x14] sm:$0xf]
      %v279 = vld [vmem:[%s255 + $0x18] sm:$0xf]
      %v280 = vld [vmem:[%s255 + $0x1c] sm:$0xf]
      %v281 = vld [vmem:[%s255 + $0x20] sm:$0xf]
      %v282 = vld [vmem:[%s255 + $0x24] sm:$0xf]
      %v283 = vld [vmem:[%s255 + $0x28] sm:$0xf]
      %v284 = vld [vmem:[%s255 + $0x2c] sm:$0xf]
      %v285 = vld [vmem:[%s255 + $0x30] sm:$0xf]
      %v286 = vld [vmem:[%s255 + $0x34] sm:$0xf]
      %v287 = vld [vmem:[%s255 + $0x38] sm:$0xf]
      %v288 = vld [vmem:[%s255 + $0x3c] sm:$0xf]
      %v289 = vld [vmem:[%s2] sm:$0x1]
      %v291 = vlaneseq
      %v292 = vshrl.u32 %v291, 7
      %v293 = vsub.s32 0, %v292
      %v294 = vrot.slane %v289, %v293
      %v312 = vunpack.c.l.b16 %v273
      %v313 = vunpack.c.l.b16 %v274
      %v314 = vunpack.c.l.b16 %v275
      %v315 = vunpack.c.l.b16 %v276
      %v316 = vunpack.c.l.b16 %v277
      %v317 = vunpack.c.l.b16 %v278
      %v318 = vunpack.c.l.b16 %v279
      %v319 = vunpack.c.l.b16 %v280
      %v320 = vunpack.c.l.b16 %v281
      %v321 = vunpack.c.l.b16 %v282
      %v322 = vunpack.c.l.b16 %v283
      %v323 = vunpack.c.l.b16 %v284
      %v324 = vunpack.c.l.b16 %v285
      %v325 = vunpack.c.l.b16 %v286
      %v326 = vunpack.c.l.b16 %v287
      %v327 = vunpack.c.l.b16 %v288
      %v328 = vpack.c.b16 %v313, %v312
      %v329 = vpack.c.b16 %v315, %v314
      %v330 = vpack.c.b16 %v317, %v316
      %v331 = vpack.c.b16 %v319, %v318
      %v332 = vpack.c.b16 %v321, %v320
      %v333 = vpack.c.b16 %v323, %v322
      %v334 = vpack.c.b16 %v325, %v324
      %v335 = vpack.c.b16 %v327, %v326
      %344 = vmatprep.subr.bf16.mxu0 0
      %345 = vmatpush1.bf16.msra.mxu0 %v328
      %346 = vmatprep.subr.bf16.mxu0 0
      %347 = vmatpush1.bf16.msra.mxu0 %v329
      %348 = vmatprep.subr.bf16.mxu0 0
      %349 = vmatpush1.bf16.msra.mxu0 %v330
      %350 = vmatprep.subr.bf16.mxu0 0
      %351 = vmatpush1.bf16.msra.mxu0 %v331
      %352 = vmatprep.subr.bf16.mxu0 0
      %353 = vmatpush1.bf16.msra.mxu0 %v332
      %354 = vmatprep.subr.bf16.mxu0 0
      %355 = vmatpush1.bf16.msra.mxu0 %v333
      %356 = vmatprep.subr.bf16.mxu0 0
      %357 = vmatpush1.bf16.msra.mxu0 %v334
      %358 = vmatprep.subr.bf16.mxu0 0
      %359 = vmatpush1.bf16.msra.mxu0 %v335
      %360 = vmatprep.subr.bf16.mxu0 0
      %361 = vmatpush1.bf16.msra.mxu0 0
      %362 = vmatprep.subr.bf16.mxu0 0
      %363 = vmatpush1.bf16.msra.mxu0 0
      %364 = vmatprep.subr.bf16.mxu0 0
      %365 = vmatpush1.bf16.msra.mxu0 0
      %366 = vmatprep.subr.bf16.mxu0 0
      %367 = vmatpush1.bf16.msra.mxu0 0
      %368 = vmatprep.subr.bf16.mxu0 0
      %369 = vmatpush1.bf16.msra.mxu0 0
      %370 = vmatprep.subr.bf16.mxu0 0
      %371 = vmatpush1.bf16.msra.mxu0 0
      %372 = vmatprep.subr.bf16.mxu0 0
      %373 = vmatpush1.bf16.msra.mxu0 0
      %374 = vmatprep.subr.bf16.mxu0 0
      %375 = vmatpush1.bf16.msra.mxu0 0
      %376 = vmatprep.mubr.bf16.mxu0 0
      %377 = vmatmul.mubr.bf16.gmra.mrb[0].mxu0 %v272
      %v378 = vpop.f32.mrb[0].mxu0
      %v379 = vadd.f32 %v294, %v378
      %v380 = vpop.f32.mrb[0].mxu0
      %v381 = vpop.f32.mrb[0].mxu0
      %v382 = vpop.f32.mrb[0].mxu0
      %383 = vdwg.mxu0
      %384 = vst [vmem:[%s262] sm:$0x3] %v379
      %v385 = vld [vmem:[%s4] sm:$0x1]
      %vm386 = vcmask 1041408
      %v387 = vsel %vm386, %v379, 0.0
      %v388 = vrot.slane %v387, 4
      %v389 = vadd.f32 %v387, %v388
      %v390 = vrot.slane %v389, 2
      %v391 = vadd.f32 %v389, %v390
      %v392 = vrot.slane %v391, 1
      %v393 = vadd.f32 %v391, %v392
      %v394 = vadd.f32 %v385, %v393
      %395 = vst [vmem:[%s4] sm:$0x1] %v394
      %v396 = vld [vmem:[%s5] sm:$0x1]
      %v397 = vmul.f32 %v379, %v379
      %v398 = vsel %vm386, %v397, 0.0
      %v399 = vrot.slane %v398, 4
      %v400 = vadd.f32 %v398, %v399
      %v401 = vrot.slane %v400, 2
      %v402 = vadd.f32 %v400, %v401
      %v403 = vrot.slane %v402, 1
      %v404 = vadd.f32 %v402, %v403
      %v405 = vadd.f32 %v396, %v404
      %406 = vst [vmem:[%s5] sm:$0x1] %v405
      %p407 = scmp.lt.s32.totalorder %s21, 15
      %s408 = scalar_select %p407, %s21, 15
      %p409 = scmp.lt.s32.totalorder %s22, 0
      %s410 = scalar_select %p409, %s22, 0
      %s411 = sadd.s32 %s410, %s408
      %s412 = smul.addr %s411, 2
      %s413 = scalar_lea.vmem %s3, %s412
      // Predicated region
      $region37: #{generator_forward.9} parent=31 // pred_check
        %p414 = pneg %p124
      $region38: #{generator_forward.9} parent=31 // pred_check_branch
        %416 = sbr.rel (%p414) target = $region40
      $region39: #{generator_forward.9} parent=31 // pred_region
        _
      $region40: #{generator_forward.9} parent=31 // pred_fallthru
        _
      // Predicated region
      $region41: #{generator_forward.9} parent=31 // pred_check
        %p417 = pneg %p145
      $region42: #{generator_forward.9} parent=31 // pred_check_branch
        %419 = sbr.rel (%p417) target = $region44
      $region43: #{generator_forward.9} parent=31 // pred_region
        _
      $region44: #{generator_forward.9} parent=31 // pred_fallthru
        _
      // Predicated region
      $region45: #{generator_forward.9} parent=31 // pred_check
        %p420 = pneg %p166
      $region46: #{generator_forward.9} parent=31 // pred_check_branch
        %422 = sbr.rel (%p420) target = $region48
      $region47: #{generator_forward.9} parent=31 // pred_region
        _
      $region48: #{generator_forward.9} parent=31 // pred_fallthru
        _
      // Predicated region
      $region49: #{generator_forward.9} parent=31 // pred_check
        %p423 = pneg %p145
      $region50: #{generator_forward.9} parent=31 // pred_check_branch
        %425 = sbr.rel (%p423) target = $region52
      $region51: #{generator_forward.9} parent=31 // pred_region
        _
      $region52: #{generator_forward.9} parent=31 // pred_fallthru
        _
      // Predicated region
      $region53: #{generator_forward.9} parent=31 // pred_check
        %p426 = pneg %p166
      $region54: #{generator_forward.9} parent=31 // pred_check_branch
        %428 = sbr.rel (%p426) target = $region56
      $region55: #{generator_forward.9} parent=31 // pred_region
        _
      $region56: #{generator_forward.9} parent=31 // pred_fallthru
        _
    $region32: #{generator_forward.9} parent=5 // pred_fallthru
      _
    %p429 = scmp.le.s32.totalorder 2, %s12
    // Predicated region
    $region57: #{generator_forward.9} parent=5 // pred_check
      %p430 = pneg %p429
    $region58: #{generator_forward.9} parent=5 // pred_check_branch
      %432 = sbr.rel (%p430) target = $region60
    $region59: #{generator_forward.9} parent=5 // pred_region
      %s433 = ssub.s32 %s12, 2
      // Predicated region
      $region61: #{generator_forward.9} parent=59 // pred_check
        %p434 = pneg %p130
      $region62: #{generator_forward.9} parent=59 // pred_check_branch
        %436 = sbr.rel (%p434) target = $region64
      $region63: #{generator_forward.9} parent=59 // pred_region
        %p437 = scmp.lt.s32.totalorder %s23, 15
        %s438 = scalar_select %p437, %s23, 15
        %p439 = scmp.lt.s32.totalorder %s24, 0
        %s440 = scalar_select %p439, %s24, 0
        %s441 = sadd.s32 %s440, %s438
        %s442 = smul.addr %s441, 2
        %s443 = scalar_lea.vmem %s3, %s442
      $region64: #{generator_forward.9} parent=59 // pred_fallthru
        _
    $region60: #{generator_forward.9} parent=5 // pred_fallthru
      _
  $region6: #{generator_forward.9} parent=0 // loop_footer
    %s16 = sadd.s32 1, %s12
  $region7: #{generator_forward.9} parent=0 // loop_footer_branch
    %11 = sbr.rel target = $region3
  $region8: #{generator_forward.9} parent=0 // loop_exit
    _

// kernel: generator_forward.12
$region0: #{generator_forward.12}
  #allocation0 [shape = 'u32[]', space=smem, size = 0x4, offset = 0x4, fixed_abs, tag = 'smem constant byte address 0x4 - core index']
  #allocation1 [shape = 'u32[144,128]{1,0:T(1,128)}', space=vmem, size = 0x12000, scoped, tag = 'internal scratch']
  %s0 = inlined_call_operand.vmem [shape: f32[4,32,64], index: 0, kind: input, shape index: {}]
  %s1 = inlined_call_operand.vmem [shape: f32[1,64], index: 1, kind: input, shape index: {}]
  %s2 = inlined_call_operand.vmem [shape: f32[1,64], index: 2, kind: input, shape index: {}]
  %s3 = inlined_call_operand.vmem [shape: bf16[4,32,64], index: 3, kind: output, shape index: {}]
  %s4 = sld [smem:[#allocation0]]
  $region45: #{generator_forward.12} parent=0
    _
  %s6 = ssub.s32 1, %s4
  %s7 = scalar_select 0, %s6, %s4
  loop: start=0, step=1, limit=6
  $region2: #{generator_forward.12} parent=0 // loop_pre_header
    _
  $region3: #{generator_forward.12} parent=0 // loop_header
    %s9 = sphi 0, %s13
    %p10 = scmp.ge.s32.totalorder %s9, 6
    %s16 = sphi 0, %s28
    %s17 = sphi 0, %s24
    %s18 = sphi 0, %s16
    %s19 = sphi 0, %s17
    %s20 = sphi 0, %s18
    %s21 = sphi 0, %s19
    %s33 = sphi 0, %s35
    %s36 = sphi 0, %s33
    %s37 = sphi 0, %s36
    %s53 = sphi 0, %s37
    %s57 = sphi 0, %s57
    %s59 = sphi 0, %s57
    %s60 = sphi 0, %s59
    %s74 = sphi 0, %s60
    %s78 = sphi 0, %s78
    %s80 = sphi 0, %s78
    %s81 = sphi 0, %s80
    %s95 = sphi 0, %s81
    %s103 = sphi 0, %s105
    %s106 = sphi 0, %s103
    %s107 = sphi 0, %s106
    %s123 = sphi 0, %s107
  $region4: #{generator_forward.12} parent=0 // loop_header_branch
    %12 = sbr.rel (%p10) target = $region8
  $region5: #{generator_forward.12} parent=0 // loop_body
    %s14 = ssub.s32 %s9, 1
    %s15 = ssub.s32 %s9, 2
    %s22 = sadd.s32 1, %s17
    %p23 = scmp.ge.s32.totalorder %s22, 1
    %s24 = scalar_select %p23, 0, %s22
    %s25 = sadd.s32 1, %s16
    %s26 = scalar_select %p23, %s25, %s16
    %p27 = scmp.ge.s32.totalorder %s26, 4
    %s28 = scalar_select %p27, 0, %s26
    %s29 = ssub.s32 %s16, %s28
    %s30 = ssub.s32 %s17, %s24
    %s31 = sor.u32 %s29, %s30
    %p32 = scmp.eq.s32.totalorder %s31, 0
    %s34 = sadd.s32 %s33, 1
    %s35 = scalar_select %p32, %s33, %s34
    %p38 = pneg %p32
    %p39 = scmp.eq.s32.totalorder %s9, 3
    %p40 = por %p38, %p39
    %p41 = scmp.ne.s32.totalorder %s33, %s36
    %p42 = scmp.eq.s32.totalorder %s9, 0
    %p43 = por %p41, %p42
    %p44 = scmp.ne.s32.totalorder %s33, %s36
    %p45 = scmp.eq.s32.totalorder %s14, 3
    %p46 = por %p44, %p45
    %p47 = scmp.ne.s32.totalorder %s36, %s37
    %p48 = scmp.eq.s32.totalorder %s14, 0
    %p49 = por %p47, %p48
    %p50 = scmp.ne.s32.totalorder %s36, %s37
    %p51 = scmp.eq.s32.totalorder %s15, 3
    %p52 = por %p50, %p51
    %p54 = scmp.ne.s32.totalorder %s37, %s53
    %p55 = scmp.eq.s32.totalorder %s15, 0
    %p56 = por %p54, %p55
    %s58 = sadd.s32 %s57, 1
    %p61 = scmp.eq.s32.totalorder %s9, 3
    %p62 = scmp.ne.s32.totalorder %s57, %s59
    %p63 = scmp.eq.s32.totalorder %s9, 0
    %p64 = por %p62, %p63
    %p65 = scmp.ne.s32.totalorder %s57, %s59
    %p66 = scmp.eq.s32.totalorder %s14, 3
    %p67 = por %p65, %p66
    %p68 = scmp.ne.s32.totalorder %s59, %s60
    %p69 = scmp.eq.s32.totalorder %s14, 0
    %p70 = por %p68, %p69
    %p71 = scmp.ne.s32.totalorder %s59, %s60
    %p72 = scmp.eq.s32.totalorder %s15, 3
    %p73 = por %p71, %p72
    %p75 = scmp.ne.s32.totalorder %s60, %s74
    %p76 = scmp.eq.s32.totalorder %s15, 0
    %p77 = por %p75, %p76
    %s79 = sadd.s32 %s78, 1
    %p82 = scmp.eq.s32.totalorder %s9, 3
    %p83 = scmp.ne.s32.totalorder %s78, %s80
    %p84 = scmp.eq.s32.totalorder %s9, 0
    %p85 = por %p83, %p84
    %p86 = scmp.ne.s32.totalorder %s78, %s80
    %p87 = scmp.eq.s32.totalorder %s14, 3
    %p88 = por %p86, %p87
    %p89 = scmp.ne.s32.totalorder %s80, %s81
    %p90 = scmp.eq.s32.totalorder %s14, 0
    %p91 = por %p89, %p90
    %p92 = scmp.ne.s32.totalorder %s80, %s81
    %p93 = scmp.eq.s32.totalorder %s15, 3
    %p94 = por %p92, %p93
    %p96 = scmp.ne.s32.totalorder %s81, %s95
    %p97 = scmp.eq.s32.totalorder %s15, 0
    %p98 = por %p96, %p97
    %s99 = ssub.s32 %s16, %s28
    %s100 = ssub.s32 %s17, %s24
    %s101 = sor.u32 %s99, %s100
    %p102 = scmp.eq.s32.totalorder %s101, 0
    %s104 = sadd.s32 %s103, 1
    %s105 = scalar_select %p102, %s103, %s104
    %p108 = pneg %p102
    %p109 = scmp.eq.s32.totalorder %s9, 3
    %p110 = por %p108, %p109
    %p111 = scmp.ne.s32.totalorder %s103, %s106
    %p112 = scmp.eq.s32.totalorder %s9, 0
    %p113 = por %p111, %p112
    %p114 = scmp.ne.s32.totalorder %s103, %s106
    %p115 = scmp.eq.s32.totalorder %s14, 3
    %p116 = por %p114, %p115
    %p117 = scmp.ne.s32.totalorder %s106, %s107
    %p118 = scmp.eq.s32.totalorder %s14, 0
    %p119 = por %p117, %p118
    %p120 = scmp.ne.s32.totalorder %s106, %s107
    %p121 = scmp.eq.s32.totalorder %s15, 3
    %p122 = por %p120, %p121
    %p124 = scmp.ne.s32.totalorder %s107, %s123
    %p125 = scmp.eq.s32.totalorder %s15, 0
    %p126 = por %p124, %p125
    %p127 = scmp.le.s32.totalorder 1, %s9
    %p128 = scmp.lt.s32.totalorder %s9, 5
    %p129 = pnand %p127, %p128
    %p130 = pneg %p129
    // Predicated region
    $region9: #{generator_forward.12} parent=5 // pred_check
      _
    $region10: #{generator_forward.12} parent=5 // pred_check_branch
      %132 = sbr.rel (%p129) target = $region12
    $region11: #{generator_forward.12} parent=5 // pred_region
      %s133 = ssub.s32 %s9, 1
      // Predicated region
      $region13: #{generator_forward.12} parent=11 // pred_check
        %p134 = pneg %p70
      $region14: #{generator_forward.12} parent=11 // pred_check_branch
        %136 = sbr.rel (%p134) target = $region16
      $region15: #{generator_forward.12} parent=11 // pred_region
        _
      $region16: #{generator_forward.12} parent=11 // pred_fallthru
        _
      // Predicated region
      $region17: #{generator_forward.12} parent=11 // pred_check
        %p137 = pneg %p91
      $region18: #{generator_forward.12} parent=11 // pred_check_branch
        %139 = sbr.rel (%p137) target = $region20
      $region19: #{generator_forward.12} parent=11 // pred_region
        _
      $region20: #{generator_forward.12} parent=11 // pred_fallthru
        _
    $region12: #{generator_forward.12} parent=5 // pred_fallthru
      _
    %p140 = scmp.lt.s32.totalorder %s9, 4
    // Predicated region
    $region21: #{generator_forward.12} parent=5 // pred_check
      %p141 = pneg %p140
    $region22: #{generator_forward.12} parent=5 // pred_check_branch
      %143 = sbr.rel (%p141) target = $region24
    $region23: #{generator_forward.12} parent=5 // pred_region
      // Predicated region
      $region25: #{generator_forward.12} parent=23 // pred_check
        %p144 = pneg %p43
      $region26: #{generator_forward.12} parent=23 // pred_check_branch
        %146 = sbr.rel (%p144) target = $region28
      $region27: #{generator_forward.12} parent=23 // pred_region
        %s147 = smul.u32 4, %s17
        %p148 = scmp.lt.s32.totalorder %s16, 3
        %s149 = scalar_select %p148, %s16, 3
        %p150 = scmp.lt.s32.totalorder %s147, 3
        %s151 = scalar_select %p150, %s147, 3
        %s152 = smul.addr %s149, 4
        %s153 = sadd.s32 %s151, %s152
        %s154 = smul.addr %s153, 8
        %s155 = scalar_lea.vmem %s0, %s154
        %s156 = smul.u32 4, %s17
      $region28: #{generator_forward.12} parent=23 // pred_fallthru
        _
    $region24: #{generator_forward.12} parent=5 // pred_fallthru
      _
    %p157 = scmp.le.s32.totalorder 1, %s9
    %p158 = scmp.lt.s32.totalorder %s9, 5
    %p159 = pnand %p157, %p158
    %p160 = pneg %p159
    // Predicated region
    $region29: #{generator_forward.12} parent=5 // pred_check
      _
    $region30: #{generator_forward.12} parent=5 // pred_check_branch
      %162 = sbr.rel (%p159) target = $region32
    $region31: #{generator_forward.12} parent=5 // pred_region
      %s163 = ssub.s32 %s9, 1
      %s164 = smul.u32 4, %s19
      %p165 = scmp.lt.s32.totalorder %s18, 3
      %s166 = scalar_select %p165, %s18, 3
      %p167 = scmp.lt.s32.totalorder %s164, 3
      %s168 = scalar_select %p167, %s164, 3
      %s169 = smul.addr %s166, 4
      %s170 = sadd.s32 %s168, %s169
      %s171 = smul.addr %s170, 8
      %s172 = scalar_lea.vmem %s0, %s171
      %p173 = pneg %p49
      %p174 = pneg %p46
      %p175 = pneg %p70
      %p176 = pneg %p67
      %p177 = pneg %p91
      %p178 = pneg %p88
      %p179 = pneg %p119
      %p180 = pneg %p116
      %s181 = smul.u32 4, %s19
      %p182 = scmp.lt.s32.totalorder %s18, 3
      %s183 = scalar_select %p182, %s18, 3
      %p184 = scmp.lt.s32.totalorder %s181, 3
      %s185 = scalar_select %p184, %s181, 3
      %s186 = smul.addr %s183, 4
      %s187 = sadd.s32 %s185, %s186
      %s188 = smul.addr %s187, 4
      %s189 = scalar_lea.vmem %s3, %s188
      %s190 = smul.u32 4, %s19
      %p191 = scmp.lt.s32.totalorder %s18, 3
      %s192 = scalar_select %p191, %s18, 3
      %p193 = scmp.lt.s32.totalorder %s190, 3
      %s194 = scalar_select %p193, %s190, 3
      %s195 = smul.addr %s192, 4
      %s196 = sadd.s32 %s194, %s195
      %s197 = smul.addr %s196, 8
      %s198 = scalar_lea.vmem %s0, %s197
      %s199 = smul.u32 4, %s19
      %s200 = smul.u32 4, %s19
      %p201 = scmp.lt.s32.totalorder %s18, 3
      %s202 = scalar_select %p201, %s18, 3
      %p203 = scmp.lt.s32.totalorder %s200, 3
      %s204 = scalar_select %p203, %s200, 3
      %s205 = smul.addr %s202, 4
      %s206 = sadd.s32 %s204, %s205
      %s207 = smul.addr %s206, 4
      %s208 = scalar_lea.vmem %s3, %s207
      %s209 = smul.u32 4, %s19
      %v210 = vld [vmem:[%s198] sm:$0xff]
      %v211 = vld [vmem:[%s198 + $0x8] sm:$0xff]
      %v212 = vld [vmem:[%s198 + $0x10] sm:$0xff]
      %v213 = vld [vmem:[%s198 + $0x18] sm:$0xff]
      %v214 = vld [vmem:[%s1] sm:$0x1]
      %v216 = vlaneseq
      %v217 = vshrl.u32 %v216, 7
      %v218 = vsub.s32 0, %v217
      %v219 = vrot.slane %v214, %v218
      %v221 = vsub.f32 %v210, %v219
      %v222 = vsub.f32 %v211, %v219
      %v223 = vsub.f32 %v212, %v219
      %v224 = vsub.f32 %v213, %v219
      %v225 = vld [vmem:[%s2] sm:$0x1]
      %v227 = vlaneseq
      %v228 = vshrl.u32 %v227, 7
      %v229 = vsub.s32 0, %v228
      %v230 = vrot.slane %v225, %v229
      %v232 = vmul.f32 %v221, %v230
      %v233 = vmul.f32 %v222, %v230
      %v234 = vmul.f32 %v223, %v230
      %v235 = vmul.f32 %v224, %v230
      %v236 = vmax.f32 %v232, 0.0
      %v237 = vmax.f32 %v233, 0.0
      %v238 = vmax.f32 %v234, 0.0
      %v239 = vmax.f32 %v235, 0.0
      %v240 = vpack.c.bf16 %v237, %v236
      %v241 = vpack.c.bf16 %v239, %v238
      %v244 = vunpack.c.l.b16 %v240
      %v245 = vunpack.c.h.b16 %v240
      %v246 = vunpack.c.l.b16 %v241
      %v247 = vunpack.c.h.b16 %v241
      %v248 = vpack.c.b16 %v244, %v244
      %v249 = vpack.c.b16 %v245, %v245
      %v250 = vpack.c.b16 %v246, %v246
      %v251 = vpack.c.b16 %v247, %v247
      %vm256 = vcmask 519168
      %257 = vst.msk [vmem:[%s208] sm:$0xf] %vm256, %v248
      %258 = vst.msk [vmem:[%s208 + $0x4] sm:$0xf] %vm256, %v249
      %259 = vst.msk [vmem:[%s208 + $0x8] sm:$0xf] %vm256, %v250
      %260 = vst.msk [vmem:[%s208 + $0xc] sm:$0xf] %vm256, %v251
      %s261 = smul.u32 4, %s19
      %p262 = scmp.lt.s32.totalorder %s18, 3
      %s263 = scalar_select %p262, %s18, 3
      %p264 = scmp.lt.s32.totalorder %s261, 3
      %s265 = scalar_select %p264, %s261, 3
      %s266 = smul.addr %s263, 4
      %s267 = sadd.s32 %s265, %s266
      %s268 = smul.addr %s267, 4
      %s269 = scalar_lea.vmem %s3, %s268
      // Predicated region
      $region33: #{generator_forward.12} parent=31 // pred_check
        %p270 = pneg %p116
      $region34: #{generator_forward.12} parent=31 // pred_check_branch
        %272 = sbr.rel (%p270) target = $region36
      $region35: #{generator_forward.12} parent=31 // pred_region
        %s273 = smul.u32 4, %s19
      $region36: #{generator_forward.12} parent=31 // pred_fallthru
        _
    $region32: #{generator_forward.12} parent=5 // pred_fallthru
      _
    %p274 = scmp.le.s32.totalorder 2, %s9
    // Predicated region
    $region37: #{generator_forward.12} parent=5 // pred_check
      %p275 = pneg %p274
    $region38: #{generator_forward.12} parent=5 // pred_check_branch
      %277 = sbr.rel (%p275) target = $region40
    $region39: #{generator_forward.12} parent=5 // pred_region
      %s278 = ssub.s32 %s9, 2
      // Predicated region
      $region41: #{generator_forward.12} parent=39 // pred_check
        %p279 = pneg %p122
      $region42: #{generator_forward.12} parent=39 // pred_check_branch
        %281 = sbr.rel (%p279) target = $region44
      $region43: #{generator_forward.12} parent=39 // pred_region
        %s282 = smul.u32 4, %s21
        %p283 = scmp.lt.s32.totalorder %s20, 3
        %s284 = scalar_select %p283, %s20, 3
        %p285 = scmp.lt.s32.totalorder %s282, 3
        %s286 = scalar_select %p285, %s282, 3
        %s287 = smul.addr %s284, 4
        %s288 = sadd.s32 %s286, %s287
        %s289 = smul.addr %s288, 4
        %s290 = scalar_lea.vmem %s3, %s289
      $region44: #{generator_forward.12} parent=39 // pred_fallthru
        _
    $region40: #{generator_forward.12} parent=5 // pred_fallthru
      _
  $region6: #{generator_forward.12} parent=0 // loop_footer
    %s13 = sadd.s32 1, %s9
  $region7: #{generator_forward.12} parent=0 // loop_footer_branch
    %8 = sbr.rel target = $region3
  $region8: #{generator_forward.12} parent=0 // loop_exit
    _

// kernel: generator_forward.11
$region0: #{generator_forward.11}
  #allocation0 [shape = 'u32[]', space=smem, size = 0x4, offset = 0x4, fixed_abs, tag = 'smem constant byte address 0x4 - core index']
  #allocation1 [shape = 'u32[144,128]{1,0:T(1,128)}', space=vmem, size = 0x12000, scoped, tag = 'internal scratch']
  %s0 = inlined_call_operand.vmem [shape: bf16[4,32,512], index: 0, kind: input, shape index: {}]
  %s1 = inlined_call_operand.vmem [shape: bf16[4,512,64], index: 1, kind: input, shape index: {}]
  %s2 = inlined_call_operand.vmem [shape: f32[1,64], index: 2, kind: input, shape index: {}]
  %s3 = inlined_call_operand.vmem [shape: f32[4,32,64], index: 3, kind: output, shape index: {0}]
  %s4 = inlined_call_operand.vmem [shape: f32[1,64], index: 4, kind: output, shape index: {1}]
  %s5 = inlined_call_operand.vmem [shape: f32[1,64], index: 5, kind: output, shape index: {2}]
  %6 = xla_tuple %s3, %s4, %s5
  %s7 = sld [smem:[#allocation0]]
  $region65: #{generator_forward.11} parent=0
    _
  %s9 = ssub.s32 1, %s7
  %s10 = scalar_select 0, %s9, %s7
  loop: start=0, step=1, limit=6
  $region2: #{generator_forward.11} parent=0 // loop_pre_header
    _
  $region3: #{generator_forward.11} parent=0 // loop_header
    %s12 = sphi 0, %s16
    %p13 = scmp.ge.s32.totalorder %s12, 6
    %s19 = sphi 0, %s31
    %s20 = sphi 0, %s27
    %s21 = sphi 0, %s19
    %s22 = sphi 0, %s20
    %s23 = sphi 0, %s21
    %s24 = sphi 0, %s22
    %s36 = sphi 0, %s38
    %s39 = sphi 0, %s36
    %s40 = sphi 0, %s39
    %s56 = sphi 0, %s40
    %s62 = sphi 0, %s64
    %s65 = sphi 0, %s62
    %s66 = sphi 0, %s65
    %s82 = sphi 0, %s66
    %s86 = sphi 0, %s86
    %s88 = sphi 0, %s86
    %s89 = sphi 0, %s88
    %s103 = sphi 0, %s89
    %s111 = sphi 0, %s113
    %s114 = sphi 0, %s111
    %s115 = sphi 0, %s114
    %s131 = sphi 0, %s115
    %s135 = sphi 0, %s135
    %s137 = sphi 0, %s135
    %s138 = sphi 0, %s137
    %s152 = sphi 0, %s138
    %s156 = sphi 0, %s156
    %s158 = sphi 0, %s156
    %s159 = sphi 0, %s158
    %s173 = sphi 0, %s159
  $region4: #{generator_forward.11} parent=0 // loop_header_branch
    %15 = sbr.rel (%p13) target = $region8
  $region5: #{generator_forward.11} parent=0 // loop_body
    %s17 = ssub.s32 %s12, 1
    %s18 = ssub.s32 %s12, 2
    %s25 = sadd.s32 1, %s20
    %p26 = scmp.ge.s32.totalorder %s25, 1
    %s27 = scalar_select %p26, 0, %s25
    %s28 = sadd.s32 1, %s19
    %s29 = scalar_select %p26, %s28, %s19
    %p30 = scmp.ge.s32.totalorder %s29, 4
    %s31 = scalar_select %p30, 0, %s29
    %s32 = ssub.s32 %s19, %s31
    %s33 = ssub.s32 %s20, %s27
    %s34 = sor.u32 %s32, %s33
    %p35 = scmp.eq.s32.totalorder %s34, 0
    %s37 = sadd.s32 %s36, 1
    %s38 = scalar_select %p35, %s36, %s37
    %p41 = pneg %p35
    %p42 = scmp.eq.s32.totalorder %s12, 3
    %p43 = por %p41, %p42
    %p44 = scmp.ne.s32.totalorder %s36, %s39
    %p45 = scmp.eq.s32.totalorder %s12, 0
    %p46 = por %p44, %p45
    %p47 = scmp.ne.s32.totalorder %s36, %s39
    %p48 = scmp.eq.s32.totalorder %s17, 3
    %p49 = por %p47, %p48
    %p50 = scmp.ne.s32.totalorder %s39, %s40
    %p51 = scmp.eq.s32.totalorder %s17, 0
    %p52 = por %p50, %p51
    %p53 = scmp.ne.s32.totalorder %s39, %s40
    %p54 = scmp.eq.s32.totalorder %s18, 3
    %p55 = por %p53, %p54
    %p57 = scmp.ne.s32.totalorder %s40, %s56
    %p58 = scmp.eq.s32.totalorder %s18, 0
    %p59 = por %p57, %p58
    %s60 = ssub.s32 %s19, %s31
    %p61 = scmp.eq.s32.totalorder %s60, 0
    %s63 = sadd.s32 %s62, 1
    %s64 = scalar_select %p61, %s62, %s63
    %p67 = pneg %p61
    %p68 = scmp.eq.s32.totalorder %s12, 3
    %p69 = por %p67, %p68
    %p70 = scmp.ne.s32.totalorder %s62, %s65
    %p71 = scmp.eq.s32.totalorder %s12, 0
    %p72 = por %p70, %p71
    %p73 = scmp.ne.s32.totalorder %s62, %s65
    %p74 = scmp.eq.s32.totalorder %s17, 3
    %p75 = por %p73, %p74
    %p76 = scmp.ne.s32.totalorder %s65, %s66
    %p77 = scmp.eq.s32.totalorder %s17, 0
    %p78 = por %p76, %p77
    %p79 = scmp.ne.s32.totalorder %s65, %s66
    %p80 = scmp.eq.s32.totalorder %s18, 3
    %p81 = por %p79, %p80
    %p83 = scmp.ne.s32.totalorder %s66, %s82
    %p84 = scmp.eq.s32.totalorder %s18, 0
    %p85 = por %p83, %p84
    %s87 = sadd.s32 %s86, 1
    %p90 = scmp.eq.s32.totalorder %s12, 3
    %p91 = scmp.ne.s32.totalorder %s86, %s88
    %p92 = scmp.eq.s32.totalorder %s12, 0
    %p93 = por %p91, %p92
    %p94 = scmp.ne.s32.totalorder %s86, %s88
    %p95 = scmp.eq.s32.totalorder %s17, 3
    %p96 = por %p94, %p95
    %p97 = scmp.ne.s32.totalorder %s88, %s89
    %p98 = scmp.eq.s32.totalorder %s17, 0
    %p99 = por %p97, %p98
    %p100 = scmp.ne.s32.totalorder %s88, %s89
    %p101 = scmp.eq.s32.totalorder %s18, 3
    %p102 = por %p100, %p101
    %p104 = scmp.ne.s32.totalorder %s89, %s103
    %p105 = scmp.eq.s32.totalorder %s18, 0
    %p106 = por %p104, %p105
    %s107 = ssub.s32 %s19, %s31
    %s108 = ssub.s32 %s20, %s27
    %s109 = sor.u32 %s107, %s108
    %p110 = scmp.eq.s32.totalorder %s109, 0
    %s112 = sadd.s32 %s111, 1
    %s113 = scalar_select %p110, %s111, %s112
    %p116 = pneg %p110
    %p117 = scmp.eq.s32.totalorder %s12, 3
    %p118 = por %p116, %p117
    %p119 = scmp.ne.s32.totalorder %s111, %s114
    %p120 = scmp.eq.s32.totalorder %s12, 0
    %p121 = por %p119, %p120
    %p122 = scmp.ne.s32.totalorder %s111, %s114
    %p123 = scmp.eq.s32.totalorder %s17, 3
    %p124 = por %p122, %p123
    %p125 = scmp.ne.s32.totalorder %s114, %s115
    %p126 = scmp.eq.s32.totalorder %s17, 0
    %p127 = por %p125, %p126
    %p128 = scmp.ne.s32.totalorder %s114, %s115
    %p129 = scmp.eq.s32.totalorder %s18, 3
    %p130 = por %p128, %p129
    %p132 = scmp.ne.s32.totalorder %s115, %s131
    %p133 = scmp.eq.s32.totalorder %s18, 0
    %p134 = por %p132, %p133
    %s136 = sadd.s32 %s135, 1
    %p139 = scmp.eq.s32.totalorder %s12, 3
    %p140 = scmp.ne.s32.totalorder %s135, %s137
    %p141 = scmp.eq.s32.totalorder %s12, 0
    %p142 = por %p140, %p141
    %p143 = scmp.ne.s32.totalorder %s135, %s137
    %p144 = scmp.eq.s32.totalorder %s17, 3
    %p145 = por %p143, %p144
    %p146 = scmp.ne.s32.totalorder %s137, %s138
    %p147 = scmp.eq.s32.totalorder %s17, 0
    %p148 = por %p146, %p147
    %p149 = scmp.ne.s32.totalorder %s137, %s138
    %p150 = scmp.eq.s32.totalorder %s18, 3
    %p151 = por %p149, %p150
    %p153 = scmp.ne.s32.totalorder %s138, %s152
    %p154 = scmp.eq.s32.totalorder %s18, 0
    %p155 = por %p153, %p154
    %s157 = sadd.s32 %s156, 1
    %p160 = scmp.eq.s32.totalorder %s12, 3
    %p161 = scmp.ne.s32.totalorder %s156, %s158
    %p162 = scmp.eq.s32.totalorder %s12, 0
    %p163 = por %p161, %p162
    %p164 = scmp.ne.s32.totalorder %s156, %s158
    %p165 = scmp.eq.s32.totalorder %s17, 3
    %p166 = por %p164, %p165
    %p167 = scmp.ne.s32.totalorder %s158, %s159
    %p168 = scmp.eq.s32.totalorder %s17, 0
    %p169 = por %p167, %p168
    %p170 = scmp.ne.s32.totalorder %s158, %s159
    %p171 = scmp.eq.s32.totalorder %s18, 3
    %p172 = por %p170, %p171
    %p174 = scmp.ne.s32.totalorder %s159, %s173
    %p175 = scmp.eq.s32.totalorder %s18, 0
    %p176 = por %p174, %p175
    %p177 = scmp.le.s32.totalorder 1, %s12
    %p178 = scmp.lt.s32.totalorder %s12, 5
    %p179 = pnand %p177, %p178
    %p180 = pneg %p179
    // Predicated region
    $region9: #{generator_forward.11} parent=5 // pred_check
      _
    $region10: #{generator_forward.11} parent=5 // pred_check_branch
      %182 = sbr.rel (%p179) target = $region12
    $region11: #{generator_forward.11} parent=5 // pred_region
      %s183 = ssub.s32 %s12, 1
      // Predicated region
      $region13: #{generator_forward.11} parent=11 // pred_check
        %p184 = pneg %p99
      $region14: #{generator_forward.11} parent=11 // pred_check_branch
        %186 = sbr.rel (%p184) target = $region16
      $region15: #{generator_forward.11} parent=11 // pred_region
        _
      $region16: #{generator_forward.11} parent=11 // pred_fallthru
        _
    $region12: #{generator_forward.11} parent=5 // pred_fallthru
      _
    %p187 = scmp.lt.s32.totalorder %s12, 4
    // Predicated region
    $region17: #{generator_forward.11} parent=5 // pred_check
      %p188 = pneg %p187
    $region18: #{generator_forward.11} parent=5 // pred_check_branch
      %190 = sbr.rel (%p188) target = $region20
    $region19: #{generator_forward.11} parent=5 // pred_region
      // Predicated region
      $region21: #{generator_forward.11} parent=19 // pred_check
        %p191 = pneg %p46
      $region22: #{generator_forward.11} parent=19 // pred_check_branch
        %193 = sbr.rel (%p191) target = $region24
      $region23: #{generator_forward.11} parent=19 // pred_region
        %s194 = smul.u32 4, %s20
        %p195 = scmp.lt.s32.totalorder %s19, 3
        %s196 = scalar_select %p195, %s19, 3
        %p197 = scmp.lt.s32.totalorder %s194, 3
        %s198 = scalar_select %p197, %s194, 3
        %s199 = smul.addr %s198, 4
        %s200 = smul.addr %s196, 16
        %s201 = sadd.s32 %s199, %s200
        %s202 = smul.addr %s201, 4
        %s203 = scalar_lea.vmem %s0, %s202
        %s204 = smul.u32 4, %s20
      $region24: #{generator_forward.11} parent=19 // pred_fallthru
        _
      // Predicated region
      $region25: #{generator_forward.11} parent=19 // pred_check
        %p205 = pneg %p72
      $region26: #{generator_forward.11} parent=19 // pred_check_branch
        %207 = sbr.rel (%p205) target = $region28
      $region27: #{generator_forward.11} parent=19 // pred_region
        %p208 = scmp.lt.s32.totalorder %s19, 3
        %s209 = scalar_select %p208, %s19, 3
        %s210 = smul.addr %s209, 64
        %s211 = smul.addr %s210, 4
        %s212 = scalar_lea.vmem %s1, %s211
      $region28: #{generator_forward.11} parent=19 // pred_fallthru
        _
    $region20: #{generator_forward.11} parent=5 // pred_fallthru
      _
    %p213 = scmp.le.s32.totalorder 1, %s12
    %p214 = scmp.lt.s32.totalorder %s12, 5
    %p215 = pnand %p213, %p214
    %p216 = pneg %p215
    // Predicated region
    $region29: #{generator_forward.11} parent=5 // pred_check
      _
    $region30: #{generator_forward.11} parent=5 // pred_check_branch
      %218 = sbr.rel (%p215) target = $region32
    $region31: #{generator_forward.11} parent=5 // pred_region
      %s219 = ssub.s32 %s12, 1
      %s220 = smul.u32 4, %s22
      %p221 = scmp.lt.s32.totalorder %s21, 3
      %s222 = scalar_select %p221, %s21, 3
      %p223 = scmp.lt.s32.totalorder %s220, 3
      %s224 = scalar_select %p223, %s220, 3
      %s225 = smul.addr %s224, 4
      %s226 = smul.addr %s222, 16
      %s227 = sadd.s32 %s225, %s226
      %s228 = smul.addr %s227, 4
      %s229 = scalar_lea.vmem %s0, %s228
      %p230 = pneg %p52
      %p231 = pneg %p49
      %p232 = scmp.lt.s32.totalorder %s21, 3
      %s233 = scalar_select %p232, %s21, 3
      %s234 = smul.addr %s233, 64
      %s235 = smul.addr %s234, 4
      %s236 = scalar_lea.vmem %s1, %s235
      %p237 = pneg %p78
      %p238 = pneg %p75
      %p239 = pneg %p99
      %p240 = pneg %p96
      %p241 = pneg %p127
      %p242 = pneg %p124
      %s243 = smul.u32 4, %s22
      %p244 = scmp.lt.s32.totalorder %s21, 3
      %s245 = scalar_select %p244, %s21, 3
      %p246 = scmp.lt.s32.totalorder %s243, 3
      %s247 = scalar_select %p246, %s243, 3
      %s248 = smul.addr %s245, 4
      %s249 = sadd.s32 %s247, %s248
      %s250 = smul.addr %s249, 8
      %s251 = scalar_lea.vmem %s3, %s250
      %p252 = pneg %p148
      %p253 = pneg %p145
      %p254 = pneg %p169
      %p255 = pneg %p166
      %s256 = smul.u32 4, %s22
      %p257 = scmp.lt.s32.totalorder %s21, 3
      %s258 = scalar_select %p257, %s21, 3
      %p259 = scmp.lt.s32.totalorder %s256, 3
      %s260 = scalar_select %p259, %s256, 3
      %s261 = smul.addr %s260, 4
      %s262 = smul.addr %s258, 16
      %s263 = sadd.s32 %s261, %s262
      %s264 = smul.addr %s263, 4
      %s265 = scalar_lea.vmem %s0, %s264
      %s266 = smul.u32 4, %s22
      %p267 = scmp.lt.s32.totalorder %s21, 3
      %s268 = scalar_select %p267, %s21, 3
      %s269 = smul.addr %s268, 64
      %s270 = smul.addr %s269, 4
      %s271 = scalar_lea.vmem %s1, %s270
      %s272 = smul.u32 4, %s22
      %p273 = scmp.lt.s32.totalorder %s21, 3
      %s274 = scalar_select %p273, %s21, 3
      %p275 = scmp.lt.s32.totalorder %s272, 3
      %s276 = scalar_select %p275, %s272, 3
      %s277 = smul.addr %s274, 4
      %s278 = sadd.s32 %s276, %s277
      %s279 = smul.addr %s278, 8
      %s280 = scalar_lea.vmem %s3, %s279
      %s281 = smul.u32 4, %s22
      %p283 = scmp.eq.s32.totalorder %s21, 0
      %p284 = scmp.eq.s32.totalorder %s22, 0
      %p285 = pnand %p283, %p284
      %p286 = pneg %p285
      // Predicated region
      $region33: #{generator_forward.11} parent=31 // pred_check
        _
      $region34: #{generator_forward.11} parent=31 // pred_check_branch
        %288 = sbr.rel (%p285) target = $region36
      $region35: #{generator_forward.11} parent=31 // pred_region
        %vm289 = vcmask 516096
        %290 = vst.msk [vmem:[%s4] sm:$0x1] %vm289, 0.0
        %291 = vst.msk [vmem:[%s5] sm:$0x1] %vm289, 0.0
      $region36: #{generator_forward.11} parent=31 // pred_fallthru
        _
      %v292 = vld [vmem:[%s265] sm:$0xff]
      %v293 = vld [vmem:[%s265 + $0x8] sm:$0xff]
      %v294 = vld [vmem:[%s265 + $0x10] sm:$0xff]
      %v295 = vld [vmem:[%s265 + $0x18] sm:$0xff]
      %v296 = vld [vmem:[%s265 + $0x20] sm:$0xff]
      %v297 = vld [vmem:[%s265 + $0x28] sm:$0xff]
      %v298 = vld [vmem:[%s265 + $0x30] sm:$0xff]
      %v299 = vld [vmem:[%s265 + $0x38] sm:$0xff]
      %v300 = vld [vmem:[%s271] sm:$0xf]
      %v301 = vld [vmem:[%s271 + $0x4] sm:$0xf]
      %v302 = vld [vmem:[%s271 + $0x8] sm:$0xf]
      %v303 = vld [vmem:[%s271 + $0xc] sm:$0xf]
      %v304 = vld [vmem:[%s271 + $0x10] sm:$0xf]
      %v305 = vld [vmem:[%s271 + $0x14] sm:$0xf]
      %v306 = vld [vmem:[%s271 + $0x18] sm:$0xf]
      %v307 = vld [vmem:[%s271 + $0x1c] sm:$0xf]
      %v308 = vld [vmem:[%s271 + $0x20] sm:$0xf]
      %v309 = vld [vmem:[%s271 + $0x24] sm:$0xf]
      %v310 = vld [vmem:[%s271 + $0x28] sm:$0xf]
      %v311 = vld [vmem:[%s271 + $0x2c] sm:$0xf]
      %v312 = vld [vmem:[%s271 + $0x30] sm:$0xf]
      %v313 = vld [vmem:[%s271 + $0x34] sm:$0xf]
      %v314 = vld [vmem:[%s271 + $0x38] sm:$0xf]
      %v315 = vld [vmem:[%s271 + $0x3c] sm:$0xf]
      %v316 = vld [vmem:[%s271 + $0x40] sm:$0xf]
      %v317 = vld [vmem:[%s271 + $0x44] sm:$0xf]
      %v318 = vld [vmem:[%s271 + $0x48] sm:$0xf]
      %v319 = vld [vmem:[%s271 + $0x4c] sm:$0xf]
      %v320 = vld [vmem:[%s271 + $0x50] sm:$0xf]
      %v321 = vld [vmem:[%s271 + $0x54] sm:$0xf]
      %v322 = vld [vmem:[%s271 + $0x58] sm:$0xf]
      %v323 = vld [vmem:[%s271 + $0x5c] sm:$0xf]
      %v324 = vld [vmem:[%s271 + $0x60] sm:$0xf]
      %v325 = vld [vmem:[%s271 + $0x64] sm:$0xf]
      %v326 = vld [vmem:[%s271 + $0x68] sm:$0xf]
      %v327 = vld [vmem:[%s271 + $0x6c] sm:$0xf]
      %v328 = vld [vmem:[%s271 + $0x70] sm:$0xf]
      %v329 = vld [vmem:[%s271 + $0x74] sm:$0xf]
      %v330 = vld [vmem:[%s271 + $0x78] sm:$0xf]
      %v331 = vld [vmem:[%s271 + $0x7c] sm:$0xf]
      %v332 = vld [vmem:[%s271 + $0x80] sm:$0xf]
      %v333 = vld [vmem:[%s271 + $0x84] sm:$0xf]
      %v334 = vld [vmem:[%s271 + $0x88] sm:$0xf]
      %v335 = vld [vmem:[%s271 + $0x8c] sm:$0xf]
      %v336 = vld [vmem:[%s271 + $0x90] sm:$0xf]
      %v337 = vld [vmem:[%s271 + $0x94] sm:$0xf]
      %v338 = vld [vmem:[%s271 + $0x98] sm:$0xf]
      %v339 = vld [vmem:[%s271 + $0x9c] sm:$0xf]
      %v340 = vld [vmem:[%s271 + $0xa0] sm:$0xf]
      %v341 = vld [vmem:[%s271 + $0xa4] sm:$0xf]
      %v342 = vld [vmem:[%s271 + $0xa8] sm:$0xf]
      %v343 = vld [vmem:[%s271 + $0xac] sm:$0xf]
      %v344 = vld [vmem:[%s271 + $0xb0] sm:$0xf]
      %v345 = vld [vmem:[%s271 + $0xb4] sm:$0xf]
      %v346 = vld [vmem:[%s271 + $0xb8] sm:$0xf]
      %v347 = vld [vmem:[%s271 + $0xbc] sm:$0xf]
      %v348 = vld [vmem:[%s271 + $0xc0] sm:$0xf]
      %v349 = vld [vmem:[%s271 + $0xc4] sm:$0xf]
      %v350 = vld [vmem:[%s271 + $0xc8] sm:$0xf]
      %v351 = vld [vmem:[%s271 + $0xcc] sm:$0xf]
      %v352 = vld [vmem:[%s271 + $0xd0] sm:$0xf]
      %v353 = vld [vmem:[%s271 + $0xd4] sm:$0xf]
      %v354 = vld [vmem:[%s271 + $0xd8] sm:$0xf]
      %v355 = vld [vmem:[%s271 + $0xdc] sm:$0xf]
      %v356 = vld [vmem:[%s271 + $0xe0] sm:$0xf]
      %v357 = vld [vmem:[%s271 + $0xe4] sm:$0xf]
      %v358 = vld [vmem:[%s271 + $0xe8] sm:$0xf]
      %v359 = vld [vmem:[%s271 + $0xec] sm:$0xf]
      %v360 = vld [vmem:[%s271 + $0xf0] sm:$0xf]
      %v361 = vld [vmem:[%s271 + $0xf4] sm:$0xf]
      %v362 = vld [vmem:[%s271 + $0xf8] sm:$0xf]
      %v363 = vld [vmem:[%s271 + $0xfc] sm:$0xf]
      %v364 = vld [vmem:[%s2] sm:$0x1]
      %v366 = vlaneseq
      %v367 = vshrl.u32 %v366, 7
      %v368 = vsub.s32 0, %v367
      %v369 = vrot.slane %v364, %v368
      %v379 = vunpack.c.l.b16 %v292
      %v380 = vunpack.c.h.b16 %v292
      %v381 = vunpack.c.l.b16 %v293
      %v382 = vunpack.c.h.b16 %v293
      %v383 = vunpack.c.l.b16 %v294
      %v384 = vunpack.c.h.b16 %v294
      %v385 = vunpack.c.l.b16 %v295
      %v386 = vunpack.c.h.b16 %v295
      %v387 = vunpack.c.l.b16 %v296
      %v388 = vunpack.c.h.b16 %v296
      %v389 = vunpack.c.l.b16 %v297
      %v390 = vunpack.c.h.b16 %v297
      %v391 = vunpack.c.l.b16 %v298
      %v392 = vunpack.c.h.b16 %v298
      %v393 = vunpack.c.l.b16 %v299
      %v394 = vunpack.c.h.b16 %v299
      %v395 = vpack.c.b16 %v383, %v379
      %v396 = vpack.c.b16 %v384, %v380
      %v397 = vpack.c.b16 %v385, %v381
      %v398 = vpack.c.b16 %v386, %v382
      %v399 = vpack.c.b16 %v391, %v387
      %v400 = vpack.c.b16 %v392, %v388
      %v401 = vpack.c.b16 %v393, %v389
      %v402 = vpack.c.b16 %v394, %v390
      %v475 = vunpack.c.l.b16 %v300
      %v476 = vunpack.c.l.b16 %v301
      %v477 = vunpack.c.l.b16 %v302
      %v478 = vunpack.c.l.b16 %v303
      %v479 = vunpack.c.l.b16 %v304
      %v480 = vunpack.c.l.b16 %v305
      %v481 = vunpack.c.l.b16 %v306
      %v482 = vunpack.c.l.b16 %v307
      %v483 = vunpack.c.l.b16 %v308
      %v484 = vunpack.c.l.b16 %v309
      %v485 = vunpack.c.l.b16 %v310
      %v486 = vunpack.c.l.b16 %v311
      %v487 = vunpack.c.l.b16 %v312
      %v488 = vunpack.c.l.b16 %v313
      %v489 = vunpack.c.l.b16 %v314
      %v490 = vunpack.c.l.b16 %v315
      %v491 = vunpack.c.l.b16 %v316
      %v492 = vunpack.c.l.b16 %v317
      %v493 = vunpack.c.l.b16 %v318
      %v494 = vunpack.c.l.b16 %v319
      %v495 = vunpack.c.l.b16 %v320
      %v496 = vunpack.c.l.b16 %v321
      %v497 = vunpack.c.l.b16 %v322
      %v498 = vunpack.c.l.b16 %v323
      %v499 = vunpack.c.l.b16 %v324
      %v500 = vunpack.c.l.b16 %v325
      %v501 = vunpack.c.l.b16 %v326
      %v502 = vunpack.c.l.b16 %v327
      %v503 = vunpack.c.l.b16 %v328
      %v504 = vunpack.c.l.b16 %v329
      %v505 = vunpack.c.l.b16 %v330
      %v506 = vunpack.c.l.b16 %v331
      %v507 = vunpack.c.l.b16 %v332
      %v508 = vunpack.c.l.b16 %v333
      %v509 = vunpack.c.l.b16 %v334
      %v510 = vunpack.c.l.b16 %v335
      %v511 = vunpack.c.l.b16 %v336
      %v512 = vunpack.c.l.b16 %v337
      %v513 = vunpack.c.l.b16 %v338
      %v514 = vunpack.c.l.b16 %v339
      %v515 = vunpack.c.l.b16 %v340
      %v516 = vunpack.c.l.b16 %v341
      %v517 = vunpack.c.l.b16 %v342
      %v518 = vunpack.c.l.b16 %v343
      %v519 = vunpack.c.l.b16 %v344
      %v520 = vunpack.c.l.b16 %v345
      %v521 = vunpack.c.l.b16 %v346
      %v522 = vunpack.c.l.b16 %v347
      %v523 = vunpack.c.l.b16 %v348
      %v524 = vunpack.c.l.b16 %v349
      %v525 = vunpack.c.l.b16 %v350
      %v526 = vunpack.c.l.b16 %v351
      %v527 = vunpack.c.l.b16 %v352
      %v528 = vunpack.c.l.b16 %v353
      %v529 = vunpack.c.l.b16 %v354
      %v530 = vunpack.c.l.b16 %v355
      %v531 = vunpack.c.l.b16 %v356
      %v532 = vunpack.c.l.b16 %v357
      %v533 = vunpack.c.l.b16 %v358
      %v534 = vunpack.c.l.b16 %v359
      %v535 = vunpack.c.l.b16 %v360
      %v536 = vunpack.c.l.b16 %v361
      %v537 = vunpack.c.l.b16 %v362
      %v538 = vunpack.c.l.b16 %v363
      %v539 = vpack.c.b16 %v476, %v475
      %v540 = vpack.c.b16 %v478, %v477
      %v541 = vpack.c.b16 %v480, %v479
      %v542 = vpack.c.b16 %v482, %v481
      %v543 = vpack.c.b16 %v484, %v483
      %v544 = vpack.c.b16 %v486, %v485
      %v545 = vpack.c.b16 %v488, %v487
      %v546 = vpack.c.b16 %v490, %v489
      %v547 = vpack.c.b16 %v492, %v491
      %v548 = vpack.c.b16 %v494, %v493
      %v549 = vpack.c.b16 %v496, %v495
      %v550 = vpack.c.b16 %v498, %v497
      %v551 = vpack.c.b16 %v500, %v499
      %v552 = vpack.c.b16 %v502, %v501
      %v553 = vpack.c.b16 %v504, %v503
      %v554 = vpack.c.b16 %v506, %v505
      %v555 = vpack.c.b16 %v508, %v507
      %v556 = vpack.c.b16 %v510, %v509
      %v557 = vpack.c.b16 %v512, %v511
      %v558 = vpack.c.b16 %v514, %v513
      %v559 = vpack.c.b16 %v516, %v515
      %v560 = vpack.c.b16 %v518, %v517
      %v561 = vpack.c.b16 %v520, %v519
      %v562 = vpack.c.b16 %v522, %v521
      %v563 = vpack.c.b16 %v524, %v523
      %v564 = vpack.c.b16 %v526, %v525
      %v565 = vpack.c.b16 %v528, %v527
      %v566 = vpack.c.b16 %v530, %v529
      %v567 = vpack.c.b16 %v532, %v531
      %v568 = vpack.c.b16 %v534, %v533
      %v569 = vpack.c.b16 %v536, %v535
      %v570 = vpack.c.b16 %v538, %v537
      %603 = vmatprep.subr.bf16.mxu0 0
      %604 = vmatpush1.bf16.msra.mxu0 %v539
      %605 = vmatprep.subr.bf16.mxu0 0
      %606 = vmatpush1.bf16.msra.mxu0 %v540
      %607 = vmatprep.subr.bf16.mxu0 0
      %608 = vmatpush1.bf16.msra.mxu0 %v541
      %609 = vmatprep.subr.bf16.mxu0 0
      %610 = vmatpush1.bf16.msra.mxu0 %v542
      %611 = vmatprep.subr.bf16.mxu0 0
      %612 = vmatpush1.bf16.msra.mxu0 %v543
      %613 = vmatprep.subr.bf16.mxu0 0
      %614 = vmatpush1.bf16.msra.mxu0 %v544
      %615 = vmatprep.subr.bf16.mxu0 0
      %616 = vmatpush1.bf16.msra.mxu0 %v545
      %617 = vmatprep.subr.bf16.mxu0 0
      %618 = vmatpush1.bf16.msra.mxu0 %v546
      %619 = vmatprep.subr.bf16.mxu0 0
      %620 = vmatpush1.bf16.msra.mxu0 %v547
      %621 = vmatprep.subr.bf16.mxu0 0
      %622 = vmatpush1.bf16.msra.mxu0 %v548
      %623 = vmatprep.subr.bf16.mxu0 0
      %624 = vmatpush1.bf16.msra.mxu0 %v549
      %625 = vmatprep.subr.bf16.mxu0 0
      %626 = vmatpush1.bf16.msra.mxu0 %v550
      %627 = vmatprep.subr.bf16.mxu0 0
      %628 = vmatpush1.bf16.msra.mxu0 %v551
      %629 = vmatprep.subr.bf16.mxu0 0
      %630 = vmatpush1.bf16.msra.mxu0 %v552
      %631 = vmatprep.subr.bf16.mxu0 0
      %632 = vmatpush1.bf16.msra.mxu0 %v553
      %633 = vmatprep.subr.bf16.mxu0 0
      %634 = vmatpush1.bf16.msra.mxu0 %v554
      %635 = vmatprep.mubr.bf16.mxu0 %v396
      %636 = vmatmul.mubr.bf16.gmra.mrb[0].mxu0 %v395
      %v637 = vpop.f32.mrb[0].mxu0
      %v638 = vadd.f32 %v369, %v637
      %v639 = vpop.f32.mrb[0].mxu0
      %v640 = vpop.f32.mrb[0].mxu0
      %v641 = vadd.f32 %v369, %v640
      %v642 = vpop.f32.mrb[0].mxu0
      %643 = vmatprep.mubr.bf16.mxu0 %v400
      %644 = vmatmul.mubr.bf16.gmra.mrb[0].mxu0 %v399
      %v645 = vpop.f32.mrb[0].mxu0
      %v646 = vadd.f32 %v369, %v645
      %v647 = vpop.f32.mrb[0].mxu0
      %v648 = vpop.f32.mrb[0].mxu0
      %v649 = vadd.f32 %v369, %v648
      %v650 = vpop.f32.mrb[0].mxu0
      %651 = vdwg.mxu0
      %652 = vmatprep.subr.bf16.mxu0 0
      %653 = vmatpush1.bf16.msra.mxu0 %v555
      %654 = vmatprep.subr.bf16.mxu0 0
      %655 = vmatpush1.bf16.msra.mxu0 %v556
      %656 = vmatprep.subr.bf16.mxu0 0
      %657 = vmatpush1.bf16.msra.mxu0 %v557
      %658 = vmatprep.subr.bf16.mxu0 0
      %659 = vmatpush1.bf16.msra.mxu0 %v558
      %660 = vmatprep.subr.bf16.mxu0 0
      %661 = vmatpush1.bf16.msra.mxu0 %v559
      %662 = vmatprep.subr.bf16.mxu0 0
      %663 = vmatpush1.bf16.msra.mxu0 %v560
      %664 = vmatprep.subr.bf16.mxu0 0
      %665 = vmatpush1.bf16.msra.mxu0 %v561
      %666 = vmatprep.subr.bf16.mxu0 0
      %667 = vmatpush1.bf16.msra.mxu0 %v562
      %668 = vmatprep.subr.bf16.mxu0 0
      %669 = vmatpush1.bf16.msra.mxu0 %v563
      %670 = vmatprep.subr.bf16.mxu0 0
      %671 = vmatpush1.bf16.msra.mxu0 %v564
      %672 = vmatprep.subr.bf16.mxu0 0
      %673 = vmatpush1.bf16.msra.mxu0 %v565
      %674 = vmatprep.subr.bf16.mxu0 0
      %675 = vmatpush1.bf16.msra.mxu0 %v566
      %676 = vmatprep.subr.bf16.mxu0 0
      %677 = vmatpush1.bf16.msra.mxu0 %v567
      %678 = vmatprep.subr.bf16.mxu0 0
      %679 = vmatpush1.bf16.msra.mxu0 %v568
      %680 = vmatprep.subr.bf16.mxu0 0
      %681 = vmatpush1.bf16.msra.mxu0 %v569
      %682 = vmatprep.subr.bf16.mxu0 0
      %683 = vmatpush1.bf16.msra.mxu0 %v570
      %684 = vmatprep.mubr.bf16.mxu0 %v398
      %685 = vmatmul.mubr.bf16.gmra.mrb[0].mxu0 %v397
      %v686 = vpop.f32.mrb[0].mxu0
      %v687 = vadd.f32 %v638, %v686
      %v688 = vpop.f32.mrb[0].mxu0
      %v689 = vpop.f32.mrb[0].mxu0
      %v690 = vadd.f32 %v641, %v689
      %v691 = vpop.f32.mrb[0].mxu0
      %692 = vmatprep.mubr.bf16.mxu0 %v402
      %693 = vmatmul.mubr.bf16.gmra.mrb[0].mxu0 %v401
      %v694 = vpop.f32.mrb[0].mxu0
      %v695 = vadd.f32 %v646, %v694
      %v696 = vpop.f32.mrb[0].mxu0
      %v697 = vpop.f32.mrb[0].mxu0
      %v698 = vadd.f32 %v649, %v697
      %v699 = vpop.f32.mrb[0].mxu0
      %700 = vdwg.mxu0
      %vm701 = vcmask 523264
      %702 = vst.msk [vmem:[%s280] sm:$0xff] %vm701, %v687
      %703 = vst.msk [vmem:[%s280 + $0x8] sm:$0xff] %vm701, %v690
      %704 = vst.msk [vmem:[%s280 + $0x10] sm:$0xff] %vm701, %v695
      %705 = vst.msk [vmem:[%s280 + $0x18] sm:$0xff] %vm701, %v698
      %v706 = vld [vmem:[%s4] sm:$0x1]
      %v707 = vsel %vm701, %v687, 0.0
      %v708 = vsel %vm701, %v690, 0.0
      %v709 = vadd.f32 %v707, %v708
      %v710 = vsel %vm701, %v695, 0.0
      %v711 = vadd.f32 %v709, %v710
      %v712 = vsel %vm701, %v698, 0.0
      %v713 = vadd.f32 %v711, %v712
      %v714 = vrot.slane %v713, 4
      %v715 = vadd.f32 %v713, %v714
      %v716 = vrot.slane %v715, 2
      %v717 = vadd.f32 %v715, %v716
      %v718 = vrot.slane %v717, 1
      %v719 = vadd.f32 %v717, %v718
      %v720 = vadd.f32 %v706, %v719
      %vm721 = vcmask 516096
      %722 = vst.msk [vmem:[%s4] sm:$0x1] %vm721, %v720
      %v723 = vld [vmem:[%s5] sm:$0x1]
      %v724 = vmul.f32 %v687, %v687
      %v725 = vmul.f32 %v690, %v690
      %v726 = vmul.f32 %v695, %v695
      %v727 = vmul.f32 %v698, %v698
      %v728 = vsel %vm701, %v724, 0.0
      %v729 = vsel %vm701, %v725, 0.0
      %v730 = vadd.f32 %v728, %v729
      %v731 = vsel %vm701, %v726, 0.0
      %v732 = vadd.f32 %v730, %v731
      %v733 = vsel %vm701, %v727, 0.0
      %v734 = vadd.f32 %v732, %v733
      %v735 = vrot.slane %v734, 4
      %v736 = vadd.f32 %v734, %v735
      %v737 = vrot.slane %v736, 2
      %v738 = vadd.f32 %v736, %v737
      %v739 = vrot.slane %v738, 1
      %v740 = vadd.f32 %v738, %v739
      %v741 = vadd.f32 %v723, %v740
      %742 = vst.msk [vmem:[%s5] sm:$0x1] %vm721, %v741
      %s743 = smul.u32 4, %s22
      %p744 = scmp.lt.s32.totalorder %s21, 3
      %s745 = scalar_select %p744, %s21, 3
      %p746 = scmp.lt.s32.totalorder %s743, 3
      %s747 = scalar_select %p746, %s743, 3
      %s748 = smul.addr %s745, 4
      %s749 = sadd.s32 %s747, %s748
      %s750 = smul.addr %s749, 8
      %s751 = scalar_lea.vmem %s3, %s750
      // Predicated region
      $region37: #{generator_forward.11} parent=31 // pred_check
        %p752 = pneg %p124
      $region38: #{generator_forward.11} parent=31 // pred_check_branch
        %754 = sbr.rel (%p752) target = $region40
      $region39: #{generator_forward.11} parent=31 // pred_region
        %s755 = smul.u32 4, %s22
      $region40: #{generator_forward.11} parent=31 // pred_fallthru
        _
      // Predicated region
      $region41: #{generator_forward.11} parent=31 // pred_check
        %p756 = pneg %p145
      $region42: #{generator_forward.11} parent=31 // pred_check_branch
        %758 = sbr.rel (%p756) target = $region44
      $region43: #{generator_forward.11} parent=31 // pred_region
        _
      $region44: #{generator_forward.11} parent=31 // pred_fallthru
        _
      // Predicated region
      $region45: #{generator_forward.11} parent=31 // pred_check
        %p759 = pneg %p166
      $region46: #{generator_forward.11} parent=31 // pred_check_branch
        %761 = sbr.rel (%p759) target = $region48
      $region47: #{generator_forward.11} parent=31 // pred_region
        _
      $region48: #{generator_forward.11} parent=31 // pred_fallthru
        _
      // Predicated region
      $region49: #{generator_forward.11} parent=31 // pred_check
        %p762 = pneg %p145
      $region50: #{generator_forward.11} parent=31 // pred_check_branch
        %764 = sbr.rel (%p762) target = $region52
      $region51: #{generator_forward.11} parent=31 // pred_region
        _
      $region52: #{generator_forward.11} parent=31 // pred_fallthru
        _
      // Predicated region
      $region53: #{generator_forward.11} parent=31 // pred_check
        %p765 = pneg %p166
      $region54: #{generator_forward.11} parent=31 // pred_check_branch
        %767 = sbr.rel (%p765) target = $region56
      $region55: #{generator_forward.11} parent=31 // pred_region
        _
      $region56: #{generator_forward.11} parent=31 // pred_fallthru
        _
    $region32: #{generator_forward.11} parent=5 // pred_fallthru
      _
    %p768 = scmp.le.s32.totalorder 2, %s12
    // Predicated region
    $region57: #{generator_forward.11} parent=5 // pred_check
      %p769 = pneg %p768
    $region58: #{generator_forward.11} parent=5 // pred_check_branch
      %771 = sbr.rel (%p769) target = $region60
    $region59: #{generator_forward.11} parent=5 // pred_region
      %s772 = ssub.s32 %s12, 2
      // Predicated region
      $region61: #{generator_forward.11} parent=59 // pred_check
        %p773 = pneg %p130
      $region62: #{generator_forward.11} parent=59 // pred_check_branch
        %775 = sbr.rel (%p773) target = $region64
      $region63: #{generator_forward.11} parent=59 // pred_region
        %s776 = smul.u32 4, %s24
        %p777 = scmp.lt.s32.totalorder %s23, 3
        %s778 = scalar_select %p777, %s23, 3
        %p779 = scmp.lt.s32.totalorder %s776, 3
        %s780 = scalar_select %p779, %s776, 3
        %s781 = smul.addr %s778, 4
        %s782 = sadd.s32 %s780, %s781
        %s783 = smul.addr %s782, 8
        %s784 = scalar_lea.vmem %s3, %s783
      $region64: #{generator_forward.11} parent=59 // pred_fallthru
        _
    $region60: #{generator_forward.11} parent=5 // pred_fallthru
      _
  $region6: #{generator_forward.11} parent=0 // loop_footer
    %s16 = sadd.s32 1, %s12
  $region7: #{generator_forward.11} parent=0 // loop_footer_branch
    %11 = sbr.rel target = $region3
  $region8: #{generator_forward.11} parent=0 // loop_exit
    _

// kernel: generator_forward.14
$region0: #{generator_forward.14}
  #allocation0 [shape = 'u32[]', space=smem, size = 0x4, offset = 0x4, fixed_abs, tag = 'smem constant byte address 0x4 - core index']
  #allocation1 [shape = 'u32[144,128]{1,0:T(1,128)}', space=vmem, size = 0x12000, scoped, tag = 'internal scratch']
  %s0 = inlined_call_operand.vmem [shape: f32[4,128,32], index: 0, kind: input, shape index: {}]
  %s1 = inlined_call_operand.vmem [shape: f32[1,32], index: 1, kind: input, shape index: {}]
  %s2 = inlined_call_operand.vmem [shape: f32[1,32], index: 2, kind: input, shape index: {}]
  %s3 = inlined_call_operand.vmem [shape: bf16[4,128,32], index: 3, kind: output, shape index: {}]
  %s4 = sld [smem:[#allocation0]]
  $region45: #{generator_forward.14} parent=0
    _
  %s6 = ssub.s32 1, %s4
  %s7 = scalar_select 0, %s6, %s4
  loop: start=0, step=1, limit=6
  $region2: #{generator_forward.14} parent=0 // loop_pre_header
    _
  $region3: #{generator_forward.14} parent=0 // loop_header
    %s9 = sphi 0, %s13
    %p10 = scmp.ge.s32.totalorder %s9, 6
    %s16 = sphi 0, %s28
    %s17 = sphi 0, %s24
    %s18 = sphi 0, %s16
    %s19 = sphi 0, %s17
    %s20 = sphi 0, %s18
    %s21 = sphi 0, %s19
    %s33 = sphi 0, %s35
    %s36 = sphi 0, %s33
    %s37 = sphi 0, %s36
    %s53 = sphi 0, %s37
    %s57 = sphi 0, %s57
    %s59 = sphi 0, %s57
    %s60 = sphi 0, %s59
    %s74 = sphi 0, %s60
    %s78 = sphi 0, %s78
    %s80 = sphi 0, %s78
    %s81 = sphi 0, %s80
    %s95 = sphi 0, %s81
    %s103 = sphi 0, %s105
    %s106 = sphi 0, %s103
    %s107 = sphi 0, %s106
    %s123 = sphi 0, %s107
  $region4: #{generator_forward.14} parent=0 // loop_header_branch
    %12 = sbr.rel (%p10) target = $region8
  $region5: #{generator_forward.14} parent=0 // loop_body
    %s14 = ssub.s32 %s9, 1
    %s15 = ssub.s32 %s9, 2
    %s22 = sadd.s32 1, %s17
    %p23 = scmp.ge.s32.totalorder %s22, 1
    %s24 = scalar_select %p23, 0, %s22
    %s25 = sadd.s32 1, %s16
    %s26 = scalar_select %p23, %s25, %s16
    %p27 = scmp.ge.s32.totalorder %s26, 4
    %s28 = scalar_select %p27, 0, %s26
    %s29 = ssub.s32 %s16, %s28
    %s30 = ssub.s32 %s17, %s24
    %s31 = sor.u32 %s29, %s30
    %p32 = scmp.eq.s32.totalorder %s31, 0
    %s34 = sadd.s32 %s33, 1
    %s35 = scalar_select %p32, %s33, %s34
    %p38 = pneg %p32
    %p39 = scmp.eq.s32.totalorder %s9, 3
    %p40 = por %p38, %p39
    %p41 = scmp.ne.s32.totalorder %s33, %s36
    %p42 = scmp.eq.s32.totalorder %s9, 0
    %p43 = por %p41, %p42
    %p44 = scmp.ne.s32.totalorder %s33, %s36
    %p45 = scmp.eq.s32.totalorder %s14, 3
    %p46 = por %p44, %p45
    %p47 = scmp.ne.s32.totalorder %s36, %s37
    %p48 = scmp.eq.s32.totalorder %s14, 0
    %p49 = por %p47, %p48
    %p50 = scmp.ne.s32.totalorder %s36, %s37
    %p51 = scmp.eq.s32.totalorder %s15, 3
    %p52 = por %p50, %p51
    %p54 = scmp.ne.s32.totalorder %s37, %s53
    %p55 = scmp.eq.s32.totalorder %s15, 0
    %p56 = por %p54, %p55
    %s58 = sadd.s32 %s57, 1
    %p61 = scmp.eq.s32.totalorder %s9, 3
    %p62 = scmp.ne.s32.totalorder %s57, %s59
    %p63 = scmp.eq.s32.totalorder %s9, 0
    %p64 = por %p62, %p63
    %p65 = scmp.ne.s32.totalorder %s57, %s59
    %p66 = scmp.eq.s32.totalorder %s14, 3
    %p67 = por %p65, %p66
    %p68 = scmp.ne.s32.totalorder %s59, %s60
    %p69 = scmp.eq.s32.totalorder %s14, 0
    %p70 = por %p68, %p69
    %p71 = scmp.ne.s32.totalorder %s59, %s60
    %p72 = scmp.eq.s32.totalorder %s15, 3
    %p73 = por %p71, %p72
    %p75 = scmp.ne.s32.totalorder %s60, %s74
    %p76 = scmp.eq.s32.totalorder %s15, 0
    %p77 = por %p75, %p76
    %s79 = sadd.s32 %s78, 1
    %p82 = scmp.eq.s32.totalorder %s9, 3
    %p83 = scmp.ne.s32.totalorder %s78, %s80
    %p84 = scmp.eq.s32.totalorder %s9, 0
    %p85 = por %p83, %p84
    %p86 = scmp.ne.s32.totalorder %s78, %s80
    %p87 = scmp.eq.s32.totalorder %s14, 3
    %p88 = por %p86, %p87
    %p89 = scmp.ne.s32.totalorder %s80, %s81
    %p90 = scmp.eq.s32.totalorder %s14, 0
    %p91 = por %p89, %p90
    %p92 = scmp.ne.s32.totalorder %s80, %s81
    %p93 = scmp.eq.s32.totalorder %s15, 3
    %p94 = por %p92, %p93
    %p96 = scmp.ne.s32.totalorder %s81, %s95
    %p97 = scmp.eq.s32.totalorder %s15, 0
    %p98 = por %p96, %p97
    %s99 = ssub.s32 %s16, %s28
    %s100 = ssub.s32 %s17, %s24
    %s101 = sor.u32 %s99, %s100
    %p102 = scmp.eq.s32.totalorder %s101, 0
    %s104 = sadd.s32 %s103, 1
    %s105 = scalar_select %p102, %s103, %s104
    %p108 = pneg %p102
    %p109 = scmp.eq.s32.totalorder %s9, 3
    %p110 = por %p108, %p109
    %p111 = scmp.ne.s32.totalorder %s103, %s106
    %p112 = scmp.eq.s32.totalorder %s9, 0
    %p113 = por %p111, %p112
    %p114 = scmp.ne.s32.totalorder %s103, %s106
    %p115 = scmp.eq.s32.totalorder %s14, 3
    %p116 = por %p114, %p115
    %p117 = scmp.ne.s32.totalorder %s106, %s107
    %p118 = scmp.eq.s32.totalorder %s14, 0
    %p119 = por %p117, %p118
    %p120 = scmp.ne.s32.totalorder %s106, %s107
    %p121 = scmp.eq.s32.totalorder %s15, 3
    %p122 = por %p120, %p121
    %p124 = scmp.ne.s32.totalorder %s107, %s123
    %p125 = scmp.eq.s32.totalorder %s15, 0
    %p126 = por %p124, %p125
    %p127 = scmp.le.s32.totalorder 1, %s9
    %p128 = scmp.lt.s32.totalorder %s9, 5
    %p129 = pnand %p127, %p128
    %p130 = pneg %p129
    // Predicated region
    $region9: #{generator_forward.14} parent=5 // pred_check
      _
    $region10: #{generator_forward.14} parent=5 // pred_check_branch
      %132 = sbr.rel (%p129) target = $region12
    $region11: #{generator_forward.14} parent=5 // pred_region
      %s133 = ssub.s32 %s9, 1
      // Predicated region
      $region13: #{generator_forward.14} parent=11 // pred_check
        %p134 = pneg %p70
      $region14: #{generator_forward.14} parent=11 // pred_check_branch
        %136 = sbr.rel (%p134) target = $region16
      $region15: #{generator_forward.14} parent=11 // pred_region
        _
      $region16: #{generator_forward.14} parent=11 // pred_fallthru
        _
      // Predicated region
      $region17: #{generator_forward.14} parent=11 // pred_check
        %p137 = pneg %p91
      $region18: #{generator_forward.14} parent=11 // pred_check_branch
        %139 = sbr.rel (%p137) target = $region20
      $region19: #{generator_forward.14} parent=11 // pred_region
        _
      $region20: #{generator_forward.14} parent=11 // pred_fallthru
        _
    $region12: #{generator_forward.14} parent=5 // pred_fallthru
      _
    %p140 = scmp.lt.s32.totalorder %s9, 4
    // Predicated region
    $region21: #{generator_forward.14} parent=5 // pred_check
      %p141 = pneg %p140
    $region22: #{generator_forward.14} parent=5 // pred_check_branch
      %143 = sbr.rel (%p141) target = $region24
    $region23: #{generator_forward.14} parent=5 // pred_region
      // Predicated region
      $region25: #{generator_forward.14} parent=23 // pred_check
        %p144 = pneg %p43
      $region26: #{generator_forward.14} parent=23 // pred_check_branch
        %146 = sbr.rel (%p144) target = $region28
      $region27: #{generator_forward.14} parent=23 // pred_region
        %s147 = smul.u32 16, %s17
        %p148 = scmp.lt.s32.totalorder %s16, 3
        %s149 = scalar_select %p148, %s16, 3
        %p150 = scmp.lt.s32.totalorder %s147, 15
        %s151 = scalar_select %p150, %s147, 15
        %s152 = smul.addr %s149, 16
        %s153 = sadd.s32 %s151, %s152
        %s154 = smul.addr %s153, 8
        %s155 = scalar_lea.vmem %s0, %s154
        %s156 = smul.u32 16, %s17
      $region28: #{generator_forward.14} parent=23 // pred_fallthru
        _
    $region24: #{generator_forward.14} parent=5 // pred_fallthru
      _
    %p157 = scmp.le.s32.totalorder 1, %s9
    %p158 = scmp.lt.s32.totalorder %s9, 5
    %p159 = pnand %p157, %p158
    %p160 = pneg %p159
    // Predicated region
    $region29: #{generator_forward.14} parent=5 // pred_check
      _
    $region30: #{generator_forward.14} parent=5 // pred_check_branch
      %162 = sbr.rel (%p159) target = $region32
    $region31: #{generator_forward.14} parent=5 // pred_region
      %s163 = ssub.s32 %s9, 1
      %s164 = smul.u32 16, %s19
      %p165 = scmp.lt.s32.totalorder %s18, 3
      %s166 = scalar_select %p165, %s18, 3
      %p167 = scmp.lt.s32.totalorder %s164, 15
      %s168 = scalar_select %p167, %s164, 15
      %s169 = smul.addr %s166, 16
      %s170 = sadd.s32 %s168, %s169
      %s171 = smul.addr %s170, 8
      %s172 = scalar_lea.vmem %s0, %s171
      %p173 = pneg %p49
      %p174 = pneg %p46
      %p175 = pneg %p70
      %p176 = pneg %p67
      %p177 = pneg %p91
      %p178 = pneg %p88
      %p179 = pneg %p119
      %p180 = pneg %p116
      %s181 = smul.u32 16, %s19
      %p182 = scmp.lt.s32.totalorder %s18, 3
      %s183 = scalar_select %p182, %s18, 3
      %p184 = scmp.lt.s32.totalorder %s181, 15
      %s185 = scalar_select %p184, %s181, 15
      %s186 = smul.addr %s183, 16
      %s187 = sadd.s32 %s185, %s186
      %s188 = smul.addr %s187, 4
      %s189 = scalar_lea.vmem %s3, %s188
      %s190 = smul.u32 16, %s19
      %p191 = scmp.lt.s32.totalorder %s18, 3
      %s192 = scalar_select %p191, %s18, 3
      %p193 = scmp.lt.s32.totalorder %s190, 15
      %s194 = scalar_select %p193, %s190, 15
      %s195 = smul.addr %s192, 16
      %s196 = sadd.s32 %s194, %s195
      %s197 = smul.addr %s196, 8
      %s198 = scalar_lea.vmem %s0, %s197
      %s199 = smul.u32 16, %s19
      %s200 = smul.u32 16, %s19
      %p201 = scmp.lt.s32.totalorder %s18, 3
      %s202 = scalar_select %p201, %s18, 3
      %p203 = scmp.lt.s32.totalorder %s200, 15
      %s204 = scalar_select %p203, %s200, 15
      %s205 = smul.addr %s202, 16
      %s206 = sadd.s32 %s204, %s205
      %s207 = smul.addr %s206, 4
      %s208 = scalar_lea.vmem %s3, %s207
      %s209 = smul.u32 16, %s19
      %v210 = vld [vmem:[%s198] sm:$0xff]
      %v211 = vld [vmem:[%s198 + $0x8] sm:$0xff]
      %v212 = vld [vmem:[%s198 + $0x10] sm:$0xff]
      %v213 = vld [vmem:[%s198 + $0x18] sm:$0xff]
      %v214 = vld [vmem:[%s198 + $0x20] sm:$0xff]
      %v215 = vld [vmem:[%s198 + $0x28] sm:$0xff]
      %v216 = vld [vmem:[%s198 + $0x30] sm:$0xff]
      %v217 = vld [vmem:[%s198 + $0x38] sm:$0xff]
      %v218 = vld [vmem:[%s198 + $0x40] sm:$0xff]
      %v219 = vld [vmem:[%s198 + $0x48] sm:$0xff]
      %v220 = vld [vmem:[%s198 + $0x50] sm:$0xff]
      %v221 = vld [vmem:[%s198 + $0x58] sm:$0xff]
      %v222 = vld [vmem:[%s198 + $0x60] sm:$0xff]
      %v223 = vld [vmem:[%s198 + $0x68] sm:$0xff]
      %v224 = vld [vmem:[%s198 + $0x70] sm:$0xff]
      %v225 = vld [vmem:[%s198 + $0x78] sm:$0xff]
      %v226 = vld [vmem:[%s1] sm:$0x1]
      %v228 = vlaneseq
      %v229 = vshrl.u32 %v228, 7
      %v230 = vsub.s32 0, %v229
      %v231 = vrot.slane %v226, %v230
      %v233 = vsub.f32 %v210, %v231
      %v234 = vsub.f32 %v211, %v231
      %v235 = vsub.f32 %v212, %v231
      %v236 = vsub.f32 %v213, %v231
      %v237 = vsub.f32 %v214, %v231
      %v238 = vsub.f32 %v215, %v231
      %v239 = vsub.f32 %v216, %v231
      %v240 = vsub.f32 %v217, %v231
      %v241 = vsub.f32 %v218, %v231
      %v242 = vsub.f32 %v219, %v231
      %v243 = vsub.f32 %v220, %v231
      %v244 = vsub.f32 %v221, %v231
      %v245 = vsub.f32 %v222, %v231
      %v246 = vsub.f32 %v223, %v231
      %v247 = vsub.f32 %v224, %v231
      %v248 = vsub.f32 %v225, %v231
      %v249 = vld [vmem:[%s2] sm:$0x1]
      %v251 = vlaneseq
      %v252 = vshrl.u32 %v251, 7
      %v253 = vsub.s32 0, %v252
      %v254 = vrot.slane %v249, %v253
      %v256 = vmul.f32 %v233, %v254
      %v257 = vmul.f32 %v234, %v254
      %v258 = vmul.f32 %v235, %v254
      %v259 = vmul.f32 %v236, %v254
      %v260 = vmul.f32 %v237, %v254
      %v261 = vmul.f32 %v238, %v254
      %v262 = vmul.f32 %v239, %v254
      %v263 = vmul.f32 %v240, %v254
      %v264 = vmul.f32 %v241, %v254
      %v265 = vmul.f32 %v242, %v254
      %v266 = vmul.f32 %v243, %v254
      %v267 = vmul.f32 %v244, %v254
      %v268 = vmul.f32 %v245, %v254
      %v269 = vmul.f32 %v246, %v254
      %v270 = vmul.f32 %v247, %v254
      %v271 = vmul.f32 %v248, %v254
      %v272 = vmax.f32 %v256, 0.0
      %v273 = vmax.f32 %v257, 0.0
      %v274 = vmax.f32 %v258, 0.0
      %v275 = vmax.f32 %v259, 0.0
      %v276 = vmax.f32 %v260, 0.0
      %v277 = vmax.f32 %v261, 0.0
      %v278 = vmax.f32 %v262, 0.0
      %v279 = vmax.f32 %v263, 0.0
      %v280 = vmax.f32 %v264, 0.0
      %v281 = vmax.f32 %v265, 0.0
      %v282 = vmax.f32 %v266, 0.0
      %v283 = vmax.f32 %v267, 0.0
      %v284 = vmax.f32 %v268, 0.0
      %v285 = vmax.f32 %v269, 0.0
      %v286 = vmax.f32 %v270, 0.0
      %v287 = vmax.f32 %v271, 0.0
      %v288 = vpack.c.bf16 %v273, %v272
      %v289 = vpack.c.bf16 %v275, %v274
      %v290 = vpack.c.bf16 %v277, %v276
      %v291 = vpack.c.bf16 %v279, %v278
      %v292 = vpack.c.bf16 %v281, %v280
      %v293 = vpack.c.bf16 %v283, %v282
      %v294 = vpack.c.bf16 %v285, %v284
      %v295 = vpack.c.bf16 %v287, %v286
      %v304 = vunpack.c.l.b16 %v288
      %v305 = vunpack.c.h.b16 %v288
      %v306 = vunpack.c.l.b16 %v289
      %v307 = vunpack.c.h.b16 %v289
      %v308 = vunpack.c.l.b16 %v290
      %v309 = vunpack.c.h.b16 %v290
      %v310 = vunpack.c.l.b16 %v291
      %v311 = vunpack.c.h.b16 %v291
      %v312 = vunpack.c.l.b16 %v292
      %v313 = vunpack.c.h.b16 %v292
      %v314 = vunpack.c.l.b16 %v293
      %v315 = vunpack.c.h.b16 %v293
      %v316 = vunpack.c.l.b16 %v294
      %v317 = vunpack.c.h.b16 %v294
      %v318 = vunpack.c.l.b16 %v295
      %v319 = vunpack.c.h.b16 %v295
      %v320 = vpack.c.b16 %v304, %v304
      %v321 = vpack.c.b16 %v305, %v305
      %v322 = vpack.c.b16 %v306, %v306
      %v323 = vpack.c.b16 %v307, %v307
      %v324 = vpack.c.b16 %v308, %v308
      %v325 = vpack.c.b16 %v309, %v309
      %v326 = vpack.c.b16 %v310, %v310
      %v327 = vpack.c.b16 %v311, %v311
      %v328 = vpack.c.b16 %v312, %v312
      %v329 = vpack.c.b16 %v313, %v313
      %v330 = vpack.c.b16 %v314, %v314
      %v331 = vpack.c.b16 %v315, %v315
      %v332 = vpack.c.b16 %v316, %v316
      %v333 = vpack.c.b16 %v317, %v317
      %v334 = vpack.c.b16 %v318, %v318
      %v335 = vpack.c.b16 %v319, %v319
      %vm352 = vcmask 257024
      %353 = vst.msk [vmem:[%s208] sm:$0xf] %vm352, %v320
      %354 = vst.msk [vmem:[%s208 + $0x4] sm:$0xf] %vm352, %v321
      %355 = vst.msk [vmem:[%s208 + $0x8] sm:$0xf] %vm352, %v322
      %356 = vst.msk [vmem:[%s208 + $0xc] sm:$0xf] %vm352, %v323
      %357 = vst.msk [vmem:[%s208 + $0x10] sm:$0xf] %vm352, %v324
      %358 = vst.msk [vmem:[%s208 + $0x14] sm:$0xf] %vm352, %v325
      %359 = vst.msk [vmem:[%s208 + $0x18] sm:$0xf] %vm352, %v326
      %360 = vst.msk [vmem:[%s208 + $0x1c] sm:$0xf] %vm352, %v327
      %361 = vst.msk [vmem:[%s208 + $0x20] sm:$0xf] %vm352, %v328
      %362 = vst.msk [vmem:[%s208 + $0x24] sm:$0xf] %vm352, %v329
      %363 = vst.msk [vmem:[%s208 + $0x28] sm:$0xf] %vm352, %v330
      %364 = vst.msk [vmem:[%s208 + $0x2c] sm:$0xf] %vm352, %v331
      %365 = vst.msk [vmem:[%s208 + $0x30] sm:$0xf] %vm352, %v332
      %366 = vst.msk [vmem:[%s208 + $0x34] sm:$0xf] %vm352, %v333
      %367 = vst.msk [vmem:[%s208 + $0x38] sm:$0xf] %vm352, %v334
      %368 = vst.msk [vmem:[%s208 + $0x3c] sm:$0xf] %vm352, %v335
      %s369 = smul.u32 16, %s19
      %p370 = scmp.lt.s32.totalorder %s18, 3
      %s371 = scalar_select %p370, %s18, 3
      %p372 = scmp.lt.s32.totalorder %s369, 15
      %s373 = scalar_select %p372, %s369, 15
      %s374 = smul.addr %s371, 16
      %s375 = sadd.s32 %s373, %s374
      %s376 = smul.addr %s375, 4
      %s377 = scalar_lea.vmem %s3, %s376
      // Predicated region
      $region33: #{generator_forward.14} parent=31 // pred_check
        %p378 = pneg %p116
      $region34: #{generator_forward.14} parent=31 // pred_check_branch
        %380 = sbr.rel (%p378) target = $region36
      $region35: #{generator_forward.14} parent=31 // pred_region
        %s381 = smul.u32 16, %s19
      $region36: #{generator_forward.14} parent=31 // pred_fallthru
        _
    $region32: #{generator_forward.14} parent=5 // pred_fallthru
      _
    %p382 = scmp.le.s32.totalorder 2, %s9
    // Predicated region
    $region37: #{generator_forward.14} parent=5 // pred_check
      %p383 = pneg %p382
    $region38: #{generator_forward.14} parent=5 // pred_check_branch
      %385 = sbr.rel (%p383) target = $region40
    $region39: #{generator_forward.14} parent=5 // pred_region
      %s386 = ssub.s32 %s9, 2
      // Predicated region
      $region41: #{generator_forward.14} parent=39 // pred_check
        %p387 = pneg %p122
      $region42: #{generator_forward.14} parent=39 // pred_check_branch
        %389 = sbr.rel (%p387) target = $region44
      $region43: #{generator_forward.14} parent=39 // pred_region
        %s390 = smul.u32 16, %s21
        %p391 = scmp.lt.s32.totalorder %s20, 3
        %s392 = scalar_select %p391, %s20, 3
        %p393 = scmp.lt.s32.totalorder %s390, 15
        %s394 = scalar_select %p393, %s390, 15
        %s395 = smul.addr %s392, 16
        %s396 = sadd.s32 %s394, %s395
        %s397 = smul.addr %s396, 4
        %s398 = scalar_lea.vmem %s3, %s397
      $region44: #{generator_forward.14} parent=39 // pred_fallthru
        _
    $region40: #{generator_forward.14} parent=5 // pred_fallthru
      _
  $region6: #{generator_forward.14} parent=0 // loop_footer
    %s13 = sadd.s32 1, %s9
  $region7: #{generator_forward.14} parent=0 // loop_footer_branch
    %8 = sbr.rel target = $region3
  $region8: #{generator_forward.14} parent=0 // loop_exit
    _

// kernel: generator_forward.13
$region0: #{generator_forward.13}
  #allocation0 [shape = 'u32[]', space=smem, size = 0x4, offset = 0x4, fixed_abs, tag = 'smem constant byte address 0x4 - core index']
  #allocation1 [shape = 'u32[144,128]{1,0:T(1,128)}', space=vmem, size = 0x12000, scoped, tag = 'internal scratch']
  %s0 = inlined_call_operand.vmem [shape: bf16[4,128,256], index: 0, kind: input, shape index: {}]
  %s1 = inlined_call_operand.vmem [shape: bf16[4,256,32], index: 1, kind: input, shape index: {}]
  %s2 = inlined_call_operand.vmem [shape: f32[1,32], index: 2, kind: input, shape index: {}]
  %s3 = inlined_call_operand.vmem [shape: f32[4,128,32], index: 3, kind: output, shape index: {0}]
  %s4 = inlined_call_operand.vmem [shape: f32[1,32], index: 4, kind: output, shape index: {1}]
  %s5 = inlined_call_operand.vmem [shape: f32[1,32], index: 5, kind: output, shape index: {2}]
  %6 = xla_tuple %s3, %s4, %s5
  %s7 = sld [smem:[#allocation0]]
  $region65: #{generator_forward.13} parent=0
    _
  %s9 = ssub.s32 1, %s7
  %s10 = scalar_select 0, %s9, %s7
  loop: start=0, step=1, limit=6
  $region2: #{generator_forward.13} parent=0 // loop_pre_header
    _
  $region3: #{generator_forward.13} parent=0 // loop_header
    %s12 = sphi 0, %s16
    %p13 = scmp.ge.s32.totalorder %s12, 6
    %s19 = sphi 0, %s31
    %s20 = sphi 0, %s27
    %s21 = sphi 0, %s19
    %s22 = sphi 0, %s20
    %s23 = sphi 0, %s21
    %s24 = sphi 0, %s22
    %s36 = sphi 0, %s38
    %s39 = sphi 0, %s36
    %s40 = sphi 0, %s39
    %s56 = sphi 0, %s40
    %s62 = sphi 0, %s64
    %s65 = sphi 0, %s62
    %s66 = sphi 0, %s65
    %s82 = sphi 0, %s66
    %s86 = sphi 0, %s86
    %s88 = sphi 0, %s86
    %s89 = sphi 0, %s88
    %s103 = sphi 0, %s89
    %s111 = sphi 0, %s113
    %s114 = sphi 0, %s111
    %s115 = sphi 0, %s114
    %s131 = sphi 0, %s115
    %s135 = sphi 0, %s135
    %s137 = sphi 0, %s135
    %s138 = sphi 0, %s137
    %s152 = sphi 0, %s138
    %s156 = sphi 0, %s156
    %s158 = sphi 0, %s156
    %s159 = sphi 0, %s158
    %s173 = sphi 0, %s159
  $region4: #{generator_forward.13} parent=0 // loop_header_branch
    %15 = sbr.rel (%p13) target = $region8
  $region5: #{generator_forward.13} parent=0 // loop_body
    %s17 = ssub.s32 %s12, 1
    %s18 = ssub.s32 %s12, 2
    %s25 = sadd.s32 1, %s20
    %p26 = scmp.ge.s32.totalorder %s25, 1
    %s27 = scalar_select %p26, 0, %s25
    %s28 = sadd.s32 1, %s19
    %s29 = scalar_select %p26, %s28, %s19
    %p30 = scmp.ge.s32.totalorder %s29, 4
    %s31 = scalar_select %p30, 0, %s29
    %s32 = ssub.s32 %s19, %s31
    %s33 = ssub.s32 %s20, %s27
    %s34 = sor.u32 %s32, %s33
    %p35 = scmp.eq.s32.totalorder %s34, 0
    %s37 = sadd.s32 %s36, 1
    %s38 = scalar_select %p35, %s36, %s37
    %p41 = pneg %p35
    %p42 = scmp.eq.s32.totalorder %s12, 3
    %p43 = por %p41, %p42
    %p44 = scmp.ne.s32.totalorder %s36, %s39
    %p45 = scmp.eq.s32.totalorder %s12, 0
    %p46 = por %p44, %p45
    %p47 = scmp.ne.s32.totalorder %s36, %s39
    %p48 = scmp.eq.s32.totalorder %s17, 3
    %p49 = por %p47, %p48
    %p50 = scmp.ne.s32.totalorder %s39, %s40
    %p51 = scmp.eq.s32.totalorder %s17, 0
    %p52 = por %p50, %p51
    %p53 = scmp.ne.s32.totalorder %s39, %s40
    %p54 = scmp.eq.s32.totalorder %s18, 3
    %p55 = por %p53, %p54
    %p57 = scmp.ne.s32.totalorder %s40, %s56
    %p58 = scmp.eq.s32.totalorder %s18, 0
    %p59 = por %p57, %p58
    %s60 = ssub.s32 %s19, %s31
    %p61 = scmp.eq.s32.totalorder %s60, 0
    %s63 = sadd.s32 %s62, 1
    %s64 = scalar_select %p61, %s62, %s63
    %p67 = pneg %p61
    %p68 = scmp.eq.s32.totalorder %s12, 3
    %p69 = por %p67, %p68
    %p70 = scmp.ne.s32.totalorder %s62, %s65
    %p71 = scmp.eq.s32.totalorder %s12, 0
    %p72 = por %p70, %p71
    %p73 = scmp.ne.s32.totalorder %s62, %s65
    %p74 = scmp.eq.s32.totalorder %s17, 3
    %p75 = por %p73, %p74
    %p76 = scmp.ne.s32.totalorder %s65, %s66
    %p77 = scmp.eq.s32.totalorder %s17, 0
    %p78 = por %p76, %p77
    %p79 = scmp.ne.s32.totalorder %s65, %s66
    %p80 = scmp.eq.s32.totalorder %s18, 3
    %p81 = por %p79, %p80
    %p83 = scmp.ne.s32.totalorder %s66, %s82
    %p84 = scmp.eq.s32.totalorder %s18, 0
    %p85 = por %p83, %p84
    %s87 = sadd.s32 %s86, 1
    %p90 = scmp.eq.s32.totalorder %s12, 3
    %p91 = scmp.ne.s32.totalorder %s86, %s88
    %p92 = scmp.eq.s32.totalorder %s12, 0
    %p93 = por %p91, %p92
    %p94 = scmp.ne.s32.totalorder %s86, %s88
    %p95 = scmp.eq.s32.totalorder %s17, 3
    %p96 = por %p94, %p95
    %p97 = scmp.ne.s32.totalorder %s88, %s89
    %p98 = scmp.eq.s32.totalorder %s17, 0
    %p99 = por %p97, %p98
    %p100 = scmp.ne.s32.totalorder %s88, %s89
    %p101 = scmp.eq.s32.totalorder %s18, 3
    %p102 = por %p100, %p101
    %p104 = scmp.ne.s32.totalorder %s89, %s103
    %p105 = scmp.eq.s32.totalorder %s18, 0
    %p106 = por %p104, %p105
    %s107 = ssub.s32 %s19, %s31
    %s108 = ssub.s32 %s20, %s27
    %s109 = sor.u32 %s107, %s108
    %p110 = scmp.eq.s32.totalorder %s109, 0
    %s112 = sadd.s32 %s111, 1
    %s113 = scalar_select %p110, %s111, %s112
    %p116 = pneg %p110
    %p117 = scmp.eq.s32.totalorder %s12, 3
    %p118 = por %p116, %p117
    %p119 = scmp.ne.s32.totalorder %s111, %s114
    %p120 = scmp.eq.s32.totalorder %s12, 0
    %p121 = por %p119, %p120
    %p122 = scmp.ne.s32.totalorder %s111, %s114
    %p123 = scmp.eq.s32.totalorder %s17, 3
    %p124 = por %p122, %p123
    %p125 = scmp.ne.s32.totalorder %s114, %s115
    %p126 = scmp.eq.s32.totalorder %s17, 0
    %p127 = por %p125, %p126
    %p128 = scmp.ne.s32.totalorder %s114, %s115
    %p129 = scmp.eq.s32.totalorder %s18, 3
    %p130 = por %p128, %p129
    %p132 = scmp.ne.s32.totalorder %s115, %s131
    %p133 = scmp.eq.s32.totalorder %s18, 0
    %p134 = por %p132, %p133
    %s136 = sadd.s32 %s135, 1
    %p139 = scmp.eq.s32.totalorder %s12, 3
    %p140 = scmp.ne.s32.totalorder %s135, %s137
    %p141 = scmp.eq.s32.totalorder %s12, 0
    %p142 = por %p140, %p141
    %p143 = scmp.ne.s32.totalorder %s135, %s137
    %p144 = scmp.eq.s32.totalorder %s17, 3
    %p145 = por %p143, %p144
    %p146 = scmp.ne.s32.totalorder %s137, %s138
    %p147 = scmp.eq.s32.totalorder %s17, 0
    %p148 = por %p146, %p147
    %p149 = scmp.ne.s32.totalorder %s137, %s138
    %p150 = scmp.eq.s32.totalorder %s18, 3
    %p151 = por %p149, %p150
    %p153 = scmp.ne.s32.totalorder %s138, %s152
    %p154 = scmp.eq.s32.totalorder %s18, 0
    %p155 = por %p153, %p154
    %s157 = sadd.s32 %s156, 1
    %p160 = scmp.eq.s32.totalorder %s12, 3
    %p161 = scmp.ne.s32.totalorder %s156, %s158
    %p162 = scmp.eq.s32.totalorder %s12, 0
    %p163 = por %p161, %p162
    %p164 = scmp.ne.s32.totalorder %s156, %s158
    %p165 = scmp.eq.s32.totalorder %s17, 3
    %p166 = por %p164, %p165
    %p167 = scmp.ne.s32.totalorder %s158, %s159
    %p168 = scmp.eq.s32.totalorder %s17, 0
    %p169 = por %p167, %p168
    %p170 = scmp.ne.s32.totalorder %s158, %s159
    %p171 = scmp.eq.s32.totalorder %s18, 3
    %p172 = por %p170, %p171
    %p174 = scmp.ne.s32.totalorder %s159, %s173
    %p175 = scmp.eq.s32.totalorder %s18, 0
    %p176 = por %p174, %p175
    %p177 = scmp.le.s32.totalorder 1, %s12
    %p178 = scmp.lt.s32.totalorder %s12, 5
    %p179 = pnand %p177, %p178
    %p180 = pneg %p179
    // Predicated region
    $region9: #{generator_forward.13} parent=5 // pred_check
      _
    $region10: #{generator_forward.13} parent=5 // pred_check_branch
      %182 = sbr.rel (%p179) target = $region12
    $region11: #{generator_forward.13} parent=5 // pred_region
      %s183 = ssub.s32 %s12, 1
      // Predicated region
      $region13: #{generator_forward.13} parent=11 // pred_check
        %p184 = pneg %p99
      $region14: #{generator_forward.13} parent=11 // pred_check_branch
        %186 = sbr.rel (%p184) target = $region16
      $region15: #{generator_forward.13} parent=11 // pred_region
        _
      $region16: #{generator_forward.13} parent=11 // pred_fallthru
        _
    $region12: #{generator_forward.13} parent=5 // pred_fallthru
      _
    %p187 = scmp.lt.s32.totalorder %s12, 4
    // Predicated region
    $region17: #{generator_forward.13} parent=5 // pred_check
      %p188 = pneg %p187
    $region18: #{generator_forward.13} parent=5 // pred_check_branch
      %190 = sbr.rel (%p188) target = $region20
    $region19: #{generator_forward.13} parent=5 // pred_region
      // Predicated region
      $region21: #{generator_forward.13} parent=19 // pred_check
        %p191 = pneg %p46
      $region22: #{generator_forward.13} parent=19 // pred_check_branch
        %193 = sbr.rel (%p191) target = $region24
      $region23: #{generator_forward.13} parent=19 // pred_region
        %s194 = smul.u32 16, %s20
        %p195 = scmp.lt.s32.totalorder %s19, 3
        %s196 = scalar_select %p195, %s19, 3
        %p197 = scmp.lt.s32.totalorder %s194, 15
        %s198 = scalar_select %p197, %s194, 15
        %s199 = smul.addr %s198, 2
        %s200 = smul.addr %s196, 32
        %s201 = sadd.s32 %s199, %s200
        %s202 = smul.addr %s201, 4
        %s203 = scalar_lea.vmem %s0, %s202
        %s204 = smul.u32 16, %s20
      $region24: #{generator_forward.13} parent=19 // pred_fallthru
        _
      // Predicated region
      $region25: #{generator_forward.13} parent=19 // pred_check
        %p205 = pneg %p72
      $region26: #{generator_forward.13} parent=19 // pred_check_branch
        %207 = sbr.rel (%p205) target = $region28
      $region27: #{generator_forward.13} parent=19 // pred_region
        %p208 = scmp.lt.s32.totalorder %s19, 3
        %s209 = scalar_select %p208, %s19, 3
        %s210 = smul.addr %s209, 32
        %s211 = smul.addr %s210, 4
        %s212 = scalar_lea.vmem %s1, %s211
      $region28: #{generator_forward.13} parent=19 // pred_fallthru
        _
    $region20: #{generator_forward.13} parent=5 // pred_fallthru
      _
    %p213 = scmp.le.s32.totalorder 1, %s12
    %p214 = scmp.lt.s32.totalorder %s12, 5
    %p215 = pnand %p213, %p214
    %p216 = pneg %p215
    // Predicated region
    $region29: #{generator_forward.13} parent=5 // pred_check
      _
    $region30: #{generator_forward.13} parent=5 // pred_check_branch
      %218 = sbr.rel (%p215) target = $region32
    $region31: #{generator_forward.13} parent=5 // pred_region
      %s219 = ssub.s32 %s12, 1
      %s220 = smul.u32 16, %s22
      %p221 = scmp.lt.s32.totalorder %s21, 3
      %s222 = scalar_select %p221, %s21, 3
      %p223 = scmp.lt.s32.totalorder %s220, 15
      %s224 = scalar_select %p223, %s220, 15
      %s225 = smul.addr %s224, 2
      %s226 = smul.addr %s222, 32
      %s227 = sadd.s32 %s225, %s226
      %s228 = smul.addr %s227, 4
      %s229 = scalar_lea.vmem %s0, %s228
      %p230 = pneg %p52
      %p231 = pneg %p49
      %p232 = scmp.lt.s32.totalorder %s21, 3
      %s233 = scalar_select %p232, %s21, 3
      %s234 = smul.addr %s233, 32
      %s235 = smul.addr %s234, 4
      %s236 = scalar_lea.vmem %s1, %s235
      %p237 = pneg %p78
      %p238 = pneg %p75
      %p239 = pneg %p99
      %p240 = pneg %p96
      %p241 = pneg %p127
      %p242 = pneg %p124
      %s243 = smul.u32 16, %s22
      %p244 = scmp.lt.s32.totalorder %s21, 3
      %s245 = scalar_select %p244, %s21, 3
      %p246 = scmp.lt.s32.totalorder %s243, 15
      %s247 = scalar_select %p246, %s243, 15
      %s248 = smul.addr %s245, 16
      %s249 = sadd.s32 %s247, %s248
      %s250 = smul.addr %s249, 8
      %s251 = scalar_lea.vmem %s3, %s250
      %p252 = pneg %p148
      %p253 = pneg %p145
      %p254 = pneg %p169
      %p255 = pneg %p166
      %s256 = smul.u32 16, %s22
      %p257 = scmp.lt.s32.totalorder %s21, 3
      %s258 = scalar_select %p257, %s21, 3
      %p259 = scmp.lt.s32.totalorder %s256, 15
      %s260 = scalar_select %p259, %s256, 15
      %s261 = smul.addr %s260, 2
      %s262 = smul.addr %s258, 32
      %s263 = sadd.s32 %s261, %s262
      %s264 = smul.addr %s263, 4
      %s265 = scalar_lea.vmem %s0, %s264
      %s266 = smul.u32 16, %s22
      %p267 = scmp.lt.s32.totalorder %s21, 3
      %s268 = scalar_select %p267, %s21, 3
      %s269 = smul.addr %s268, 32
      %s270 = smul.addr %s269, 4
      %s271 = scalar_lea.vmem %s1, %s270
      %s272 = smul.u32 16, %s22
      %p273 = scmp.lt.s32.totalorder %s21, 3
      %s274 = scalar_select %p273, %s21, 3
      %p275 = scmp.lt.s32.totalorder %s272, 15
      %s276 = scalar_select %p275, %s272, 15
      %s277 = smul.addr %s274, 16
      %s278 = sadd.s32 %s276, %s277
      %s279 = smul.addr %s278, 8
      %s280 = scalar_lea.vmem %s3, %s279
      %s281 = smul.u32 16, %s22
      %p283 = scmp.eq.s32.totalorder %s21, 0
      %p284 = scmp.eq.s32.totalorder %s22, 0
      %p285 = pnand %p283, %p284
      %p286 = pneg %p285
      // Predicated region
      $region33: #{generator_forward.13} parent=31 // pred_check
        _
      $region34: #{generator_forward.13} parent=31 // pred_check_branch
        %288 = sbr.rel (%p285) target = $region36
      $region35: #{generator_forward.13} parent=31 // pred_region
        %vm289 = vcmask 253952
        %290 = vst.msk [vmem:[%s4] sm:$0x1] %vm289, 0.0
        %291 = vst.msk [vmem:[%s5] sm:$0x1] %vm289, 0.0
      $region36: #{generator_forward.13} parent=31 // pred_fallthru
        _
      %v292 = vld [vmem:[%s265] sm:$0xff]
      %v293 = vld [vmem:[%s265 + $0x8] sm:$0xff]
      %v294 = vld [vmem:[%s265 + $0x10] sm:$0xff]
      %v295 = vld [vmem:[%s265 + $0x18] sm:$0xff]
      %v296 = vld [vmem:[%s265 + $0x20] sm:$0xff]
      %v297 = vld [vmem:[%s265 + $0x28] sm:$0xff]
      %v298 = vld [vmem:[%s265 + $0x30] sm:$0xff]
      %v299 = vld [vmem:[%s265 + $0x38] sm:$0xff]
      %v300 = vld [vmem:[%s265 + $0x40] sm:$0xff]
      %v301 = vld [vmem:[%s265 + $0x48] sm:$0xff]
      %v302 = vld [vmem:[%s265 + $0x50] sm:$0xff]
      %v303 = vld [vmem:[%s265 + $0x58] sm:$0xff]
      %v304 = vld [vmem:[%s265 + $0x60] sm:$0xff]
      %v305 = vld [vmem:[%s265 + $0x68] sm:$0xff]
      %v306 = vld [vmem:[%s265 + $0x70] sm:$0xff]
      %v307 = vld [vmem:[%s265 + $0x78] sm:$0xff]
      %v308 = vld [vmem:[%s271] sm:$0xf]
      %v309 = vld [vmem:[%s271 + $0x4] sm:$0xf]
      %v310 = vld [vmem:[%s271 + $0x8] sm:$0xf]
      %v311 = vld [vmem:[%s271 + $0xc] sm:$0xf]
      %v312 = vld [vmem:[%s271 + $0x10] sm:$0xf]
      %v313 = vld [vmem:[%s271 + $0x14] sm:$0xf]
      %v314 = vld [vmem:[%s271 + $0x18] sm:$0xf]
      %v315 = vld [vmem:[%s271 + $0x1c] sm:$0xf]
      %v316 = vld [vmem:[%s271 + $0x20] sm:$0xf]
      %v317 = vld [vmem:[%s271 + $0x24] sm:$0xf]
      %v318 = vld [vmem:[%s271 + $0x28] sm:$0xf]
      %v319 = vld [vmem:[%s271 + $0x2c] sm:$0xf]
      %v320 = vld [vmem:[%s271 + $0x30] sm:$0xf]
      %v321 = vld [vmem:[%s271 + $0x34] sm:$0xf]
      %v322 = vld [vmem:[%s271 + $0x38] sm:$0xf]
      %v323 = vld [vmem:[%s271 + $0x3c] sm:$0xf]
      %v324 = vld [vmem:[%s271 + $0x40] sm:$0xf]
      %v325 = vld [vmem:[%s271 + $0x44] sm:$0xf]
      %v326 = vld [vmem:[%s271 + $0x48] sm:$0xf]
      %v327 = vld [vmem:[%s271 + $0x4c] sm:$0xf]
      %v328 = vld [vmem:[%s271 + $0x50] sm:$0xf]
      %v329 = vld [vmem:[%s271 + $0x54] sm:$0xf]
      %v330 = vld [vmem:[%s271 + $0x58] sm:$0xf]
      %v331 = vld [vmem:[%s271 + $0x5c] sm:$0xf]
      %v332 = vld [vmem:[%s271 + $0x60] sm:$0xf]
      %v333 = vld [vmem:[%s271 + $0x64] sm:$0xf]
      %v334 = vld [vmem:[%s271 + $0x68] sm:$0xf]
      %v335 = vld [vmem:[%s271 + $0x6c] sm:$0xf]
      %v336 = vld [vmem:[%s271 + $0x70] sm:$0xf]
      %v337 = vld [vmem:[%s271 + $0x74] sm:$0xf]
      %v338 = vld [vmem:[%s271 + $0x78] sm:$0xf]
      %v339 = vld [vmem:[%s271 + $0x7c] sm:$0xf]
      %v340 = vld [vmem:[%s2] sm:$0x1]
      %v342 = vlaneseq
      %v343 = vshrl.u32 %v342, 7
      %v344 = vsub.s32 0, %v343
      %v345 = vrot.slane %v340, %v344
      %v363 = vunpack.c.l.b16 %v292
      %v364 = vunpack.c.h.b16 %v292
      %v365 = vunpack.c.l.b16 %v293
      %v366 = vunpack.c.h.b16 %v293
      %v367 = vunpack.c.l.b16 %v294
      %v368 = vunpack.c.h.b16 %v294
      %v369 = vunpack.c.l.b16 %v295
      %v370 = vunpack.c.h.b16 %v295
      %v371 = vunpack.c.l.b16 %v296
      %v372 = vunpack.c.h.b16 %v296
      %v373 = vunpack.c.l.b16 %v297
      %v374 = vunpack.c.h.b16 %v297
      %v375 = vunpack.c.l.b16 %v298
      %v376 = vunpack.c.h.b16 %v298
      %v377 = vunpack.c.l.b16 %v299
      %v378 = vunpack.c.h.b16 %v299
      %v379 = vunpack.c.l.b16 %v300
      %v380 = vunpack.c.h.b16 %v300
      %v381 = vunpack.c.l.b16 %v301
      %v382 = vunpack.c.h.b16 %v301
      %v383 = vunpack.c.l.b16 %v302
      %v384 = vunpack.c.h.b16 %v302
      %v385 = vunpack.c.l.b16 %v303
      %v386 = vunpack.c.h.b16 %v303
      %v387 = vunpack.c.l.b16 %v304
      %v388 = vunpack.c.h.b16 %v304
      %v389 = vunpack.c.l.b16 %v305
      %v390 = vunpack.c.h.b16 %v305
      %v391 = vunpack.c.l.b16 %v306
      %v392 = vunpack.c.h.b16 %v306
      %v393 = vunpack.c.l.b16 %v307
      %v394 = vunpack.c.h.b16 %v307
      %v395 = vpack.c.b16 %v365, %v363
      %v396 = vpack.c.b16 %v366, %v364
      %v397 = vpack.c.b16 %v369, %v367
      %v398 = vpack.c.b16 %v370, %v368
      %v399 = vpack.c.b16 %v373, %v371
      %v400 = vpack.c.b16 %v374, %v372
      %v401 = vpack.c.b16 %v377, %v375
      %v402 = vpack.c.b16 %v378, %v376
      %v403 = vpack.c.b16 %v381, %v379
      %v404 = vpack.c.b16 %v382, %v380
      %v405 = vpack.c.b16 %v385, %v383
      %v406 = vpack.c.b16 %v386, %v384
      %v407 = vpack.c.b16 %v389, %v387
      %v408 = vpack.c.b16 %v390, %v388
      %v409 = vpack.c.b16 %v393, %v391
      %v410 = vpack.c.b16 %v394, %v392
      %v459 = vunpack.c.l.b16 %v308
      %v460 = vunpack.c.l.b16 %v309
      %v461 = vunpack.c.l.b16 %v310
      %v462 = vunpack.c.l.b16 %v311
      %v463 = vunpack.c.l.b16 %v312
      %v464 = vunpack.c.l.b16 %v313
      %v465 = vunpack.c.l.b16 %v314
      %v466 = vunpack.c.l.b16 %v315
      %v467 = vunpack.c.l.b16 %v316
      %v468 = vunpack.c.l.b16 %v317
      %v469 = vunpack.c.l.b16 %v318
      %v470 = vunpack.c.l.b16 %v319
      %v471 = vunpack.c.l.b16 %v320
      %v472 = vunpack.c.l.b16 %v321
      %v473 = vunpack.c.l.b16 %v322
      %v474 = vunpack.c.l.b16 %v323
      %v475 = vunpack.c.l.b16 %v324
      %v476 = vunpack.c.l.b16 %v325
      %v477 = vunpack.c.l.b16 %v326
      %v478 = vunpack.c.l.b16 %v327
      %v479 = vunpack.c.l.b16 %v328
      %v480 = vunpack.c.l.b16 %v329
      %v481 = vunpack.c.l.b16 %v330
      %v482 = vunpack.c.l.b16 %v331
      %v483 = vunpack.c.l.b16 %v332
      %v484 = vunpack.c.l.b16 %v333
      %v485 = vunpack.c.l.b16 %v334
      %v486 = vunpack.c.l.b16 %v335
      %v487 = vunpack.c.l.b16 %v336
      %v488 = vunpack.c.l.b16 %v337
      %v489 = vunpack.c.l.b16 %v338
      %v490 = vunpack.c.l.b16 %v339
      %v491 = vpack.c.b16 %v460, %v459
      %v492 = vpack.c.b16 %v462, %v461
      %v493 = vpack.c.b16 %v464, %v463
      %v494 = vpack.c.b16 %v466, %v465
      %v495 = vpack.c.b16 %v468, %v467
      %v496 = vpack.c.b16 %v470, %v469
      %v497 = vpack.c.b16 %v472, %v471
      %v498 = vpack.c.b16 %v474, %v473
      %v499 = vpack.c.b16 %v476, %v475
      %v500 = vpack.c.b16 %v478, %v477
      %v501 = vpack.c.b16 %v480, %v479
      %v502 = vpack.c.b16 %v482, %v481
      %v503 = vpack.c.b16 %v484, %v483
      %v504 = vpack.c.b16 %v486, %v485
      %v505 = vpack.c.b16 %v488, %v487
      %v506 = vpack.c.b16 %v490, %v489
      %523 = vmatprep.subr.bf16.mxu0 0
      %524 = vmatpush1.bf16.msra.mxu0 %v491
      %525 = vmatprep.subr.bf16.mxu0 0
      %526 = vmatpush1.bf16.msra.mxu0 %v492
      %527 = vmatprep.subr.bf16.mxu0 0
      %528 = vmatpush1.bf16.msra.mxu0 %v493
      %529 = vmatprep.subr.bf16.mxu0 0
      %530 = vmatpush1.bf16.msra.mxu0 %v494
      %531 = vmatprep.subr.bf16.mxu0 0
      %532 = vmatpush1.bf16.msra.mxu0 %v495
      %533 = vmatprep.subr.bf16.mxu0 0
      %534 = vmatpush1.bf16.msra.mxu0 %v496
      %535 = vmatprep.subr.bf16.mxu0 0
      %536 = vmatpush1.bf16.msra.mxu0 %v497
      %537 = vmatprep.subr.bf16.mxu0 0
      %538 = vmatpush1.bf16.msra.mxu0 %v498
      %539 = vmatprep.subr.bf16.mxu0 0
      %540 = vmatpush1.bf16.msra.mxu0 %v499
      %541 = vmatprep.subr.bf16.mxu0 0
      %542 = vmatpush1.bf16.msra.mxu0 %v500
      %543 = vmatprep.subr.bf16.mxu0 0
      %544 = vmatpush1.bf16.msra.mxu0 %v501
      %545 = vmatprep.subr.bf16.mxu0 0
      %546 = vmatpush1.bf16.msra.mxu0 %v502
      %547 = vmatprep.subr.bf16.mxu0 0
      %548 = vmatpush1.bf16.msra.mxu0 %v503
      %549 = vmatprep.subr.bf16.mxu0 0
      %550 = vmatpush1.bf16.msra.mxu0 %v504
      %551 = vmatprep.subr.bf16.mxu0 0
      %552 = vmatpush1.bf16.msra.mxu0 %v505
      %553 = vmatprep.subr.bf16.mxu0 0
      %554 = vmatpush1.bf16.msra.mxu0 %v506
      %555 = vmatprep.mubr.bf16.mxu0 %v396
      %556 = vmatmul.mubr.bf16.gmra.mrb[0].mxu0 %v395
      %v557 = vpop.f32.mrb[0].mxu0
      %v558 = vadd.f32 %v345, %v557
      %v559 = vpop.f32.mrb[0].mxu0
      %v560 = vpop.f32.mrb[0].mxu0
      %v561 = vadd.f32 %v345, %v560
      %v562 = vpop.f32.mrb[0].mxu0
      %563 = vmatprep.mubr.bf16.mxu0 %v398
      %564 = vmatmul.mubr.bf16.gmra.mrb[0].mxu0 %v397
      %v565 = vpop.f32.mrb[0].mxu0
      %v566 = vadd.f32 %v345, %v565
      %v567 = vpop.f32.mrb[0].mxu0
      %v568 = vpop.f32.mrb[0].mxu0
      %v569 = vadd.f32 %v345, %v568
      %v570 = vpop.f32.mrb[0].mxu0
      %571 = vmatprep.mubr.bf16.mxu0 %v400
      %572 = vmatmul.mubr.bf16.gmra.mrb[0].mxu0 %v399
      %v573 = vpop.f32.mrb[0].mxu0
      %v574 = vadd.f32 %v345, %v573
      %v575 = vpop.f32.mrb[0].mxu0
      %v576 = vpop.f32.mrb[0].mxu0
      %v577 = vadd.f32 %v345, %v576
      %v578 = vpop.f32.mrb[0].mxu0
      %579 = vmatprep.mubr.bf16.mxu0 %v402
      %580 = vmatmul.mubr.bf16.gmra.mrb[0].mxu0 %v401
      %v581 = vpop.f32.mrb[0].mxu0
      %v582 = vadd.f32 %v345, %v581
      %v583 = vpop.f32.mrb[0].mxu0
      %v584 = vpop.f32.mrb[0].mxu0
      %v585 = vadd.f32 %v345, %v584
      %v586 = vpop.f32.mrb[0].mxu0
      %587 = vmatprep.mubr.bf16.mxu0 %v404
      %588 = vmatmul.mubr.bf16.gmra.mrb[0].mxu0 %v403
      %v589 = vpop.f32.mrb[0].mxu0
      %v590 = vadd.f32 %v345, %v589
      %v591 = vpop.f32.mrb[0].mxu0
      %v592 = vpop.f32.mrb[0].mxu0
      %v593 = vadd.f32 %v345, %v592
      %v594 = vpop.f32.mrb[0].mxu0
      %595 = vmatprep.mubr.bf16.mxu0 %v406
      %596 = vmatmul.mubr.bf16.gmra.mrb[0].mxu0 %v405
      %v597 = vpop.f32.mrb[0].mxu0
      %v598 = vadd.f32 %v345, %v597
      %v599 = vpop.f32.mrb[0].mxu0
      %v600 = vpop.f32.mrb[0].mxu0
      %v601 = vadd.f32 %v345, %v600
      %v602 = vpop.f32.mrb[0].mxu0
      %603 = vmatprep.mubr.bf16.mxu0 %v408
      %604 = vmatmul.mubr.bf16.gmra.mrb[0].mxu0 %v407
      %v605 = vpop.f32.mrb[0].mxu0
      %v606 = vadd.f32 %v345, %v605
      %v607 = vpop.f32.mrb[0].mxu0
      %v608 = vpop.f32.mrb[0].mxu0
      %v609 = vadd.f32 %v345, %v608
      %v610 = vpop.f32.mrb[0].mxu0
      %611 = vmatprep.mubr.bf16.mxu0 %v410
      %612 = vmatmul.mubr.bf16.gmra.mrb[0].mxu0 %v409
      %v613 = vpop.f32.mrb[0].mxu0
      %v614 = vadd.f32 %v345, %v613
      %v615 = vpop.f32.mrb[0].mxu0
      %v616 = vpop.f32.mrb[0].mxu0
      %v617 = vadd.f32 %v345, %v616
      %v618 = vpop.f32.mrb[0].mxu0
      %619 = vdwg.mxu0
      %vm620 = vcmask 261120
      %621 = vst.msk [vmem:[%s280] sm:$0xff] %vm620, %v558
      %622 = vst.msk [vmem:[%s280 + $0x8] sm:$0xff] %vm620, %v561
      %623 = vst.msk [vmem:[%s280 + $0x10] sm:$0xff] %vm620, %v566
      %624 = vst.msk [vmem:[%s280 + $0x18] sm:$0xff] %vm620, %v569
      %625 = vst.msk [vmem:[%s280 + $0x20] sm:$0xff] %vm620, %v574
      %626 = vst.msk [vmem:[%s280 + $0x28] sm:$0xff] %vm620, %v577
      %627 = vst.msk [vmem:[%s280 + $0x30] sm:$0xff] %vm620, %v582
      %628 = vst.msk [vmem:[%s280 + $0x38] sm:$0xff] %vm620, %v585
      %629 = vst.msk [vmem:[%s280 + $0x40] sm:$0xff] %vm620, %v590
      %630 = vst.msk [vmem:[%s280 + $0x48] sm:$0xff] %vm620, %v593
      %631 = vst.msk [vmem:[%s280 + $0x50] sm:$0xff] %vm620, %v598
      %632 = vst.msk [vmem:[%s280 + $0x58] sm:$0xff] %vm620, %v601
      %633 = vst.msk [vmem:[%s280 + $0x60] sm:$0xff] %vm620, %v606
      %634 = vst.msk [vmem:[%s280 + $0x68] sm:$0xff] %vm620, %v609
      %635 = vst.msk [vmem:[%s280 + $0x70] sm:$0xff] %vm620, %v614
      %636 = vst.msk [vmem:[%s280 + $0x78] sm:$0xff] %vm620, %v617
      %v637 = vld [vmem:[%s4] sm:$0x1]
      %v638 = vsel %vm620, %v558, 0.0
      %v639 = vsel %vm620, %v561, 0.0
      %v640 = vadd.f32 %v638, %v639
      %v641 = vsel %vm620, %v566, 0.0
      %v642 = vadd.f32 %v640, %v641
      %v643 = vsel %vm620, %v569, 0.0
      %v644 = vadd.f32 %v642, %v643
      %v645 = vsel %vm620, %v574, 0.0
      %v646 = vadd.f32 %v644, %v645
      %v647 = vsel %vm620, %v577, 0.0
      %v648 = vadd.f32 %v646, %v647
      %v649 = vsel %vm620, %v582, 0.0
      %v650 = vadd.f32 %v648, %v649
      %v651 = vsel %vm620, %v585, 0.0
      %v652 = vadd.f32 %v650, %v651
      %v653 = vsel %vm620, %v590, 0.0
      %v654 = vadd.f32 %v652, %v653
      %v655 = vsel %vm620, %v593, 0.0
      %v656 = vadd.f32 %v654, %v655
      %v657 = vsel %vm620, %v598, 0.0
      %v658 = vadd.f32 %v656, %v657
      %v659 = vsel %vm620, %v601, 0.0
      %v660 = vadd.f32 %v658, %v659
      %v661 = vsel %vm620, %v606, 0.0
      %v662 = vadd.f32 %v660, %v661
      %v663 = vsel %vm620, %v609, 0.0
      %v664 = vadd.f32 %v662, %v663
      %v665 = vsel %vm620, %v614, 0.0
      %v666 = vadd.f32 %v664, %v665
      %v667 = vsel %vm620, %v617, 0.0
      %v668 = vadd.f32 %v666, %v667
      %v669 = vrot.slane %v668, 4
      %v670 = vadd.f32 %v668, %v669
      %v671 = vrot.slane %v670, 2
      %v672 = vadd.f32 %v670, %v671
      %v673 = vrot.slane %v672, 1
      %v674 = vadd.f32 %v672, %v673
      %v675 = vadd.f32 %v637, %v674
      %vm676 = vcmask 253952
      %677 = vst.msk [vmem:[%s4] sm:$0x1] %vm676, %v675
      %v678 = vld [vmem:[%s5] sm:$0x1]
      %v679 = vmul.f32 %v558, %v558
      %v680 = vmul.f32 %v561, %v561
      %v681 = vmul.f32 %v566, %v566
      %v682 = vmul.f32 %v569, %v569
      %v683 = vmul.f32 %v574, %v574
      %v684 = vmul.f32 %v577, %v577
      %v685 = vmul.f32 %v582, %v582
      %v686 = vmul.f32 %v585, %v585
      %v687 = vmul.f32 %v590, %v590
      %v688 = vmul.f32 %v593, %v593
      %v689 = vmul.f32 %v598, %v598
      %v690 = vmul.f32 %v601, %v601
      %v691 = vmul.f32 %v606, %v606
      %v692 = vmul.f32 %v609, %v609
      %v693 = vmul.f32 %v614, %v614
      %v694 = vmul.f32 %v617, %v617
      %v695 = vsel %vm620, %v679, 0.0
      %v696 = vsel %vm620, %v680, 0.0
      %v697 = vadd.f32 %v695, %v696
      %v698 = vsel %vm620, %v681, 0.0
      %v699 = vadd.f32 %v697, %v698
      %v700 = vsel %vm620, %v682, 0.0
      %v701 = vadd.f32 %v699, %v700
      %v702 = vsel %vm620, %v683, 0.0
      %v703 = vadd.f32 %v701, %v702
      %v704 = vsel %vm620, %v684, 0.0
      %v705 = vadd.f32 %v703, %v704
      %v706 = vsel %vm620, %v685, 0.0
      %v707 = vadd.f32 %v705, %v706
      %v708 = vsel %vm620, %v686, 0.0
      %v709 = vadd.f32 %v707, %v708
      %v710 = vsel %vm620, %v687, 0.0
      %v711 = vadd.f32 %v709, %v710
      %v712 = vsel %vm620, %v688, 0.0
      %v713 = vadd.f32 %v711, %v712
      %v714 = vsel %vm620, %v689, 0.0
      %v715 = vadd.f32 %v713, %v714
      %v716 = vsel %vm620, %v690, 0.0
      %v717 = vadd.f32 %v715, %v716
      %v718 = vsel %vm620, %v691, 0.0
      %v719 = vadd.f32 %v717, %v718
      %v720 = vsel %vm620, %v692, 0.0
      %v721 = vadd.f32 %v719, %v720
      %v722 = vsel %vm620, %v693, 0.0
      %v723 = vadd.f32 %v721, %v722
      %v724 = vsel %vm620, %v694, 0.0
      %v725 = vadd.f32 %v723, %v724
      %v726 = vrot.slane %v725, 4
      %v727 = vadd.f32 %v725, %v726
      %v728 = vrot.slane %v727, 2
      %v729 = vadd.f32 %v727, %v728
      %v730 = vrot.slane %v729, 1
      %v731 = vadd.f32 %v729, %v730
      %v732 = vadd.f32 %v678, %v731
      %733 = vst.msk [vmem:[%s5] sm:$0x1] %vm676, %v732
      %s734 = smul.u32 16, %s22
      %p735 = scmp.lt.s32.totalorder %s21, 3
      %s736 = scalar_select %p735, %s21, 3
      %p737 = scmp.lt.s32.totalorder %s734, 15
      %s738 = scalar_select %p737, %s734, 15
      %s739 = smul.addr %s736, 16
      %s740 = sadd.s32 %s738, %s739
      %s741 = smul.addr %s740, 8
      %s742 = scalar_lea.vmem %s3, %s741
      // Predicated region
      $region37: #{generator_forward.13} parent=31 // pred_check
        %p743 = pneg %p124
      $region38: #{generator_forward.13} parent=31 // pred_check_branch
        %745 = sbr.rel (%p743) target = $region40
      $region39: #{generator_forward.13} parent=31 // pred_region
        %s746 = smul.u32 16, %s22
      $region40: #{generator_forward.13} parent=31 // pred_fallthru
        _
      // Predicated region
      $region41: #{generator_forward.13} parent=31 // pred_check
        %p747 = pneg %p145
      $region42: #{generator_forward.13} parent=31 // pred_check_branch
        %749 = sbr.rel (%p747) target = $region44
      $region43: #{generator_forward.13} parent=31 // pred_region
        _
      $region44: #{generator_forward.13} parent=31 // pred_fallthru
        _
      // Predicated region
      $region45: #{generator_forward.13} parent=31 // pred_check
        %p750 = pneg %p166
      $region46: #{generator_forward.13} parent=31 // pred_check_branch
        %752 = sbr.rel (%p750) target = $region48
      $region47: #{generator_forward.13} parent=31 // pred_region
        _
      $region48: #{generator_forward.13} parent=31 // pred_fallthru
        _
      // Predicated region
      $region49: #{generator_forward.13} parent=31 // pred_check
        %p753 = pneg %p145
      $region50: #{generator_forward.13} parent=31 // pred_check_branch
        %755 = sbr.rel (%p753) target = $region52
      $region51: #{generator_forward.13} parent=31 // pred_region
        _
      $region52: #{generator_forward.13} parent=31 // pred_fallthru
        _
      // Predicated region
      $region53: #{generator_forward.13} parent=31 // pred_check
        %p756 = pneg %p166
      $region54: #{generator_forward.13} parent=31 // pred_check_branch
        %758 = sbr.rel (%p756) target = $region56
      $region55: #{generator_forward.13} parent=31 // pred_region
        _
      $region56: #{generator_forward.13} parent=31 // pred_fallthru
        _
    $region32: #{generator_forward.13} parent=5 // pred_fallthru
      _
    %p759 = scmp.le.s32.totalorder 2, %s12
    // Predicated region
    $region57: #{generator_forward.13} parent=5 // pred_check
      %p760 = pneg %p759
    $region58: #{generator_forward.13} parent=5 // pred_check_branch
      %762 = sbr.rel (%p760) target = $region60
    $region59: #{generator_forward.13} parent=5 // pred_region
      %s763 = ssub.s32 %s12, 2
      // Predicated region
      $region61: #{generator_forward.13} parent=59 // pred_check
        %p764 = pneg %p130
      $region62: #{generator_forward.13} parent=59 // pred_check_branch
        %766 = sbr.rel (%p764) target = $region64
      $region63: #{generator_forward.13} parent=59 // pred_region
        %s767 = smul.u32 16, %s24
        %p768 = scmp.lt.s32.totalorder %s23, 3
        %s769 = scalar_select %p768, %s23, 3
        %p770 = scmp.lt.s32.totalorder %s767, 15
        %s771 = scalar_select %p770, %s767, 15
        %s772 = smul.addr %s769, 16
        %s773 = sadd.s32 %s771, %s772
        %s774 = smul.addr %s773, 8
        %s775 = scalar_lea.vmem %s3, %s774
      $region64: #{generator_forward.13} parent=59 // pred_fallthru
        _
    $region60: #{generator_forward.13} parent=5 // pred_fallthru
      _
  $region6: #{generator_forward.13} parent=0 // loop_footer
    %s16 = sadd.s32 1, %s12
  $region7: #{generator_forward.13} parent=0 // loop_footer_branch
    %11 = sbr.rel target = $region3
  $region8: #{generator_forward.13} parent=0 // loop_exit
    _

// kernel: generator_forward.16
$region0: #{generator_forward.16}
  #allocation0 [shape = 'u32[]', space=smem, size = 0x4, offset = 0x4, fixed_abs, tag = 'smem constant byte address 0x4 - core index']
  #allocation1 [shape = 'u32[144,128]{1,0:T(1,128)}', space=vmem, size = 0x12000, scoped, tag = 'internal scratch']
  %s0 = inlined_call_operand.vmem [shape: f32[4,512,16], index: 0, kind: input, shape index: {}]
  %s1 = inlined_call_operand.vmem [shape: f32[1,16], index: 1, kind: input, shape index: {}]
  %s2 = inlined_call_operand.vmem [shape: f32[1,16], index: 2, kind: input, shape index: {}]
  %s3 = inlined_call_operand.vmem [shape: bf16[4,512,16], index: 3, kind: output, shape index: {}]
  %s4 = sld [smem:[#allocation0]]
  $region45: #{generator_forward.16} parent=0
    _
  %s6 = ssub.s32 1, %s4
  %s7 = scalar_select 0, %s6, %s4
  loop: start=0, step=1, limit=6
  $region2: #{generator_forward.16} parent=0 // loop_pre_header
    _
  $region3: #{generator_forward.16} parent=0 // loop_header
    %s9 = sphi 0, %s13
    %p10 = scmp.ge.s32.totalorder %s9, 6
    %s16 = sphi 0, %s28
    %s17 = sphi 0, %s24
    %s18 = sphi 0, %s16
    %s19 = sphi 0, %s17
    %s20 = sphi 0, %s18
    %s21 = sphi 0, %s19
    %s33 = sphi 0, %s35
    %s36 = sphi 0, %s33
    %s37 = sphi 0, %s36
    %s53 = sphi 0, %s37
    %s57 = sphi 0, %s57
    %s59 = sphi 0, %s57
    %s60 = sphi 0, %s59
    %s74 = sphi 0, %s60
    %s78 = sphi 0, %s78
    %s80 = sphi 0, %s78
    %s81 = sphi 0, %s80
    %s95 = sphi 0, %s81
    %s103 = sphi 0, %s105
    %s106 = sphi 0, %s103
    %s107 = sphi 0, %s106
    %s123 = sphi 0, %s107
  $region4: #{generator_forward.16} parent=0 // loop_header_branch
    %12 = sbr.rel (%p10) target = $region8
  $region5: #{generator_forward.16} parent=0 // loop_body
    %s14 = ssub.s32 %s9, 1
    %s15 = ssub.s32 %s9, 2
    %s22 = sadd.s32 1, %s17
    %p23 = scmp.ge.s32.totalorder %s22, 1
    %s24 = scalar_select %p23, 0, %s22
    %s25 = sadd.s32 1, %s16
    %s26 = scalar_select %p23, %s25, %s16
    %p27 = scmp.ge.s32.totalorder %s26, 4
    %s28 = scalar_select %p27, 0, %s26
    %s29 = ssub.s32 %s16, %s28
    %s30 = ssub.s32 %s17, %s24
    %s31 = sor.u32 %s29, %s30
    %p32 = scmp.eq.s32.totalorder %s31, 0
    %s34 = sadd.s32 %s33, 1
    %s35 = scalar_select %p32, %s33, %s34
    %p38 = pneg %p32
    %p39 = scmp.eq.s32.totalorder %s9, 3
    %p40 = por %p38, %p39
    %p41 = scmp.ne.s32.totalorder %s33, %s36
    %p42 = scmp.eq.s32.totalorder %s9, 0
    %p43 = por %p41, %p42
    %p44 = scmp.ne.s32.totalorder %s33, %s36
    %p45 = scmp.eq.s32.totalorder %s14, 3
    %p46 = por %p44, %p45
    %p47 = scmp.ne.s32.totalorder %s36, %s37
    %p48 = scmp.eq.s32.totalorder %s14, 0
    %p49 = por %p47, %p48
    %p50 = scmp.ne.s32.totalorder %s36, %s37
    %p51 = scmp.eq.s32.totalorder %s15, 3
    %p52 = por %p50, %p51
    %p54 = scmp.ne.s32.totalorder %s37, %s53
    %p55 = scmp.eq.s32.totalorder %s15, 0
    %p56 = por %p54, %p55
    %s58 = sadd.s32 %s57, 1
    %p61 = scmp.eq.s32.totalorder %s9, 3
    %p62 = scmp.ne.s32.totalorder %s57, %s59
    %p63 = scmp.eq.s32.totalorder %s9, 0
    %p64 = por %p62, %p63
    %p65 = scmp.ne.s32.totalorder %s57, %s59
    %p66 = scmp.eq.s32.totalorder %s14, 3
    %p67 = por %p65, %p66
    %p68 = scmp.ne.s32.totalorder %s59, %s60
    %p69 = scmp.eq.s32.totalorder %s14, 0
    %p70 = por %p68, %p69
    %p71 = scmp.ne.s32.totalorder %s59, %s60
    %p72 = scmp.eq.s32.totalorder %s15, 3
    %p73 = por %p71, %p72
    %p75 = scmp.ne.s32.totalorder %s60, %s74
    %p76 = scmp.eq.s32.totalorder %s15, 0
    %p77 = por %p75, %p76
    %s79 = sadd.s32 %s78, 1
    %p82 = scmp.eq.s32.totalorder %s9, 3
    %p83 = scmp.ne.s32.totalorder %s78, %s80
    %p84 = scmp.eq.s32.totalorder %s9, 0
    %p85 = por %p83, %p84
    %p86 = scmp.ne.s32.totalorder %s78, %s80
    %p87 = scmp.eq.s32.totalorder %s14, 3
    %p88 = por %p86, %p87
    %p89 = scmp.ne.s32.totalorder %s80, %s81
    %p90 = scmp.eq.s32.totalorder %s14, 0
    %p91 = por %p89, %p90
    %p92 = scmp.ne.s32.totalorder %s80, %s81
    %p93 = scmp.eq.s32.totalorder %s15, 3
    %p94 = por %p92, %p93
    %p96 = scmp.ne.s32.totalorder %s81, %s95
    %p97 = scmp.eq.s32.totalorder %s15, 0
    %p98 = por %p96, %p97
    %s99 = ssub.s32 %s16, %s28
    %s100 = ssub.s32 %s17, %s24
    %s101 = sor.u32 %s99, %s100
    %p102 = scmp.eq.s32.totalorder %s101, 0
    %s104 = sadd.s32 %s103, 1
    %s105 = scalar_select %p102, %s103, %s104
    %p108 = pneg %p102
    %p109 = scmp.eq.s32.totalorder %s9, 3
    %p110 = por %p108, %p109
    %p111 = scmp.ne.s32.totalorder %s103, %s106
    %p112 = scmp.eq.s32.totalorder %s9, 0
    %p113 = por %p111, %p112
    %p114 = scmp.ne.s32.totalorder %s103, %s106
    %p115 = scmp.eq.s32.totalorder %s14, 3
    %p116 = por %p114, %p115
    %p117 = scmp.ne.s32.totalorder %s106, %s107
    %p118 = scmp.eq.s32.totalorder %s14, 0
    %p119 = por %p117, %p118
    %p120 = scmp.ne.s32.totalorder %s106, %s107
    %p121 = scmp.eq.s32.totalorder %s15, 3
    %p122 = por %p120, %p121
    %p124 = scmp.ne.s32.totalorder %s107, %s123
    %p125 = scmp.eq.s32.totalorder %s15, 0
    %p126 = por %p124, %p125
    %p127 = scmp.le.s32.totalorder 1, %s9
    %p128 = scmp.lt.s32.totalorder %s9, 5
    %p129 = pnand %p127, %p128
    %p130 = pneg %p129
    // Predicated region
    $region9: #{generator_forward.16} parent=5 // pred_check
      _
    $region10: #{generator_forward.16} parent=5 // pred_check_branch
      %132 = sbr.rel (%p129) target = $region12
    $region11: #{generator_forward.16} parent=5 // pred_region
      %s133 = ssub.s32 %s9, 1
      // Predicated region
      $region13: #{generator_forward.16} parent=11 // pred_check
        %p134 = pneg %p70
      $region14: #{generator_forward.16} parent=11 // pred_check_branch
        %136 = sbr.rel (%p134) target = $region16
      $region15: #{generator_forward.16} parent=11 // pred_region
        _
      $region16: #{generator_forward.16} parent=11 // pred_fallthru
        _
      // Predicated region
      $region17: #{generator_forward.16} parent=11 // pred_check
        %p137 = pneg %p91
      $region18: #{generator_forward.16} parent=11 // pred_check_branch
        %139 = sbr.rel (%p137) target = $region20
      $region19: #{generator_forward.16} parent=11 // pred_region
        _
      $region20: #{generator_forward.16} parent=11 // pred_fallthru
        _
    $region12: #{generator_forward.16} parent=5 // pred_fallthru
      _
    %p140 = scmp.lt.s32.totalorder %s9, 4
    // Predicated region
    $region21: #{generator_forward.16} parent=5 // pred_check
      %p141 = pneg %p140
    $region22: #{generator_forward.16} parent=5 // pred_check_branch
      %143 = sbr.rel (%p141) target = $region24
    $region23: #{generator_forward.16} parent=5 // pred_region
      // Predicated region
      $region25: #{generator_forward.16} parent=23 // pred_check
        %p144 = pneg %p43
      $region26: #{generator_forward.16} parent=23 // pred_check_branch
        %146 = sbr.rel (%p144) target = $region28
      $region27: #{generator_forward.16} parent=23 // pred_region
        %s147 = smul.u32 64, %s17
        %p148 = scmp.lt.s32.totalorder %s16, 3
        %s149 = scalar_select %p148, %s16, 3
        %p150 = scmp.lt.s32.totalorder %s147, 63
        %s151 = scalar_select %p150, %s147, 63
        %s152 = smul.addr %s149, 64
        %s153 = sadd.s32 %s151, %s152
        %s154 = smul.addr %s153, 8
        %s155 = scalar_lea.vmem %s0, %s154
        %s156 = smul.u32 64, %s17
      $region28: #{generator_forward.16} parent=23 // pred_fallthru
        _
    $region24: #{generator_forward.16} parent=5 // pred_fallthru
      _
    %p157 = scmp.le.s32.totalorder 1, %s9
    %p158 = scmp.lt.s32.totalorder %s9, 5
    %p159 = pnand %p157, %p158
    %p160 = pneg %p159
    // Predicated region
    $region29: #{generator_forward.16} parent=5 // pred_check
      _
    $region30: #{generator_forward.16} parent=5 // pred_check_branch
      %162 = sbr.rel (%p159) target = $region32
    $region31: #{generator_forward.16} parent=5 // pred_region
      %s163 = ssub.s32 %s9, 1
      %s164 = smul.u32 64, %s19
      %p165 = scmp.lt.s32.totalorder %s18, 3
      %s166 = scalar_select %p165, %s18, 3
      %p167 = scmp.lt.s32.totalorder %s164, 63
      %s168 = scalar_select %p167, %s164, 63
      %s169 = smul.addr %s166, 64
      %s170 = sadd.s32 %s168, %s169
      %s171 = smul.addr %s170, 8
      %s172 = scalar_lea.vmem %s0, %s171
      %p173 = pneg %p49
      %p174 = pneg %p46
      %p175 = pneg %p70
      %p176 = pneg %p67
      %p177 = pneg %p91
      %p178 = pneg %p88
      %p179 = pneg %p119
      %p180 = pneg %p116
      %s181 = smul.u32 64, %s19
      %p182 = scmp.lt.s32.totalorder %s18, 3
      %s183 = scalar_select %p182, %s18, 3
      %p184 = scmp.lt.s32.totalorder %s181, 63
      %s185 = scalar_select %p184, %s181, 63
      %s186 = smul.addr %s183, 64
      %s187 = sadd.s32 %s185, %s186
      %s188 = smul.addr %s187, 4
      %s189 = scalar_lea.vmem %s3, %s188
      %s190 = smul.u32 64, %s19
      %p191 = scmp.lt.s32.totalorder %s18, 3
      %s192 = scalar_select %p191, %s18, 3
      %p193 = scmp.lt.s32.totalorder %s190, 63
      %s194 = scalar_select %p193, %s190, 63
      %s195 = smul.addr %s192, 64
      %s196 = sadd.s32 %s194, %s195
      %s197 = smul.addr %s196, 8
      %s198 = scalar_lea.vmem %s0, %s197
      %s199 = smul.u32 64, %s19
      %s200 = smul.u32 64, %s19
      %p201 = scmp.lt.s32.totalorder %s18, 3
      %s202 = scalar_select %p201, %s18, 3
      %p203 = scmp.lt.s32.totalorder %s200, 63
      %s204 = scalar_select %p203, %s200, 63
      %s205 = smul.addr %s202, 64
      %s206 = sadd.s32 %s204, %s205
      %s207 = smul.addr %s206, 4
      %s208 = scalar_lea.vmem %s3, %s207
      %s209 = smul.u32 64, %s19
      %v210 = vld [vmem:[%s198] sm:$0xff]
      %v211 = vld [vmem:[%s198 + $0x8] sm:$0xff]
      %v212 = vld [vmem:[%s198 + $0x10] sm:$0xff]
      %v213 = vld [vmem:[%s198 + $0x18] sm:$0xff]
      %v214 = vld [vmem:[%s198 + $0x20] sm:$0xff]
      %v215 = vld [vmem:[%s198 + $0x28] sm:$0xff]
      %v216 = vld [vmem:[%s198 + $0x30] sm:$0xff]
      %v217 = vld [vmem:[%s198 + $0x38] sm:$0xff]
      %v218 = vld [vmem:[%s198 + $0x40] sm:$0xff]
      %v219 = vld [vmem:[%s198 + $0x48] sm:$0xff]
      %v220 = vld [vmem:[%s198 + $0x50] sm:$0xff]
      %v221 = vld [vmem:[%s198 + $0x58] sm:$0xff]
      %v222 = vld [vmem:[%s198 + $0x60] sm:$0xff]
      %v223 = vld [vmem:[%s198 + $0x68] sm:$0xff]
      %v224 = vld [vmem:[%s198 + $0x70] sm:$0xff]
      %v225 = vld [vmem:[%s198 + $0x78] sm:$0xff]
      %v226 = vld [vmem:[%s198 + $0x80] sm:$0xff]
      %v227 = vld [vmem:[%s198 + $0x88] sm:$0xff]
      %v228 = vld [vmem:[%s198 + $0x90] sm:$0xff]
      %v229 = vld [vmem:[%s198 + $0x98] sm:$0xff]
      %v230 = vld [vmem:[%s198 + $0xa0] sm:$0xff]
      %v231 = vld [vmem:[%s198 + $0xa8] sm:$0xff]
      %v232 = vld [vmem:[%s198 + $0xb0] sm:$0xff]
      %v233 = vld [vmem:[%s198 + $0xb8] sm:$0xff]
      %v234 = vld [vmem:[%s198 + $0xc0] sm:$0xff]
      %v235 = vld [vmem:[%s198 + $0xc8] sm:$0xff]
      %v236 = vld [vmem:[%s198 + $0xd0] sm:$0xff]
      %v237 = vld [vmem:[%s198 + $0xd8] sm:$0xff]
      %v238 = vld [vmem:[%s198 + $0xe0] sm:$0xff]
      %v239 = vld [vmem:[%s198 + $0xe8] sm:$0xff]
      %v240 = vld [vmem:[%s198 + $0xf0] sm:$0xff]
      %v241 = vld [vmem:[%s198 + $0xf8] sm:$0xff]
      %v242 = vld [vmem:[%s198 + $0x100] sm:$0xff]
      %v243 = vld [vmem:[%s198 + $0x108] sm:$0xff]
      %v244 = vld [vmem:[%s198 + $0x110] sm:$0xff]
      %v245 = vld [vmem:[%s198 + $0x118] sm:$0xff]
      %v246 = vld [vmem:[%s198 + $0x120] sm:$0xff]
      %v247 = vld [vmem:[%s198 + $0x128] sm:$0xff]
      %v248 = vld [vmem:[%s198 + $0x130] sm:$0xff]
      %v249 = vld [vmem:[%s198 + $0x138] sm:$0xff]
      %v250 = vld [vmem:[%s198 + $0x140] sm:$0xff]
      %v251 = vld [vmem:[%s198 + $0x148] sm:$0xff]
      %v252 = vld [vmem:[%s198 + $0x150] sm:$0xff]
      %v253 = vld [vmem:[%s198 + $0x158] sm:$0xff]
      %v254 = vld [vmem:[%s198 + $0x160] sm:$0xff]
      %v255 = vld [vmem:[%s198 + $0x168] sm:$0xff]
      %v256 = vld [vmem:[%s198 + $0x170] sm:$0xff]
      %v257 = vld [vmem:[%s198 + $0x178] sm:$0xff]
      %v258 = vld [vmem:[%s198 + $0x180] sm:$0xff]
      %v259 = vld [vmem:[%s198 + $0x188] sm:$0xff]
      %v260 = vld [vmem:[%s198 + $0x190] sm:$0xff]
      %v261 = vld [vmem:[%s198 + $0x198] sm:$0xff]
      %v262 = vld [vmem:[%s198 + $0x1a0] sm:$0xff]
      %v263 = vld [vmem:[%s198 + $0x1a8] sm:$0xff]
      %v264 = vld [vmem:[%s198 + $0x1b0] sm:$0xff]
      %v265 = vld [vmem:[%s198 + $0x1b8] sm:$0xff]
      %v266 = vld [vmem:[%s198 + $0x1c0] sm:$0xff]
      %v267 = vld [vmem:[%s198 + $0x1c8] sm:$0xff]
      %v268 = vld [vmem:[%s198 + $0x1d0] sm:$0xff]
      %v269 = vld [vmem:[%s198 + $0x1d8] sm:$0xff]
      %v270 = vld [vmem:[%s198 + $0x1e0] sm:$0xff]
      %v271 = vld [vmem:[%s198 + $0x1e8] sm:$0xff]
      %v272 = vld [vmem:[%s198 + $0x1f0] sm:$0xff]
      %v273 = vld [vmem:[%s198 + $0x1f8] sm:$0xff]
      %v274 = vld [vmem:[%s1] sm:$0x1]
      %v276 = vlaneseq
      %v277 = vshrl.u32 %v276, 7
      %v278 = vsub.s32 0, %v277
      %v279 = vrot.slane %v274, %v278
      %v281 = vsub.f32 %v210, %v279
      %v282 = vsub.f32 %v211, %v279
      %v283 = vsub.f32 %v212, %v279
      %v284 = vsub.f32 %v213, %v279
      %v285 = vsub.f32 %v214, %v279
      %v286 = vsub.f32 %v215, %v279
      %v287 = vsub.f32 %v216, %v279
      %v288 = vsub.f32 %v217, %v279
      %v289 = vsub.f32 %v218, %v279
      %v290 = vsub.f32 %v219, %v279
      %v291 = vsub.f32 %v220, %v279
      %v292 = vsub.f32 %v221, %v279
      %v293 = vsub.f32 %v222, %v279
      %v294 = vsub.f32 %v223, %v279
      %v295 = vsub.f32 %v224, %v279
      %v296 = vsub.f32 %v225, %v279
      %v297 = vsub.f32 %v226, %v279
      %v298 = vsub.f32 %v227, %v279
      %v299 = vsub.f32 %v228, %v279
      %v300 = vsub.f32 %v229, %v279
      %v301 = vsub.f32 %v230, %v279
      %v302 = vsub.f32 %v231, %v279
      %v303 = vsub.f32 %v232, %v279
      %v304 = vsub.f32 %v233, %v279
      %v305 = vsub.f32 %v234, %v279
      %v306 = vsub.f32 %v235, %v279
      %v307 = vsub.f32 %v236, %v279
      %v308 = vsub.f32 %v237, %v279
      %v309 = vsub.f32 %v238, %v279
      %v310 = vsub.f32 %v239, %v279
      %v311 = vsub.f32 %v240, %v279
      %v312 = vsub.f32 %v241, %v279
      %v313 = vsub.f32 %v242, %v279
      %v314 = vsub.f32 %v243, %v279
      %v315 = vsub.f32 %v244, %v279
      %v316 = vsub.f32 %v245, %v279
      %v317 = vsub.f32 %v246, %v279
      %v318 = vsub.f32 %v247, %v279
      %v319 = vsub.f32 %v248, %v279
      %v320 = vsub.f32 %v249, %v279
      %v321 = vsub.f32 %v250, %v279
      %v322 = vsub.f32 %v251, %v279
      %v323 = vsub.f32 %v252, %v279
      %v324 = vsub.f32 %v253, %v279
      %v325 = vsub.f32 %v254, %v279
      %v326 = vsub.f32 %v255, %v279
      %v327 = vsub.f32 %v256, %v279
      %v328 = vsub.f32 %v257, %v279
      %v329 = vsub.f32 %v258, %v279
      %v330 = vsub.f32 %v259, %v279
      %v331 = vsub.f32 %v260, %v279
      %v332 = vsub.f32 %v261, %v279
      %v333 = vsub.f32 %v262, %v279
      %v334 = vsub.f32 %v263, %v279
      %v335 = vsub.f32 %v264, %v279
      %v336 = vsub.f32 %v265, %v279
      %v337 = vsub.f32 %v266, %v279
      %v338 = vsub.f32 %v267, %v279
      %v339 = vsub.f32 %v268, %v279
      %v340 = vsub.f32 %v269, %v279
      %v341 = vsub.f32 %v270, %v279
      %v342 = vsub.f32 %v271, %v279
      %v343 = vsub.f32 %v272, %v279
      %v344 = vsub.f32 %v273, %v279
      %v345 = vld [vmem:[%s2] sm:$0x1]
      %v347 = vlaneseq
      %v348 = vshrl.u32 %v347, 7
      %v349 = vsub.s32 0, %v348
      %v350 = vrot.slane %v345, %v349
      %v352 = vmul.f32 %v281, %v350
      %v353 = vmul.f32 %v282, %v350
      %v354 = vmul.f32 %v283, %v350
      %v355 = vmul.f32 %v284, %v350
      %v356 = vmul.f32 %v285, %v350
      %v357 = vmul.f32 %v286, %v350
      %v358 = vmul.f32 %v287, %v350
      %v359 = vmul.f32 %v288, %v350
      %v360 = vmul.f32 %v289, %v350
      %v361 = vmul.f32 %v290, %v350
      %v362 = vmul.f32 %v291, %v350
      %v363 = vmul.f32 %v292, %v350
      %v364 = vmul.f32 %v293, %v350
      %v365 = vmul.f32 %v294, %v350
      %v366 = vmul.f32 %v295, %v350
      %v367 = vmul.f32 %v296, %v350
      %v368 = vmul.f32 %v297, %v350
      %v369 = vmul.f32 %v298, %v350
      %v370 = vmul.f32 %v299, %v350
      %v371 = vmul.f32 %v300, %v350
      %v372 = vmul.f32 %v301, %v350
      %v373 = vmul.f32 %v302, %v350
      %v374 = vmul.f32 %v303, %v350
      %v375 = vmul.f32 %v304, %v350
      %v376 = vmul.f32 %v305, %v350
      %v377 = vmul.f32 %v306, %v350
      %v378 = vmul.f32 %v307, %v350
      %v379 = vmul.f32 %v308, %v350
      %v380 = vmul.f32 %v309, %v350
      %v381 = vmul.f32 %v310, %v350
      %v382 = vmul.f32 %v311, %v350
      %v383 = vmul.f32 %v312, %v350
      %v384 = vmul.f32 %v313, %v350
      %v385 = vmul.f32 %v314, %v350
      %v386 = vmul.f32 %v315, %v350
      %v387 = vmul.f32 %v316, %v350
      %v388 = vmul.f32 %v317, %v350
      %v389 = vmul.f32 %v318, %v350
      %v390 = vmul.f32 %v319, %v350
      %v391 = vmul.f32 %v320, %v350
      %v392 = vmul.f32 %v321, %v350
      %v393 = vmul.f32 %v322, %v350
      %v394 = vmul.f32 %v323, %v350
      %v395 = vmul.f32 %v324, %v350
      %v396 = vmul.f32 %v325, %v350
      %v397 = vmul.f32 %v326, %v350
      %v398 = vmul.f32 %v327, %v350
      %v399 = vmul.f32 %v328, %v350
      %v400 = vmul.f32 %v329, %v350
      %v401 = vmul.f32 %v330, %v350
      %v402 = vmul.f32 %v331, %v350
      %v403 = vmul.f32 %v332, %v350
      %v404 = vmul.f32 %v333, %v350
      %v405 = vmul.f32 %v334, %v350
      %v406 = vmul.f32 %v335, %v350
      %v407 = vmul.f32 %v336, %v350
      %v408 = vmul.f32 %v337, %v350
      %v409 = vmul.f32 %v338, %v350
      %v410 = vmul.f32 %v339, %v350
      %v411 = vmul.f32 %v340, %v350
      %v412 = vmul.f32 %v341, %v350
      %v413 = vmul.f32 %v342, %v350
      %v414 = vmul.f32 %v343, %v350
      %v415 = vmul.f32 %v344, %v350
      %v416 = vmax.f32 %v352, 0.0
      %v417 = vmax.f32 %v353, 0.0
      %v418 = vmax.f32 %v354, 0.0
      %v419 = vmax.f32 %v355, 0.0
      %v420 = vmax.f32 %v356, 0.0
      %v421 = vmax.f32 %v357, 0.0
      %v422 = vmax.f32 %v358, 0.0
      %v423 = vmax.f32 %v359, 0.0
      %v424 = vmax.f32 %v360, 0.0
      %v425 = vmax.f32 %v361, 0.0
      %v426 = vmax.f32 %v362, 0.0
      %v427 = vmax.f32 %v363, 0.0
      %v428 = vmax.f32 %v364, 0.0
      %v429 = vmax.f32 %v365, 0.0
      %v430 = vmax.f32 %v366, 0.0
      %v431 = vmax.f32 %v367, 0.0
      %v432 = vmax.f32 %v368, 0.0
      %v433 = vmax.f32 %v369, 0.0
      %v434 = vmax.f32 %v370, 0.0
      %v435 = vmax.f32 %v371, 0.0
      %v436 = vmax.f32 %v372, 0.0
      %v437 = vmax.f32 %v373, 0.0
      %v438 = vmax.f32 %v374, 0.0
      %v439 = vmax.f32 %v375, 0.0
      %v440 = vmax.f32 %v376, 0.0
      %v441 = vmax.f32 %v377, 0.0
      %v442 = vmax.f32 %v378, 0.0
      %v443 = vmax.f32 %v379, 0.0
      %v444 = vmax.f32 %v380, 0.0
      %v445 = vmax.f32 %v381, 0.0
      %v446 = vmax.f32 %v382, 0.0
      %v447 = vmax.f32 %v383, 0.0
      %v448 = vmax.f32 %v384, 0.0
      %v449 = vmax.f32 %v385, 0.0
      %v450 = vmax.f32 %v386, 0.0
      %v451 = vmax.f32 %v387, 0.0
      %v452 = vmax.f32 %v388, 0.0
      %v453 = vmax.f32 %v389, 0.0
      %v454 = vmax.f32 %v390, 0.0
      %v455 = vmax.f32 %v391, 0.0
      %v456 = vmax.f32 %v392, 0.0
      %v457 = vmax.f32 %v393, 0.0
      %v458 = vmax.f32 %v394, 0.0
      %v459 = vmax.f32 %v395, 0.0
      %v460 = vmax.f32 %v396, 0.0
      %v461 = vmax.f32 %v397, 0.0
      %v462 = vmax.f32 %v398, 0.0
      %v463 = vmax.f32 %v399, 0.0
      %v464 = vmax.f32 %v400, 0.0
      %v465 = vmax.f32 %v401, 0.0
      %v466 = vmax.f32 %v402, 0.0
      %v467 = vmax.f32 %v403, 0.0
      %v468 = vmax.f32 %v404, 0.0
      %v469 = vmax.f32 %v405, 0.0
      %v470 = vmax.f32 %v406, 0.0
      %v471 = vmax.f32 %v407, 0.0
      %v472 = vmax.f32 %v408, 0.0
      %v473 = vmax.f32 %v409, 0.0
      %v474 = vmax.f32 %v410, 0.0
      %v475 = vmax.f32 %v411, 0.0
      %v476 = vmax.f32 %v412, 0.0
      %v477 = vmax.f32 %v413, 0.0
      %v478 = vmax.f32 %v414, 0.0
      %v479 = vmax.f32 %v415, 0.0
      %v480 = vpack.c.bf16 %v417, %v416
      %v481 = vpack.c.bf16 %v419, %v418
      %v482 = vpack.c.bf16 %v421, %v420
      %v483 = vpack.c.bf16 %v423, %v422
      %v484 = vpack.c.bf16 %v425, %v424
      %v485 = vpack.c.bf16 %v427, %v426
      %v486 = vpack.c.bf16 %v429, %v428
      %v487 = vpack.c.bf16 %v431, %v430
      %v488 = vpack.c.bf16 %v433, %v432
      %v489 = vpack.c.bf16 %v435, %v434
      %v490 = vpack.c.bf16 %v437, %v436
      %v491 = vpack.c.bf16 %v439, %v438
      %v492 = vpack.c.bf16 %v441, %v440
      %v493 = vpack.c.bf16 %v443, %v442
      %v494 = vpack.c.bf16 %v445, %v444
      %v495 = vpack.c.bf16 %v447, %v446
      %v496 = vpack.c.bf16 %v449, %v448
      %v497 = vpack.c.bf16 %v451, %v450
      %v498 = vpack.c.bf16 %v453, %v452
      %v499 = vpack.c.bf16 %v455, %v454
      %v500 = vpack.c.bf16 %v457, %v456
      %v501 = vpack.c.bf16 %v459, %v458
      %v502 = vpack.c.bf16 %v461, %v460
      %v503 = vpack.c.bf16 %v463, %v462
      %v504 = vpack.c.bf16 %v465, %v464
      %v505 = vpack.c.bf16 %v467, %v466
      %v506 = vpack.c.bf16 %v469, %v468
      %v507 = vpack.c.bf16 %v471, %v470
      %v508 = vpack.c.bf16 %v473, %v472
      %v509 = vpack.c.bf16 %v475, %v474
      %v510 = vpack.c.bf16 %v477, %v476
      %v511 = vpack.c.bf16 %v479, %v478
      %v544 = vunpack.c.l.b16 %v480
      %v545 = vunpack.c.h.b16 %v480
      %v546 = vunpack.c.l.b16 %v481
      %v547 = vunpack.c.h.b16 %v481
      %v548 = vunpack.c.l.b16 %v482
      %v549 = vunpack.c.h.b16 %v482
      %v550 = vunpack.c.l.b16 %v483
      %v551 = vunpack.c.h.b16 %v483
      %v552 = vunpack.c.l.b16 %v484
      %v553 = vunpack.c.h.b16 %v484
      %v554 = vunpack.c.l.b16 %v485
      %v555 = vunpack.c.h.b16 %v485
      %v556 = vunpack.c.l.b16 %v486
      %v557 = vunpack.c.h.b16 %v486
      %v558 = vunpack.c.l.b16 %v487
      %v559 = vunpack.c.h.b16 %v487
      %v560 = vunpack.c.l.b16 %v488
      %v561 = vunpack.c.h.b16 %v488
      %v562 = vunpack.c.l.b16 %v489
      %v563 = vunpack.c.h.b16 %v489
      %v564 = vunpack.c.l.b16 %v490
      %v565 = vunpack.c.h.b16 %v490
      %v566 = vunpack.c.l.b16 %v491
      %v567 = vunpack.c.h.b16 %v491
      %v568 = vunpack.c.l.b16 %v492
      %v569 = vunpack.c.h.b16 %v492
      %v570 = vunpack.c.l.b16 %v493
      %v571 = vunpack.c.h.b16 %v493
      %v572 = vunpack.c.l.b16 %v494
      %v573 = vunpack.c.h.b16 %v494
      %v574 = vunpack.c.l.b16 %v495
      %v575 = vunpack.c.h.b16 %v495
      %v576 = vunpack.c.l.b16 %v496
      %v577 = vunpack.c.h.b16 %v496
      %v578 = vunpack.c.l.b16 %v497
      %v579 = vunpack.c.h.b16 %v497
      %v580 = vunpack.c.l.b16 %v498
      %v581 = vunpack.c.h.b16 %v498
      %v582 = vunpack.c.l.b16 %v499
      %v583 = vunpack.c.h.b16 %v499
      %v584 = vunpack.c.l.b16 %v500
      %v585 = vunpack.c.h.b16 %v500
      %v586 = vunpack.c.l.b16 %v501
      %v587 = vunpack.c.h.b16 %v501
      %v588 = vunpack.c.l.b16 %v502
      %v589 = vunpack.c.h.b16 %v502
      %v590 = vunpack.c.l.b16 %v503
      %v591 = vunpack.c.h.b16 %v503
      %v592 = vunpack.c.l.b16 %v504
      %v593 = vunpack.c.h.b16 %v504
      %v594 = vunpack.c.l.b16 %v505
      %v595 = vunpack.c.h.b16 %v505
      %v596 = vunpack.c.l.b16 %v506
      %v597 = vunpack.c.h.b16 %v506
      %v598 = vunpack.c.l.b16 %v507
      %v599 = vunpack.c.h.b16 %v507
      %v600 = vunpack.c.l.b16 %v508
      %v601 = vunpack.c.h.b16 %v508
      %v602 = vunpack.c.l.b16 %v509
      %v603 = vunpack.c.h.b16 %v509
      %v604 = vunpack.c.l.b16 %v510
      %v605 = vunpack.c.h.b16 %v510
      %v606 = vunpack.c.l.b16 %v511
      %v607 = vunpack.c.h.b16 %v511
      %v608 = vpack.c.b16 %v544, %v544
      %v609 = vpack.c.b16 %v545, %v545
      %v610 = vpack.c.b16 %v546, %v546
      %v611 = vpack.c.b16 %v547, %v547
      %v612 = vpack.c.b16 %v548, %v548
      %v613 = vpack.c.b16 %v549, %v549
      %v614 = vpack.c.b16 %v550, %v550
      %v615 = vpack.c.b16 %v551, %v551
      %v616 = vpack.c.b16 %v552, %v552
      %v617 = vpack.c.b16 %v553, %v553
      %v618 = vpack.c.b16 %v554, %v554
      %v619 = vpack.c.b16 %v555, %v555
      %v620 = vpack.c.b16 %v556, %v556
      %v621 = vpack.c.b16 %v557, %v557
      %v622 = vpack.c.b16 %v558, %v558
      %v623 = vpack.c.b16 %v559, %v559
      %v624 = vpack.c.b16 %v560, %v560
      %v625 = vpack.c.b16 %v561, %v561
      %v626 = vpack.c.b16 %v562, %v562
      %v627 = vpack.c.b16 %v563, %v563
      %v628 = vpack.c.b16 %v564, %v564
      %v629 = vpack.c.b16 %v565, %v565
      %v630 = vpack.c.b16 %v566, %v566
      %v631 = vpack.c.b16 %v567, %v567
      %v632 = vpack.c.b16 %v568, %v568
      %v633 = vpack.c.b16 %v569, %v569
      %v634 = vpack.c.b16 %v570, %v570
      %v635 = vpack.c.b16 %v571, %v571
      %v636 = vpack.c.b16 %v572, %v572
      %v637 = vpack.c.b16 %v573, %v573
      %v638 = vpack.c.b16 %v574, %v574
      %v639 = vpack.c.b16 %v575, %v575
      %v640 = vpack.c.b16 %v576, %v576
      %v641 = vpack.c.b16 %v577, %v577
      %v642 = vpack.c.b16 %v578, %v578
      %v643 = vpack.c.b16 %v579, %v579
      %v644 = vpack.c.b16 %v580, %v580
      %v645 = vpack.c.b16 %v581, %v581
      %v646 = vpack.c.b16 %v582, %v582
      %v647 = vpack.c.b16 %v583, %v583
      %v648 = vpack.c.b16 %v584, %v584
      %v649 = vpack.c.b16 %v585, %v585
      %v650 = vpack.c.b16 %v586, %v586
      %v651 = vpack.c.b16 %v587, %v587
      %v652 = vpack.c.b16 %v588, %v588
      %v653 = vpack.c.b16 %v589, %v589
      %v654 = vpack.c.b16 %v590, %v590
      %v655 = vpack.c.b16 %v591, %v591
      %v656 = vpack.c.b16 %v592, %v592
      %v657 = vpack.c.b16 %v593, %v593
      %v658 = vpack.c.b16 %v594, %v594
      %v659 = vpack.c.b16 %v595, %v595
      %v660 = vpack.c.b16 %v596, %v596
      %v661 = vpack.c.b16 %v597, %v597
      %v662 = vpack.c.b16 %v598, %v598
      %v663 = vpack.c.b16 %v599, %v599
      %v664 = vpack.c.b16 %v600, %v600
      %v665 = vpack.c.b16 %v601, %v601
      %v666 = vpack.c.b16 %v602, %v602
      %v667 = vpack.c.b16 %v603, %v603
      %v668 = vpack.c.b16 %v604, %v604
      %v669 = vpack.c.b16 %v605, %v605
      %v670 = vpack.c.b16 %v606, %v606
      %v671 = vpack.c.b16 %v607, %v607
      %vm736 = vcmask 125952
      %737 = vst.msk [vmem:[%s208] sm:$0xf] %vm736, %v608
      %738 = vst.msk [vmem:[%s208 + $0x4] sm:$0xf] %vm736, %v609
      %739 = vst.msk [vmem:[%s208 + $0x8] sm:$0xf] %vm736, %v610
      %740 = vst.msk [vmem:[%s208 + $0xc] sm:$0xf] %vm736, %v611
      %741 = vst.msk [vmem:[%s208 + $0x10] sm:$0xf] %vm736, %v612
      %742 = vst.msk [vmem:[%s208 + $0x14] sm:$0xf] %vm736, %v613
      %743 = vst.msk [vmem:[%s208 + $0x18] sm:$0xf] %vm736, %v614
      %744 = vst.msk [vmem:[%s208 + $0x1c] sm:$0xf] %vm736, %v615
      %745 = vst.msk [vmem:[%s208 + $0x20] sm:$0xf] %vm736, %v616
      %746 = vst.msk [vmem:[%s208 + $0x24] sm:$0xf] %vm736, %v617
      %747 = vst.msk [vmem:[%s208 + $0x28] sm:$0xf] %vm736, %v618
      %748 = vst.msk [vmem:[%s208 + $0x2c] sm:$0xf] %vm736, %v619
      %749 = vst.msk [vmem:[%s208 + $0x30] sm:$0xf] %vm736, %v620
      %750 = vst.msk [vmem:[%s208 + $0x34] sm:$0xf] %vm736, %v621
      %751 = vst.msk [vmem:[%s208 + $0x38] sm:$0xf] %vm736, %v622
      %752 = vst.msk [vmem:[%s208 + $0x3c] sm:$0xf] %vm736, %v623
      %753 = vst.msk [vmem:[%s208 + $0x40] sm:$0xf] %vm736, %v624
      %754 = vst.msk [vmem:[%s208 + $0x44] sm:$0xf] %vm736, %v625
      %755 = vst.msk [vmem:[%s208 + $0x48] sm:$0xf] %vm736, %v626
      %756 = vst.msk [vmem:[%s208 + $0x4c] sm:$0xf] %vm736, %v627
      %757 = vst.msk [vmem:[%s208 + $0x50] sm:$0xf] %vm736, %v628
      %758 = vst.msk [vmem:[%s208 + $0x54] sm:$0xf] %vm736, %v629
      %759 = vst.msk [vmem:[%s208 + $0x58] sm:$0xf] %vm736, %v630
      %760 = vst.msk [vmem:[%s208 + $0x5c] sm:$0xf] %vm736, %v631
      %761 = vst.msk [vmem:[%s208 + $0x60] sm:$0xf] %vm736, %v632
      %762 = vst.msk [vmem:[%s208 + $0x64] sm:$0xf] %vm736, %v633
      %763 = vst.msk [vmem:[%s208 + $0x68] sm:$0xf] %vm736, %v634
      %764 = vst.msk [vmem:[%s208 + $0x6c] sm:$0xf] %vm736, %v635
      %765 = vst.msk [vmem:[%s208 + $0x70] sm:$0xf] %vm736, %v636
      %766 = vst.msk [vmem:[%s208 + $0x74] sm:$0xf] %vm736, %v637
      %767 = vst.msk [vmem:[%s208 + $0x78] sm:$0xf] %vm736, %v638
      %768 = vst.msk [vmem:[%s208 + $0x7c] sm:$0xf] %vm736, %v639
      %769 = vst.msk [vmem:[%s208 + $0x80] sm:$0xf] %vm736, %v640
      %770 = vst.msk [vmem:[%s208 + $0x84] sm:$0xf] %vm736, %v641
      %771 = vst.msk [vmem:[%s208 + $0x88] sm:$0xf] %vm736, %v642
      %772 = vst.msk [vmem:[%s208 + $0x8c] sm:$0xf] %vm736, %v643
      %773 = vst.msk [vmem:[%s208 + $0x90] sm:$0xf] %vm736, %v644
      %774 = vst.msk [vmem:[%s208 + $0x94] sm:$0xf] %vm736, %v645
      %775 = vst.msk [vmem:[%s208 + $0x98] sm:$0xf] %vm736, %v646
      %776 = vst.msk [vmem:[%s208 + $0x9c] sm:$0xf] %vm736, %v647
      %777 = vst.msk [vmem:[%s208 + $0xa0] sm:$0xf] %vm736, %v648
      %778 = vst.msk [vmem:[%s208 + $0xa4] sm:$0xf] %vm736, %v649
      %779 = vst.msk [vmem:[%s208 + $0xa8] sm:$0xf] %vm736, %v650
      %780 = vst.msk [vmem:[%s208 + $0xac] sm:$0xf] %vm736, %v651
      %781 = vst.msk [vmem:[%s208 + $0xb0] sm:$0xf] %vm736, %v652
      %782 = vst.msk [vmem:[%s208 + $0xb4] sm:$0xf] %vm736, %v653
      %783 = vst.msk [vmem:[%s208 + $0xb8] sm:$0xf] %vm736, %v654
      %784 = vst.msk [vmem:[%s208 + $0xbc] sm:$0xf] %vm736, %v655
      %785 = vst.msk [vmem:[%s208 + $0xc0] sm:$0xf] %vm736, %v656
      %786 = vst.msk [vmem:[%s208 + $0xc4] sm:$0xf] %vm736, %v657
      %787 = vst.msk [vmem:[%s208 + $0xc8] sm:$0xf] %vm736, %v658
      %788 = vst.msk [vmem:[%s208 + $0xcc] sm:$0xf] %vm736, %v659
      %789 = vst.msk [vmem:[%s208 + $0xd0] sm:$0xf] %vm736, %v660
      %790 = vst.msk [vmem:[%s208 + $0xd4] sm:$0xf] %vm736, %v661
      %791 = vst.msk [vmem:[%s208 + $0xd8] sm:$0xf] %vm736, %v662
      %792 = vst.msk [vmem:[%s208 + $0xdc] sm:$0xf] %vm736, %v663
      %793 = vst.msk [vmem:[%s208 + $0xe0] sm:$0xf] %vm736, %v664
      %794 = vst.msk [vmem:[%s208 + $0xe4] sm:$0xf] %vm736, %v665
      %795 = vst.msk [vmem:[%s208 + $0xe8] sm:$0xf] %vm736, %v666
      %796 = vst.msk [vmem:[%s208 + $0xec] sm:$0xf] %vm736, %v667
      %797 = vst.msk [vmem:[%s208 + $0xf0] sm:$0xf] %vm736, %v668
      %798 = vst.msk [vmem:[%s208 + $0xf4] sm:$0xf] %vm736, %v669
      %799 = vst.msk [vmem:[%s208 + $0xf8] sm:$0xf] %vm736, %v670
      %800 = vst.msk [vmem:[%s208 + $0xfc] sm:$0xf] %vm736, %v671
      %s801 = smul.u32 64, %s19
      %p802 = scmp.lt.s32.totalorder %s18, 3
      %s803 = scalar_select %p802, %s18, 3
      %p804 = scmp.lt.s32.totalorder %s801, 63
      %s805 = scalar_select %p804, %s801, 63
      %s806 = smul.addr %s803, 64
      %s807 = sadd.s32 %s805, %s806
      %s808 = smul.addr %s807, 4
      %s809 = scalar_lea.vmem %s3, %s808
      // Predicated region
      $region33: #{generator_forward.16} parent=31 // pred_check
        %p810 = pneg %p116
      $region34: #{generator_forward.16} parent=31 // pred_check_branch
        %812 = sbr.rel (%p810) target = $region36
      $region35: #{generator_forward.16} parent=31 // pred_region
        %s813 = smul.u32 64, %s19
      $region36: #{generator_forward.16} parent=31 // pred_fallthru
        _
    $region32: #{generator_forward.16} parent=5 // pred_fallthru
      _
    %p814 = scmp.le.s32.totalorder 2, %s9
    // Predicated region
    $region37: #{generator_forward.16} parent=5 // pred_check
      %p815 = pneg %p814
    $region38: #{generator_forward.16} parent=5 // pred_check_branch
      %817 = sbr.rel (%p815) target = $region40
    $region39: #{generator_forward.16} parent=5 // pred_region
      %s818 = ssub.s32 %s9, 2
      // Predicated region
      $region41: #{generator_forward.16} parent=39 // pred_check
        %p819 = pneg %p122
      $region42: #{generator_forward.16} parent=39 // pred_check_branch
        %821 = sbr.rel (%p819) target = $region44
      $region43: #{generator_forward.16} parent=39 // pred_region
        %s822 = smul.u32 64, %s21
        %p823 = scmp.lt.s32.totalorder %s20, 3
        %s824 = scalar_select %p823, %s20, 3
        %p825 = scmp.lt.s32.totalorder %s822, 63
        %s826 = scalar_select %p825, %s822, 63
        %s827 = smul.addr %s824, 64
        %s828 = sadd.s32 %s826, %s827
        %s829 = smul.addr %s828, 4
        %s830 = scalar_lea.vmem %s3, %s829
      $region44: #{generator_forward.16} parent=39 // pred_fallthru
        _
    $region40: #{generator_forward.16} parent=5 // pred_fallthru
      _
  $region6: #{generator_forward.16} parent=0 // loop_footer
    %s13 = sadd.s32 1, %s9
  $region7: #{generator_forward.16} parent=0 // loop_footer_branch
    %8 = sbr.rel target = $region3
  $region8: #{generator_forward.16} parent=0 // loop_exit
    _

// kernel: generator_forward.15
$region0: #{generator_forward.15}
  #allocation0 [shape = 'u32[]', space=smem, size = 0x4, offset = 0x4, fixed_abs, tag = 'smem constant byte address 0x4 - core index']
  #allocation1 [shape = 'u32[144,128]{1,0:T(1,128)}', space=vmem, size = 0x12000, scoped, tag = 'internal scratch']
  %s0 = inlined_call_operand.vmem [shape: bf16[4,512,128], index: 0, kind: input, shape index: {}]
  %s1 = inlined_call_operand.vmem [shape: bf16[4,128,16], index: 1, kind: input, shape index: {}]
  %s2 = inlined_call_operand.vmem [shape: f32[1,16], index: 2, kind: input, shape index: {}]
  %s3 = inlined_call_operand.vmem [shape: f32[4,512,16], index: 3, kind: output, shape index: {0}]
  %s4 = inlined_call_operand.vmem [shape: f32[1,16], index: 4, kind: output, shape index: {1}]
  %s5 = inlined_call_operand.vmem [shape: f32[1,16], index: 5, kind: output, shape index: {2}]
  %6 = xla_tuple %s3, %s4, %s5
  %s7 = sld [smem:[#allocation0]]
  $region65: #{generator_forward.15} parent=0
    _
  %s9 = ssub.s32 1, %s7
  %s10 = scalar_select 0, %s9, %s7
  loop: start=0, step=1, limit=6
  $region2: #{generator_forward.15} parent=0 // loop_pre_header
    _
  $region3: #{generator_forward.15} parent=0 // loop_header
    %s12 = sphi 0, %s16
    %p13 = scmp.ge.s32.totalorder %s12, 6
    %s19 = sphi 0, %s31
    %s20 = sphi 0, %s27
    %s21 = sphi 0, %s19
    %s22 = sphi 0, %s20
    %s23 = sphi 0, %s21
    %s24 = sphi 0, %s22
    %s36 = sphi 0, %s38
    %s39 = sphi 0, %s36
    %s40 = sphi 0, %s39
    %s56 = sphi 0, %s40
    %s62 = sphi 0, %s64
    %s65 = sphi 0, %s62
    %s66 = sphi 0, %s65
    %s82 = sphi 0, %s66
    %s86 = sphi 0, %s86
    %s88 = sphi 0, %s86
    %s89 = sphi 0, %s88
    %s103 = sphi 0, %s89
    %s111 = sphi 0, %s113
    %s114 = sphi 0, %s111
    %s115 = sphi 0, %s114
    %s131 = sphi 0, %s115
    %s135 = sphi 0, %s135
    %s137 = sphi 0, %s135
    %s138 = sphi 0, %s137
    %s152 = sphi 0, %s138
    %s156 = sphi 0, %s156
    %s158 = sphi 0, %s156
    %s159 = sphi 0, %s158
    %s173 = sphi 0, %s159
  $region4: #{generator_forward.15} parent=0 // loop_header_branch
    %15 = sbr.rel (%p13) target = $region8
  $region5: #{generator_forward.15} parent=0 // loop_body
    %s17 = ssub.s32 %s12, 1
    %s18 = ssub.s32 %s12, 2
    %s25 = sadd.s32 1, %s20
    %p26 = scmp.ge.s32.totalorder %s25, 1
    %s27 = scalar_select %p26, 0, %s25
    %s28 = sadd.s32 1, %s19
    %s29 = scalar_select %p26, %s28, %s19
    %p30 = scmp.ge.s32.totalorder %s29, 4
    %s31 = scalar_select %p30, 0, %s29
    %s32 = ssub.s32 %s19, %s31
    %s33 = ssub.s32 %s20, %s27
    %s34 = sor.u32 %s32, %s33
    %p35 = scmp.eq.s32.totalorder %s34, 0
    %s37 = sadd.s32 %s36, 1
    %s38 = scalar_select %p35, %s36, %s37
    %p41 = pneg %p35
    %p42 = scmp.eq.s32.totalorder %s12, 3
    %p43 = por %p41, %p42
    %p44 = scmp.ne.s32.totalorder %s36, %s39
    %p45 = scmp.eq.s32.totalorder %s12, 0
    %p46 = por %p44, %p45
    %p47 = scmp.ne.s32.totalorder %s36, %s39
    %p48 = scmp.eq.s32.totalorder %s17, 3
    %p49 = por %p47, %p48
    %p50 = scmp.ne.s32.totalorder %s39, %s40
    %p51 = scmp.eq.s32.totalorder %s17, 0
    %p52 = por %p50, %p51
    %p53 = scmp.ne.s32.totalorder %s39, %s40
    %p54 = scmp.eq.s32.totalorder %s18, 3
    %p55 = por %p53, %p54
    %p57 = scmp.ne.s32.totalorder %s40, %s56
    %p58 = scmp.eq.s32.totalorder %s18, 0
    %p59 = por %p57, %p58
    %s60 = ssub.s32 %s19, %s31
    %p61 = scmp.eq.s32.totalorder %s60, 0
    %s63 = sadd.s32 %s62, 1
    %s64 = scalar_select %p61, %s62, %s63
    %p67 = pneg %p61
    %p68 = scmp.eq.s32.totalorder %s12, 3
    %p69 = por %p67, %p68
    %p70 = scmp.ne.s32.totalorder %s62, %s65
    %p71 = scmp.eq.s32.totalorder %s12, 0
    %p72 = por %p70, %p71
    %p73 = scmp.ne.s32.totalorder %s62, %s65
    %p74 = scmp.eq.s32.totalorder %s17, 3
    %p75 = por %p73, %p74
    %p76 = scmp.ne.s32.totalorder %s65, %s66
    %p77 = scmp.eq.s32.totalorder %s17, 0
    %p78 = por %p76, %p77
    %p79 = scmp.ne.s32.totalorder %s65, %s66
    %p80 = scmp.eq.s32.totalorder %s18, 3
    %p81 = por %p79, %p80
    %p83 = scmp.ne.s32.totalorder %s66, %s82
    %p84 = scmp.eq.s32.totalorder %s18, 0
    %p85 = por %p83, %p84
    %s87 = sadd.s32 %s86, 1
    %p90 = scmp.eq.s32.totalorder %s12, 3
    %p91 = scmp.ne.s32.totalorder %s86, %s88
    %p92 = scmp.eq.s32.totalorder %s12, 0
    %p93 = por %p91, %p92
    %p94 = scmp.ne.s32.totalorder %s86, %s88
    %p95 = scmp.eq.s32.totalorder %s17, 3
    %p96 = por %p94, %p95
    %p97 = scmp.ne.s32.totalorder %s88, %s89
    %p98 = scmp.eq.s32.totalorder %s17, 0
    %p99 = por %p97, %p98
    %p100 = scmp.ne.s32.totalorder %s88, %s89
    %p101 = scmp.eq.s32.totalorder %s18, 3
    %p102 = por %p100, %p101
    %p104 = scmp.ne.s32.totalorder %s89, %s103
    %p105 = scmp.eq.s32.totalorder %s18, 0
    %p106 = por %p104, %p105
    %s107 = ssub.s32 %s19, %s31
    %s108 = ssub.s32 %s20, %s27
    %s109 = sor.u32 %s107, %s108
    %p110 = scmp.eq.s32.totalorder %s109, 0
    %s112 = sadd.s32 %s111, 1
    %s113 = scalar_select %p110, %s111, %s112
    %p116 = pneg %p110
    %p117 = scmp.eq.s32.totalorder %s12, 3
    %p118 = por %p116, %p117
    %p119 = scmp.ne.s32.totalorder %s111, %s114
    %p120 = scmp.eq.s32.totalorder %s12, 0
    %p121 = por %p119, %p120
    %p122 = scmp.ne.s32.totalorder %s111, %s114
    %p123 = scmp.eq.s32.totalorder %s17, 3
    %p124 = por %p122, %p123
    %p125 = scmp.ne.s32.totalorder %s114, %s115
    %p126 = scmp.eq.s32.totalorder %s17, 0
    %p127 = por %p125, %p126
    %p128 = scmp.ne.s32.totalorder %s114, %s115
    %p129 = scmp.eq.s32.totalorder %s18, 3
    %p130 = por %p128, %p129
    %p132 = scmp.ne.s32.totalorder %s115, %s131
    %p133 = scmp.eq.s32.totalorder %s18, 0
    %p134 = por %p132, %p133
    %s136 = sadd.s32 %s135, 1
    %p139 = scmp.eq.s32.totalorder %s12, 3
    %p140 = scmp.ne.s32.totalorder %s135, %s137
    %p141 = scmp.eq.s32.totalorder %s12, 0
    %p142 = por %p140, %p141
    %p143 = scmp.ne.s32.totalorder %s135, %s137
    %p144 = scmp.eq.s32.totalorder %s17, 3
    %p145 = por %p143, %p144
    %p146 = scmp.ne.s32.totalorder %s137, %s138
    %p147 = scmp.eq.s32.totalorder %s17, 0
    %p148 = por %p146, %p147
    %p149 = scmp.ne.s32.totalorder %s137, %s138
    %p150 = scmp.eq.s32.totalorder %s18, 3
    %p151 = por %p149, %p150
    %p153 = scmp.ne.s32.totalorder %s138, %s152
    %p154 = scmp.eq.s32.totalorder %s18, 0
    %p155 = por %p153, %p154
    %s157 = sadd.s32 %s156, 1
    %p160 = scmp.eq.s32.totalorder %s12, 3
    %p161 = scmp.ne.s32.totalorder %s156, %s158
    %p162 = scmp.eq.s32.totalorder %s12, 0
    %p163 = por %p161, %p162
    %p164 = scmp.ne.s32.totalorder %s156, %s158
    %p165 = scmp.eq.s32.totalorder %s17, 3
    %p166 = por %p164, %p165
    %p167 = scmp.ne.s32.totalorder %s158, %s159
    %p168 = scmp.eq.s32.totalorder %s17, 0
    %p169 = por %p167, %p168
    %p170 = scmp.ne.s32.totalorder %s158, %s159
    %p171 = scmp.eq.s32.totalorder %s18, 3
    %p172 = por %p170, %p171
    %p174 = scmp.ne.s32.totalorder %s159, %s173
    %p175 = scmp.eq.s32.totalorder %s18, 0
    %p176 = por %p174, %p175
    %p177 = scmp.le.s32.totalorder 1, %s12
    %p178 = scmp.lt.s32.totalorder %s12, 5
    %p179 = pnand %p177, %p178
    %p180 = pneg %p179
    // Predicated region
    $region9: #{generator_forward.15} parent=5 // pred_check
      _
    $region10: #{generator_forward.15} parent=5 // pred_check_branch
      %182 = sbr.rel (%p179) target = $region12
    $region11: #{generator_forward.15} parent=5 // pred_region
      %s183 = ssub.s32 %s12, 1
      // Predicated region
      $region13: #{generator_forward.15} parent=11 // pred_check
        %p184 = pneg %p99
      $region14: #{generator_forward.15} parent=11 // pred_check_branch
        %186 = sbr.rel (%p184) target = $region16
      $region15: #{generator_forward.15} parent=11 // pred_region
        _
      $region16: #{generator_forward.15} parent=11 // pred_fallthru
        _
    $region12: #{generator_forward.15} parent=5 // pred_fallthru
      _
    %p187 = scmp.lt.s32.totalorder %s12, 4
    // Predicated region
    $region17: #{generator_forward.15} parent=5 // pred_check
      %p188 = pneg %p187
    $region18: #{generator_forward.15} parent=5 // pred_check_branch
      %190 = sbr.rel (%p188) target = $region20
    $region19: #{generator_forward.15} parent=5 // pred_region
      // Predicated region
      $region21: #{generator_forward.15} parent=19 // pred_check
        %p191 = pneg %p46
      $region22: #{generator_forward.15} parent=19 // pred_check_branch
        %193 = sbr.rel (%p191) target = $region24
      $region23: #{generator_forward.15} parent=19 // pred_region
        %s194 = smul.u32 64, %s20
        %p195 = scmp.lt.s32.totalorder %s19, 3
        %s196 = scalar_select %p195, %s19, 3
        %p197 = scmp.lt.s32.totalorder %s194, 63
        %s198 = scalar_select %p197, %s194, 63
        %s199 = smul.addr %s196, 64
        %s200 = sadd.s32 %s198, %s199
        %s201 = smul.addr %s200, 4
        %s202 = scalar_lea.vmem %s0, %s201
        %s203 = smul.u32 64, %s20
      $region24: #{generator_forward.15} parent=19 // pred_fallthru
        _
      // Predicated region
      $region25: #{generator_forward.15} parent=19 // pred_check
        %p204 = pneg %p72
      $region26: #{generator_forward.15} parent=19 // pred_check_branch
        %206 = sbr.rel (%p204) target = $region28
      $region27: #{generator_forward.15} parent=19 // pred_region
        %p207 = scmp.lt.s32.totalorder %s19, 3
        %s208 = scalar_select %p207, %s19, 3
        %s209 = smul.addr %s208, 16
        %s210 = smul.addr %s209, 4
        %s211 = scalar_lea.vmem %s1, %s210
      $region28: #{generator_forward.15} parent=19 // pred_fallthru
        _
    $region20: #{generator_forward.15} parent=5 // pred_fallthru
      _
    %p212 = scmp.le.s32.totalorder 1, %s12
    %p213 = scmp.lt.s32.totalorder %s12, 5
    %p214 = pnand %p212, %p213
    %p215 = pneg %p214
    // Predicated region
    $region29: #{generator_forward.15} parent=5 // pred_check
      _
    $region30: #{generator_forward.15} parent=5 // pred_check_branch
      %217 = sbr.rel (%p214) target = $region32
    $region31: #{generator_forward.15} parent=5 // pred_region
      %s218 = ssub.s32 %s12, 1
      %s219 = smul.u32 64, %s22
      %p220 = scmp.lt.s32.totalorder %s21, 3
      %s221 = scalar_select %p220, %s21, 3
      %p222 = scmp.lt.s32.totalorder %s219, 63
      %s223 = scalar_select %p222, %s219, 63
      %s224 = smul.addr %s221, 64
      %s225 = sadd.s32 %s223, %s224
      %s226 = smul.addr %s225, 4
      %s227 = scalar_lea.vmem %s0, %s226
      %p228 = pneg %p52
      %p229 = pneg %p49
      %p230 = scmp.lt.s32.totalorder %s21, 3
      %s231 = scalar_select %p230, %s21, 3
      %s232 = smul.addr %s231, 16
      %s233 = smul.addr %s232, 4
      %s234 = scalar_lea.vmem %s1, %s233
      %p235 = pneg %p78
      %p236 = pneg %p75
      %p237 = pneg %p99
      %p238 = pneg %p96
      %p239 = pneg %p127
      %p240 = pneg %p124
      %s241 = smul.u32 64, %s22
      %p242 = scmp.lt.s32.totalorder %s21, 3
      %s243 = scalar_select %p242, %s21, 3
      %p244 = scmp.lt.s32.totalorder %s241, 63
      %s245 = scalar_select %p244, %s241, 63
      %s246 = smul.addr %s243, 64
      %s247 = sadd.s32 %s245, %s246
      %s248 = smul.addr %s247, 8
      %s249 = scalar_lea.vmem %s3, %s248
      %p250 = pneg %p148
      %p251 = pneg %p145
      %p252 = pneg %p169
      %p253 = pneg %p166
      %s254 = smul.u32 64, %s22
      %p255 = scmp.lt.s32.totalorder %s21, 3
      %s256 = scalar_select %p255, %s21, 3
      %p257 = scmp.lt.s32.totalorder %s254, 63
      %s258 = scalar_select %p257, %s254, 63
      %s259 = smul.addr %s256, 64
      %s260 = sadd.s32 %s258, %s259
      %s261 = smul.addr %s260, 4
      %s262 = scalar_lea.vmem %s0, %s261
      %s263 = smul.u32 64, %s22
      %p264 = scmp.lt.s32.totalorder %s21, 3
      %s265 = scalar_select %p264, %s21, 3
      %s266 = smul.addr %s265, 16
      %s267 = smul.addr %s266, 4
      %s268 = scalar_lea.vmem %s1, %s267
      %s269 = smul.u32 64, %s22
      %p270 = scmp.lt.s32.totalorder %s21, 3
      %s271 = scalar_select %p270, %s21, 3
      %p272 = scmp.lt.s32.totalorder %s269, 63
      %s273 = scalar_select %p272, %s269, 63
      %s274 = smul.addr %s271, 64
      %s275 = sadd.s32 %s273, %s274
      %s276 = smul.addr %s275, 8
      %s277 = scalar_lea.vmem %s3, %s276
      %s278 = smul.u32 64, %s22
      %p280 = scmp.eq.s32.totalorder %s21, 0
      %p281 = scmp.eq.s32.totalorder %s22, 0
      %p282 = pnand %p280, %p281
      %p283 = pneg %p282
      // Predicated region
      $region33: #{generator_forward.15} parent=31 // pred_check
        _
      $region34: #{generator_forward.15} parent=31 // pred_check_branch
        %285 = sbr.rel (%p282) target = $region36
      $region35: #{generator_forward.15} parent=31 // pred_region
        %vm286 = vcmask 122880
        %287 = vst.msk [vmem:[%s4] sm:$0x1] %vm286, 0.0
        %288 = vst.msk [vmem:[%s5] sm:$0x1] %vm286, 0.0
      $region36: #{generator_forward.15} parent=31 // pred_fallthru
        _
      %v289 = vld [vmem:[%s262] sm:$0xf]
      %v290 = vld [vmem:[%s262 + $0x4] sm:$0xf]
      %v291 = vld [vmem:[%s262 + $0x8] sm:$0xf]
      %v292 = vld [vmem:[%s262 + $0xc] sm:$0xf]
      %v293 = vld [vmem:[%s262 + $0x10] sm:$0xf]
      %v294 = vld [vmem:[%s262 + $0x14] sm:$0xf]
      %v295 = vld [vmem:[%s262 + $0x18] sm:$0xf]
      %v296 = vld [vmem:[%s262 + $0x1c] sm:$0xf]
      %v297 = vld [vmem:[%s262 + $0x20] sm:$0xf]
      %v298 = vld [vmem:[%s262 + $0x24] sm:$0xf]
      %v299 = vld [vmem:[%s262 + $0x28] sm:$0xf]
      %v300 = vld [vmem:[%s262 + $0x2c] sm:$0xf]
      %v301 = vld [vmem:[%s262 + $0x30] sm:$0xf]
      %v302 = vld [vmem:[%s262 + $0x34] sm:$0xf]
      %v303 = vld [vmem:[%s262 + $0x38] sm:$0xf]
      %v304 = vld [vmem:[%s262 + $0x3c] sm:$0xf]
      %v305 = vld [vmem:[%s262 + $0x40] sm:$0xf]
      %v306 = vld [vmem:[%s262 + $0x44] sm:$0xf]
      %v307 = vld [vmem:[%s262 + $0x48] sm:$0xf]
      %v308 = vld [vmem:[%s262 + $0x4c] sm:$0xf]
      %v309 = vld [vmem:[%s262 + $0x50] sm:$0xf]
      %v310 = vld [vmem:[%s262 + $0x54] sm:$0xf]
      %v311 = vld [vmem:[%s262 + $0x58] sm:$0xf]
      %v312 = vld [vmem:[%s262 + $0x5c] sm:$0xf]
      %v313 = vld [vmem:[%s262 + $0x60] sm:$0xf]
      %v314 = vld [vmem:[%s262 + $0x64] sm:$0xf]
      %v315 = vld [vmem:[%s262 + $0x68] sm:$0xf]
      %v316 = vld [vmem:[%s262 + $0x6c] sm:$0xf]
      %v317 = vld [vmem:[%s262 + $0x70] sm:$0xf]
      %v318 = vld [vmem:[%s262 + $0x74] sm:$0xf]
      %v319 = vld [vmem:[%s262 + $0x78] sm:$0xf]
      %v320 = vld [vmem:[%s262 + $0x7c] sm:$0xf]
      %v321 = vld [vmem:[%s262 + $0x80] sm:$0xf]
      %v322 = vld [vmem:[%s262 + $0x84] sm:$0xf]
      %v323 = vld [vmem:[%s262 + $0x88] sm:$0xf]
      %v324 = vld [vmem:[%s262 + $0x8c] sm:$0xf]
      %v325 = vld [vmem:[%s262 + $0x90] sm:$0xf]
      %v326 = vld [vmem:[%s262 + $0x94] sm:$0xf]
      %v327 = vld [vmem:[%s262 + $0x98] sm:$0xf]
      %v328 = vld [vmem:[%s262 + $0x9c] sm:$0xf]
      %v329 = vld [vmem:[%s262 + $0xa0] sm:$0xf]
      %v330 = vld [vmem:[%s262 + $0xa4] sm:$0xf]
      %v331 = vld [vmem:[%s262 + $0xa8] sm:$0xf]
      %v332 = vld [vmem:[%s262 + $0xac] sm:$0xf]
      %v333 = vld [vmem:[%s262 + $0xb0] sm:$0xf]
      %v334 = vld [vmem:[%s262 + $0xb4] sm:$0xf]
      %v335 = vld [vmem:[%s262 + $0xb8] sm:$0xf]
      %v336 = vld [vmem:[%s262 + $0xbc] sm:$0xf]
      %v337 = vld [vmem:[%s262 + $0xc0] sm:$0xf]
      %v338 = vld [vmem:[%s262 + $0xc4] sm:$0xf]
      %v339 = vld [vmem:[%s262 + $0xc8] sm:$0xf]
      %v340 = vld [vmem:[%s262 + $0xcc] sm:$0xf]
      %v341 = vld [vmem:[%s262 + $0xd0] sm:$0xf]
      %v342 = vld [vmem:[%s262 + $0xd4] sm:$0xf]
      %v343 = vld [vmem:[%s262 + $0xd8] sm:$0xf]
      %v344 = vld [vmem:[%s262 + $0xdc] sm:$0xf]
      %v345 = vld [vmem:[%s262 + $0xe0] sm:$0xf]
      %v346 = vld [vmem:[%s262 + $0xe4] sm:$0xf]
      %v347 = vld [vmem:[%s262 + $0xe8] sm:$0xf]
      %v348 = vld [vmem:[%s262 + $0xec] sm:$0xf]
      %v349 = vld [vmem:[%s262 + $0xf0] sm:$0xf]
      %v350 = vld [vmem:[%s262 + $0xf4] sm:$0xf]
      %v351 = vld [vmem:[%s262 + $0xf8] sm:$0xf]
      %v352 = vld [vmem:[%s262 + $0xfc] sm:$0xf]
      %v353 = vld [vmem:[%s268] sm:$0xf]
      %v354 = vld [vmem:[%s268 + $0x4] sm:$0xf]
      %v355 = vld [vmem:[%s268 + $0x8] sm:$0xf]
      %v356 = vld [vmem:[%s268 + $0xc] sm:$0xf]
      %v357 = vld [vmem:[%s268 + $0x10] sm:$0xf]
      %v358 = vld [vmem:[%s268 + $0x14] sm:$0xf]
      %v359 = vld [vmem:[%s268 + $0x18] sm:$0xf]
      %v360 = vld [vmem:[%s268 + $0x1c] sm:$0xf]
      %v361 = vld [vmem:[%s268 + $0x20] sm:$0xf]
      %v362 = vld [vmem:[%s268 + $0x24] sm:$0xf]
      %v363 = vld [vmem:[%s268 + $0x28] sm:$0xf]
      %v364 = vld [vmem:[%s268 + $0x2c] sm:$0xf]
      %v365 = vld [vmem:[%s268 + $0x30] sm:$0xf]
      %v366 = vld [vmem:[%s268 + $0x34] sm:$0xf]
      %v367 = vld [vmem:[%s268 + $0x38] sm:$0xf]
      %v368 = vld [vmem:[%s268 + $0x3c] sm:$0xf]
      %v369 = vld [vmem:[%s2] sm:$0x1]
      %v371 = vlaneseq
      %v372 = vshrl.u32 %v371, 7
      %v373 = vsub.s32 0, %v372
      %v374 = vrot.slane %v369, %v373
      %v440 = vunpack.c.l.b16 %v289
      %v441 = vunpack.c.l.b16 %v290
      %v442 = vunpack.c.l.b16 %v291
      %v443 = vunpack.c.l.b16 %v292
      %v444 = vunpack.c.l.b16 %v293
      %v445 = vunpack.c.l.b16 %v294
      %v446 = vunpack.c.l.b16 %v295
      %v447 = vunpack.c.l.b16 %v296
      %v448 = vunpack.c.l.b16 %v297
      %v449 = vunpack.c.l.b16 %v298
      %v450 = vunpack.c.l.b16 %v299
      %v451 = vunpack.c.l.b16 %v300
      %v452 = vunpack.c.l.b16 %v301
      %v453 = vunpack.c.l.b16 %v302
      %v454 = vunpack.c.l.b16 %v303
      %v455 = vunpack.c.l.b16 %v304
      %v456 = vunpack.c.l.b16 %v305
      %v457 = vunpack.c.l.b16 %v306
      %v458 = vunpack.c.l.b16 %v307
      %v459 = vunpack.c.l.b16 %v308
      %v460 = vunpack.c.l.b16 %v309
      %v461 = vunpack.c.l.b16 %v310
      %v462 = vunpack.c.l.b16 %v311
      %v463 = vunpack.c.l.b16 %v312
      %v464 = vunpack.c.l.b16 %v313
      %v465 = vunpack.c.l.b16 %v314
      %v466 = vunpack.c.l.b16 %v315
      %v467 = vunpack.c.l.b16 %v316
      %v468 = vunpack.c.l.b16 %v317
      %v469 = vunpack.c.l.b16 %v318
      %v470 = vunpack.c.l.b16 %v319
      %v471 = vunpack.c.l.b16 %v320
      %v472 = vunpack.c.l.b16 %v321
      %v473 = vunpack.c.l.b16 %v322
      %v474 = vunpack.c.l.b16 %v323
      %v475 = vunpack.c.l.b16 %v324
      %v476 = vunpack.c.l.b16 %v325
      %v477 = vunpack.c.l.b16 %v326
      %v478 = vunpack.c.l.b16 %v327
      %v479 = vunpack.c.l.b16 %v328
      %v480 = vunpack.c.l.b16 %v329
      %v481 = vunpack.c.l.b16 %v330
      %v482 = vunpack.c.l.b16 %v331
      %v483 = vunpack.c.l.b16 %v332
      %v484 = vunpack.c.l.b16 %v333
      %v485 = vunpack.c.l.b16 %v334
      %v486 = vunpack.c.l.b16 %v335
      %v487 = vunpack.c.l.b16 %v336
      %v488 = vunpack.c.l.b16 %v337
      %v489 = vunpack.c.l.b16 %v338
      %v490 = vunpack.c.l.b16 %v339
      %v491 = vunpack.c.l.b16 %v340
      %v492 = vunpack.c.l.b16 %v341
      %v493 = vunpack.c.l.b16 %v342
      %v494 = vunpack.c.l.b16 %v343
      %v495 = vunpack.c.l.b16 %v344
      %v496 = vunpack.c.l.b16 %v345
      %v497 = vunpack.c.l.b16 %v346
      %v498 = vunpack.c.l.b16 %v347
      %v499 = vunpack.c.l.b16 %v348
      %v500 = vunpack.c.l.b16 %v349
      %v501 = vunpack.c.l.b16 %v350
      %v502 = vunpack.c.l.b16 %v351
      %v503 = vunpack.c.l.b16 %v352
      %v504 = vpack.c.b16 %v441, %v440
      %v505 = vpack.c.b16 %v443, %v442
      %v506 = vpack.c.b16 %v445, %v444
      %v507 = vpack.c.b16 %v447, %v446
      %v508 = vpack.c.b16 %v449, %v448
      %v509 = vpack.c.b16 %v451, %v450
      %v510 = vpack.c.b16 %v453, %v452
      %v511 = vpack.c.b16 %v455, %v454
      %v512 = vpack.c.b16 %v457, %v456
      %v513 = vpack.c.b16 %v459, %v458
      %v514 = vpack.c.b16 %v461, %v460
      %v515 = vpack.c.b16 %v463, %v462
      %v516 = vpack.c.b16 %v465, %v464
      %v517 = vpack.c.b16 %v467, %v466
      %v518 = vpack.c.b16 %v469, %v468
      %v519 = vpack.c.b16 %v471, %v470
      %v520 = vpack.c.b16 %v473, %v472
      %v521 = vpack.c.b16 %v475, %v474
      %v522 = vpack.c.b16 %v477, %v476
      %v523 = vpack.c.b16 %v479, %v478
      %v524 = vpack.c.b16 %v481, %v480
      %v525 = vpack.c.b16 %v483, %v482
      %v526 = vpack.c.b16 %v485, %v484
      %v527 = vpack.c.b16 %v487, %v486
      %v528 = vpack.c.b16 %v489, %v488
      %v529 = vpack.c.b16 %v491, %v490
      %v530 = vpack.c.b16 %v493, %v492
      %v531 = vpack.c.b16 %v495, %v494
      %v532 = vpack.c.b16 %v497, %v496
      %v533 = vpack.c.b16 %v499, %v498
      %v534 = vpack.c.b16 %v501, %v500
      %v535 = vpack.c.b16 %v503, %v502
      %v584 = vunpack.c.l.b16 %v353
      %v585 = vunpack.c.l.b16 %v354
      %v586 = vunpack.c.l.b16 %v355
      %v587 = vunpack.c.l.b16 %v356
      %v588 = vunpack.c.l.b16 %v357
      %v589 = vunpack.c.l.b16 %v358
      %v590 = vunpack.c.l.b16 %v359
      %v591 = vunpack.c.l.b16 %v360
      %v592 = vunpack.c.l.b16 %v361
      %v593 = vunpack.c.l.b16 %v362
      %v594 = vunpack.c.l.b16 %v363
      %v595 = vunpack.c.l.b16 %v364
      %v596 = vunpack.c.l.b16 %v365
      %v597 = vunpack.c.l.b16 %v366
      %v598 = vunpack.c.l.b16 %v367
      %v599 = vunpack.c.l.b16 %v368
      %v600 = vpack.c.b16 %v585, %v584
      %v601 = vpack.c.b16 %v587, %v586
      %v602 = vpack.c.b16 %v589, %v588
      %v603 = vpack.c.b16 %v591, %v590
      %v604 = vpack.c.b16 %v593, %v592
      %v605 = vpack.c.b16 %v595, %v594
      %v606 = vpack.c.b16 %v597, %v596
      %v607 = vpack.c.b16 %v599, %v598
      %616 = vmatprep.subr.bf16.mxu0 0
      %617 = vmatpush1.bf16.msra.mxu0 %v600
      %618 = vmatprep.subr.bf16.mxu0 0
      %619 = vmatpush1.bf16.msra.mxu0 %v601
      %620 = vmatprep.subr.bf16.mxu0 0
      %621 = vmatpush1.bf16.msra.mxu0 %v602
      %622 = vmatprep.subr.bf16.mxu0 0
      %623 = vmatpush1.bf16.msra.mxu0 %v603
      %624 = vmatprep.subr.bf16.mxu0 0
      %625 = vmatpush1.bf16.msra.mxu0 %v604
      %626 = vmatprep.subr.bf16.mxu0 0
      %627 = vmatpush1.bf16.msra.mxu0 %v605
      %628 = vmatprep.subr.bf16.mxu0 0
      %629 = vmatpush1.bf16.msra.mxu0 %v606
      %630 = vmatprep.subr.bf16.mxu0 0
      %631 = vmatpush1.bf16.msra.mxu0 %v607
      %632 = vmatprep.subr.bf16.mxu0 0
      %633 = vmatpush1.bf16.msra.mxu0 0
      %634 = vmatprep.subr.bf16.mxu0 0
      %635 = vmatpush1.bf16.msra.mxu0 0
      %636 = vmatprep.subr.bf16.mxu0 0
      %637 = vmatpush1.bf16.msra.mxu0 0
      %638 = vmatprep.subr.bf16.mxu0 0
      %639 = vmatpush1.bf16.msra.mxu0 0
      %640 = vmatprep.subr.bf16.mxu0 0
      %641 = vmatpush1.bf16.msra.mxu0 0
      %642 = vmatprep.subr.bf16.mxu0 0
      %643 = vmatpush1.bf16.msra.mxu0 0
      %644 = vmatprep.subr.bf16.mxu0 0
      %645 = vmatpush1.bf16.msra.mxu0 0
      %646 = vmatprep.subr.bf16.mxu0 0
      %647 = vmatpush1.bf16.msra.mxu0 0
      %648 = vmatprep.mubr.bf16.mxu0 0
      %649 = vmatmul.mubr.bf16.gmra.mrb[0].mxu0 %v504
      %v650 = vpop.f32.mrb[0].mxu0
      %v651 = vadd.f32 %v374, %v650
      %v652 = vpop.f32.mrb[0].mxu0
      %v653 = vpop.f32.mrb[0].mxu0
      %v654 = vadd.f32 %v374, %v653
      %v655 = vpop.f32.mrb[0].mxu0
      %656 = vmatprep.mubr.bf16.mxu0 0
      %657 = vmatmul.mubr.bf16.gmra.mrb[0].mxu0 %v505
      %v658 = vpop.f32.mrb[0].mxu0
      %v659 = vadd.f32 %v374, %v658
      %v660 = vpop.f32.mrb[0].mxu0
      %v661 = vpop.f32.mrb[0].mxu0
      %v662 = vadd.f32 %v374, %v661
      %v663 = vpop.f32.mrb[0].mxu0
      %664 = vmatprep.mubr.bf16.mxu0 0
      %665 = vmatmul.mubr.bf16.gmra.mrb[0].mxu0 %v506
      %v666 = vpop.f32.mrb[0].mxu0
      %v667 = vadd.f32 %v374, %v666
      %v668 = vpop.f32.mrb[0].mxu0
      %v669 = vpop.f32.mrb[0].mxu0
      %v670 = vadd.f32 %v374, %v669
      %v671 = vpop.f32.mrb[0].mxu0
      %672 = vmatprep.mubr.bf16.mxu0 0
      %673 = vmatmul.mubr.bf16.gmra.mrb[0].mxu0 %v507
      %v674 = vpop.f32.mrb[0].mxu0
      %v675 = vadd.f32 %v374, %v674
      %v676 = vpop.f32.mrb[0].mxu0
      %v677 = vpop.f32.mrb[0].mxu0
      %v678 = vadd.f32 %v374, %v677
      %v679 = vpop.f32.mrb[0].mxu0
      %680 = vmatprep.mubr.bf16.mxu0 0
      %681 = vmatmul.mubr.bf16.gmra.mrb[0].mxu0 %v508
      %v682 = vpop.f32.mrb[0].mxu0
      %v683 = vadd.f32 %v374, %v682
      %v684 = vpop.f32.mrb[0].mxu0
      %v685 = vpop.f32.mrb[0].mxu0
      %v686 = vadd.f32 %v374, %v685
      %v687 = vpop.f32.mrb[0].mxu0
      %688 = vmatprep.mubr.bf16.mxu0 0
      %689 = vmatmul.mubr.bf16.gmra.mrb[0].mxu0 %v509
      %v690 = vpop.f32.mrb[0].mxu0
      %v691 = vadd.f32 %v374, %v690
      %v692 = vpop.f32.mrb[0].mxu0
      %v693 = vpop.f32.mrb[0].mxu0
      %v694 = vadd.f32 %v374, %v693
      %v695 = vpop.f32.mrb[0].mxu0
      %696 = vmatprep.mubr.bf16.mxu0 0
      %697 = vmatmul.mubr.bf16.gmra.mrb[0].mxu0 %v510
      %v698 = vpop.f32.mrb[0].mxu0
      %v699 = vadd.f32 %v374, %v698
      %v700 = vpop.f32.mrb[0].mxu0
      %v701 = vpop.f32.mrb[0].mxu0
      %v702 = vadd.f32 %v374, %v701
      %v703 = vpop.f32.mrb[0].mxu0
      %704 = vmatprep.mubr.bf16.mxu0 0
      %705 = vmatmul.mubr.bf16.gmra.mrb[0].mxu0 %v511
      %v706 = vpop.f32.mrb[0].mxu0
      %v707 = vadd.f32 %v374, %v706
      %v708 = vpop.f32.mrb[0].mxu0
      %v709 = vpop.f32.mrb[0].mxu0
      %v710 = vadd.f32 %v374, %v709
      %v711 = vpop.f32.mrb[0].mxu0
      %712 = vmatprep.mubr.bf16.mxu0 0
      %713 = vmatmul.mubr.bf16.gmra.mrb[0].mxu0 %v512
      %v714 = vpop.f32.mrb[0].mxu0
      %v715 = vadd.f32 %v374, %v714
      %v716 = vpop.f32.mrb[0].mxu0
      %v717 = vpop.f32.mrb[0].mxu0
      %v718 = vadd.f32 %v374, %v717
      %v719 = vpop.f32.mrb[0].mxu0
      %720 = vmatprep.mubr.bf16.mxu0 0
      %721 = vmatmul.mubr.bf16.gmra.mrb[0].mxu0 %v513
      %v722 = vpop.f32.mrb[0].mxu0
      %v723 = vadd.f32 %v374, %v722
      %v724 = vpop.f32.mrb[0].mxu0
      %v725 = vpop.f32.mrb[0].mxu0
      %v726 = vadd.f32 %v374, %v725
      %v727 = vpop.f32.mrb[0].mxu0
      %728 = vmatprep.mubr.bf16.mxu0 0
      %729 = vmatmul.mubr.bf16.gmra.mrb[0].mxu0 %v514
      %v730 = vpop.f32.mrb[0].mxu0
      %v731 = vadd.f32 %v374, %v730
      %v732 = vpop.f32.mrb[0].mxu0
      %v733 = vpop.f32.mrb[0].mxu0
      %v734 = vadd.f32 %v374, %v733
      %v735 = vpop.f32.mrb[0].mxu0
      %736 = vmatprep.mubr.bf16.mxu0 0
      %737 = vmatmul.mubr.bf16.gmra.mrb[0].mxu0 %v515
      %v738 = vpop.f32.mrb[0].mxu0
      %v739 = vadd.f32 %v374, %v738
      %v740 = vpop.f32.mrb[0].mxu0
      %v741 = vpop.f32.mrb[0].mxu0
      %v742 = vadd.f32 %v374, %v741
      %v743 = vpop.f32.mrb[0].mxu0
      %744 = vmatprep.mubr.bf16.mxu0 0
      %745 = vmatmul.mubr.bf16.gmra.mrb[0].mxu0 %v516
      %v746 = vpop.f32.mrb[0].mxu0
      %v747 = vadd.f32 %v374, %v746
      %v748 = vpop.f32.mrb[0].mxu0
      %v749 = vpop.f32.mrb[0].mxu0
      %v750 = vadd.f32 %v374, %v749
      %v751 = vpop.f32.mrb[0].mxu0
      %752 = vmatprep.mubr.bf16.mxu0 0
      %753 = vmatmul.mubr.bf16.gmra.mrb[0].mxu0 %v517
      %v754 = vpop.f32.mrb[0].mxu0
      %v755 = vadd.f32 %v374, %v754
      %v756 = vpop.f32.mrb[0].mxu0
      %v757 = vpop.f32.mrb[0].mxu0
      %v758 = vadd.f32 %v374, %v757
      %v759 = vpop.f32.mrb[0].mxu0
      %760 = vmatprep.mubr.bf16.mxu0 0
      %761 = vmatmul.mubr.bf16.gmra.mrb[0].mxu0 %v518
      %v762 = vpop.f32.mrb[0].mxu0
      %v763 = vadd.f32 %v374, %v762
      %v764 = vpop.f32.mrb[0].mxu0
      %v765 = vpop.f32.mrb[0].mxu0
      %v766 = vadd.f32 %v374, %v765
      %v767 = vpop.f32.mrb[0].mxu0
      %768 = vmatprep.mubr.bf16.mxu0 0
      %769 = vmatmul.mubr.bf16.gmra.mrb[0].mxu0 %v519
      %v770 = vpop.f32.mrb[0].mxu0
      %v771 = vadd.f32 %v374, %v770
      %v772 = vpop.f32.mrb[0].mxu0
      %v773 = vpop.f32.mrb[0].mxu0
      %v774 = vadd.f32 %v374, %v773
      %v775 = vpop.f32.mrb[0].mxu0
      %776 = vmatprep.mubr.bf16.mxu0 0
      %777 = vmatmul.mubr.bf16.gmra.mrb[0].mxu0 %v520
      %v778 = vpop.f32.mrb[0].mxu0
      %v779 = vadd.f32 %v374, %v778
      %v780 = vpop.f32.mrb[0].mxu0
      %v781 = vpop.f32.mrb[0].mxu0
      %v782 = vadd.f32 %v374, %v781
      %v783 = vpop.f32.mrb[0].mxu0
      %784 = vmatprep.mubr.bf16.mxu0 0
      %785 = vmatmul.mubr.bf16.gmra.mrb[0].mxu0 %v521
      %v786 = vpop.f32.mrb[0].mxu0
      %v787 = vadd.f32 %v374, %v786
      %v788 = vpop.f32.mrb[0].mxu0
      %v789 = vpop.f32.mrb[0].mxu0
      %v790 = vadd.f32 %v374, %v789
      %v791 = vpop.f32.mrb[0].mxu0
      %792 = vmatprep.mubr.bf16.mxu0 0
      %793 = vmatmul.mubr.bf16.gmra.mrb[0].mxu0 %v522
      %v794 = vpop.f32.mrb[0].mxu0
      %v795 = vadd.f32 %v374, %v794
      %v796 = vpop.f32.mrb[0].mxu0
      %v797 = vpop.f32.mrb[0].mxu0
      %v798 = vadd.f32 %v374, %v797
      %v799 = vpop.f32.mrb[0].mxu0
      %800 = vmatprep.mubr.bf16.mxu0 0
      %801 = vmatmul.mubr.bf16.gmra.mrb[0].mxu0 %v523
      %v802 = vpop.f32.mrb[0].mxu0
      %v803 = vadd.f32 %v374, %v802
      %v804 = vpop.f32.mrb[0].mxu0
      %v805 = vpop.f32.mrb[0].mxu0
      %v806 = vadd.f32 %v374, %v805
      %v807 = vpop.f32.mrb[0].mxu0
      %808 = vmatprep.mubr.bf16.mxu0 0
      %809 = vmatmul.mubr.bf16.gmra.mrb[0].mxu0 %v524
      %v810 = vpop.f32.mrb[0].mxu0
      %v811 = vadd.f32 %v374, %v810
      %v812 = vpop.f32.mrb[0].mxu0
      %v813 = vpop.f32.mrb[0].mxu0
      %v814 = vadd.f32 %v374, %v813
      %v815 = vpop.f32.mrb[0].mxu0
      %816 = vmatprep.mubr.bf16.mxu0 0
      %817 = vmatmul.mubr.bf16.gmra.mrb[0].mxu0 %v525
      %v818 = vpop.f32.mrb[0].mxu0
      %v819 = vadd.f32 %v374, %v818
      %v820 = vpop.f32.mrb[0].mxu0
      %v821 = vpop.f32.mrb[0].mxu0
      %v822 = vadd.f32 %v374, %v821
      %v823 = vpop.f32.mrb[0].mxu0
      %824 = vmatprep.mubr.bf16.mxu0 0
      %825 = vmatmul.mubr.bf16.gmra.mrb[0].mxu0 %v526
      %v826 = vpop.f32.mrb[0].mxu0
      %v827 = vadd.f32 %v374, %v826
      %v828 = vpop.f32.mrb[0].mxu0
      %v829 = vpop.f32.mrb[0].mxu0
      %v830 = vadd.f32 %v374, %v829
      %v831 = vpop.f32.mrb[0].mxu0
      %832 = vmatprep.mubr.bf16.mxu0 0
      %833 = vmatmul.mubr.bf16.gmra.mrb[0].mxu0 %v527
      %v834 = vpop.f32.mrb[0].mxu0
      %v835 = vadd.f32 %v374, %v834
      %v836 = vpop.f32.mrb[0].mxu0
      %v837 = vpop.f32.mrb[0].mxu0
      %v838 = vadd.f32 %v374, %v837
      %v839 = vpop.f32.mrb[0].mxu0
      %840 = vmatprep.mubr.bf16.mxu0 0
      %841 = vmatmul.mubr.bf16.gmra.mrb[0].mxu0 %v528
      %v842 = vpop.f32.mrb[0].mxu0
      %v843 = vadd.f32 %v374, %v842
      %v844 = vpop.f32.mrb[0].mxu0
      %v845 = vpop.f32.mrb[0].mxu0
      %v846 = vadd.f32 %v374, %v845
      %v847 = vpop.f32.mrb[0].mxu0
      %848 = vmatprep.mubr.bf16.mxu0 0
      %849 = vmatmul.mubr.bf16.gmra.mrb[0].mxu0 %v529
      %v850 = vpop.f32.mrb[0].mxu0
      %v851 = vadd.f32 %v374, %v850
      %v852 = vpop.f32.mrb[0].mxu0
      %v853 = vpop.f32.mrb[0].mxu0
      %v854 = vadd.f32 %v374, %v853
      %v855 = vpop.f32.mrb[0].mxu0
      %856 = vmatprep.mubr.bf16.mxu0 0
      %857 = vmatmul.mubr.bf16.gmra.mrb[0].mxu0 %v530
      %v858 = vpop.f32.mrb[0].mxu0
      %v859 = vadd.f32 %v374, %v858
      %v860 = vpop.f32.mrb[0].mxu0
      %v861 = vpop.f32.mrb[0].mxu0
      %v862 = vadd.f32 %v374, %v861
      %v863 = vpop.f32.mrb[0].mxu0
      %864 = vmatprep.mubr.bf16.mxu0 0
      %865 = vmatmul.mubr.bf16.gmra.mrb[0].mxu0 %v531
      %v866 = vpop.f32.mrb[0].mxu0
      %v867 = vadd.f32 %v374, %v866
      %v868 = vpop.f32.mrb[0].mxu0
      %v869 = vpop.f32.mrb[0].mxu0
      %v870 = vadd.f32 %v374, %v869
      %v871 = vpop.f32.mrb[0].mxu0
      %872 = vmatprep.mubr.bf16.mxu0 0
      %873 = vmatmul.mubr.bf16.gmra.mrb[0].mxu0 %v532
      %v874 = vpop.f32.mrb[0].mxu0
      %v875 = vadd.f32 %v374, %v874
      %v876 = vpop.f32.mrb[0].mxu0
      %v877 = vpop.f32.mrb[0].mxu0
      %v878 = vadd.f32 %v374, %v877
      %v879 = vpop.f32.mrb[0].mxu0
      %880 = vmatprep.mubr.bf16.mxu0 0
      %881 = vmatmul.mubr.bf16.gmra.mrb[0].mxu0 %v533
      %v882 = vpop.f32.mrb[0].mxu0
      %v883 = vadd.f32 %v374, %v882
      %v884 = vpop.f32.mrb[0].mxu0
      %v885 = vpop.f32.mrb[0].mxu0
      %v886 = vadd.f32 %v374, %v885
      %v887 = vpop.f32.mrb[0].mxu0
      %888 = vmatprep.mubr.bf16.mxu0 0
      %889 = vmatmul.mubr.bf16.gmra.mrb[0].mxu0 %v534
      %v890 = vpop.f32.mrb[0].mxu0
      %v891 = vadd.f32 %v374, %v890
      %v892 = vpop.f32.mrb[0].mxu0
      %v893 = vpop.f32.mrb[0].mxu0
      %v894 = vadd.f32 %v374, %v893
      %v895 = vpop.f32.mrb[0].mxu0
      %896 = vmatprep.mubr.bf16.mxu0 0
      %897 = vmatmul.mubr.bf16.gmra.mrb[0].mxu0 %v535
      %v898 = vpop.f32.mrb[0].mxu0
      %v899 = vadd.f32 %v374, %v898
      %v900 = vpop.f32.mrb[0].mxu0
      %v901 = vpop.f32.mrb[0].mxu0
      %v902 = vadd.f32 %v374, %v901
      %v903 = vpop.f32.mrb[0].mxu0
      %904 = vdwg.mxu0
      %vm905 = vcmask 130048
      %906 = vst.msk [vmem:[%s277] sm:$0xff] %vm905, %v651
      %907 = vst.msk [vmem:[%s277 + $0x8] sm:$0xff] %vm905, %v654
      %908 = vst.msk [vmem:[%s277 + $0x10] sm:$0xff] %vm905, %v659
      %909 = vst.msk [vmem:[%s277 + $0x18] sm:$0xff] %vm905, %v662
      %910 = vst.msk [vmem:[%s277 + $0x20] sm:$0xff] %vm905, %v667
      %911 = vst.msk [vmem:[%s277 + $0x28] sm:$0xff] %vm905, %v670
      %912 = vst.msk [vmem:[%s277 + $0x30] sm:$0xff] %vm905, %v675
      %913 = vst.msk [vmem:[%s277 + $0x38] sm:$0xff] %vm905, %v678
      %914 = vst.msk [vmem:[%s277 + $0x40] sm:$0xff] %vm905, %v683
      %915 = vst.msk [vmem:[%s277 + $0x48] sm:$0xff] %vm905, %v686
      %916 = vst.msk [vmem:[%s277 + $0x50] sm:$0xff] %vm905, %v691
      %917 = vst.msk [vmem:[%s277 + $0x58] sm:$0xff] %vm905, %v694
      %918 = vst.msk [vmem:[%s277 + $0x60] sm:$0xff] %vm905, %v699
      %919 = vst.msk [vmem:[%s277 + $0x68] sm:$0xff] %vm905, %v702
      %920 = vst.msk [vmem:[%s277 + $0x70] sm:$0xff] %vm905, %v707
      %921 = vst.msk [vmem:[%s277 + $0x78] sm:$0xff] %vm905, %v710
      %922 = vst.msk [vmem:[%s277 + $0x80] sm:$0xff] %vm905, %v715
      %923 = vst.msk [vmem:[%s277 + $0x88] sm:$0xff] %vm905, %v718
      %924 = vst.msk [vmem:[%s277 + $0x90] sm:$0xff] %vm905, %v723
      %925 = vst.msk [vmem:[%s277 + $0x98] sm:$0xff] %vm905, %v726
      %926 = vst.msk [vmem:[%s277 + $0xa0] sm:$0xff] %vm905, %v731
      %927 = vst.msk [vmem:[%s277 + $0xa8] sm:$0xff] %vm905, %v734
      %928 = vst.msk [vmem:[%s277 + $0xb0] sm:$0xff] %vm905, %v739
      %929 = vst.msk [vmem:[%s277 + $0xb8] sm:$0xff] %vm905, %v742
      %930 = vst.msk [vmem:[%s277 + $0xc0] sm:$0xff] %vm905, %v747
      %931 = vst.msk [vmem:[%s277 + $0xc8] sm:$0xff] %vm905, %v750
      %932 = vst.msk [vmem:[%s277 + $0xd0] sm:$0xff] %vm905, %v755
      %933 = vst.msk [vmem:[%s277 + $0xd8] sm:$0xff] %vm905, %v758
      %934 = vst.msk [vmem:[%s277 + $0xe0] sm:$0xff] %vm905, %v763
      %935 = vst.msk [vmem:[%s277 + $0xe8] sm:$0xff] %vm905, %v766
      %936 = vst.msk [vmem:[%s277 + $0xf0] sm:$0xff] %vm905, %v771
      %937 = vst.msk [vmem:[%s277 + $0xf8] sm:$0xff] %vm905, %v774
      %938 = vst.msk [vmem:[%s277 + $0x100] sm:$0xff] %vm905, %v779
      %939 = vst.msk [vmem:[%s277 + $0x108] sm:$0xff] %vm905, %v782
      %940 = vst.msk [vmem:[%s277 + $0x110] sm:$0xff] %vm905, %v787
      %941 = vst.msk [vmem:[%s277 + $0x118] sm:$0xff] %vm905, %v790
      %942 = vst.msk [vmem:[%s277 + $0x120] sm:$0xff] %vm905, %v795
      %943 = vst.msk [vmem:[%s277 + $0x128] sm:$0xff] %vm905, %v798
      %944 = vst.msk [vmem:[%s277 + $0x130] sm:$0xff] %vm905, %v803
      %945 = vst.msk [vmem:[%s277 + $0x138] sm:$0xff] %vm905, %v806
      %946 = vst.msk [vmem:[%s277 + $0x140] sm:$0xff] %vm905, %v811
      %947 = vst.msk [vmem:[%s277 + $0x148] sm:$0xff] %vm905, %v814
      %948 = vst.msk [vmem:[%s277 + $0x150] sm:$0xff] %vm905, %v819
      %949 = vst.msk [vmem:[%s277 + $0x158] sm:$0xff] %vm905, %v822
      %950 = vst.msk [vmem:[%s277 + $0x160] sm:$0xff] %vm905, %v827
      %951 = vst.msk [vmem:[%s277 + $0x168] sm:$0xff] %vm905, %v830
      %952 = vst.msk [vmem:[%s277 + $0x170] sm:$0xff] %vm905, %v835
      %953 = vst.msk [vmem:[%s277 + $0x178] sm:$0xff] %vm905, %v838
      %954 = vst.msk [vmem:[%s277 + $0x180] sm:$0xff] %vm905, %v843
      %955 = vst.msk [vmem:[%s277 + $0x188] sm:$0xff] %vm905, %v846
      %956 = vst.msk [vmem:[%s277 + $0x190] sm:$0xff] %vm905, %v851
      %957 = vst.msk [vmem:[%s277 + $0x198] sm:$0xff] %vm905, %v854
      %958 = vst.msk [vmem:[%s277 + $0x1a0] sm:$0xff] %vm905, %v859
      %959 = vst.msk [vmem:[%s277 + $0x1a8] sm:$0xff] %vm905, %v862
      %960 = vst.msk [vmem:[%s277 + $0x1b0] sm:$0xff] %vm905, %v867
      %961 = vst.msk [vmem:[%s277 + $0x1b8] sm:$0xff] %vm905, %v870
      %962 = vst.msk [vmem:[%s277 + $0x1c0] sm:$0xff] %vm905, %v875
      %963 = vst.msk [vmem:[%s277 + $0x1c8] sm:$0xff] %vm905, %v878
      %964 = vst.msk [vmem:[%s277 + $0x1d0] sm:$0xff] %vm905, %v883
      %965 = vst.msk [vmem:[%s277 + $0x1d8] sm:$0xff] %vm905, %v886
      %966 = vst.msk [vmem:[%s277 + $0x1e0] sm:$0xff] %vm905, %v891
      %967 = vst.msk [vmem:[%s277 + $0x1e8] sm:$0xff] %vm905, %v894
      %968 = vst.msk [vmem:[%s277 + $0x1f0] sm:$0xff] %vm905, %v899
      %969 = vst.msk [vmem:[%s277 + $0x1f8] sm:$0xff] %vm905, %v902
      %v970 = vld [vmem:[%s4] sm:$0x1]
      %v971 = vsel %vm905, %v651, 0.0
      %v972 = vsel %vm905, %v654, 0.0
      %v973 = vadd.f32 %v971, %v972
      %v974 = vsel %vm905, %v659, 0.0
      %v975 = vadd.f32 %v973, %v974
      %v976 = vsel %vm905, %v662, 0.0
      %v977 = vadd.f32 %v975, %v976
      %v978 = vsel %vm905, %v667, 0.0
      %v979 = vadd.f32 %v977, %v978
      %v980 = vsel %vm905, %v670, 0.0
      %v981 = vadd.f32 %v979, %v980
      %v982 = vsel %vm905, %v675, 0.0
      %v983 = vadd.f32 %v981, %v982
      %v984 = vsel %vm905, %v678, 0.0
      %v985 = vadd.f32 %v983, %v984
      %v986 = vsel %vm905, %v683, 0.0
      %v987 = vadd.f32 %v985, %v986
      %v988 = vsel %vm905, %v686, 0.0
      %v989 = vadd.f32 %v987, %v988
      %v990 = vsel %vm905, %v691, 0.0
      %v991 = vadd.f32 %v989, %v990
      %v992 = vsel %vm905, %v694, 0.0
      %v993 = vadd.f32 %v991, %v992
      %v994 = vsel %vm905, %v699, 0.0
      %v995 = vadd.f32 %v993, %v994
      %v996 = vsel %vm905, %v702, 0.0
      %v997 = vadd.f32 %v995, %v996
      %v998 = vsel %vm905, %v707, 0.0
      %v999 = vadd.f32 %v997, %v998
      %v1000 = vsel %vm905, %v710, 0.0
      %v1001 = vadd.f32 %v999, %v1000
      %v1002 = vsel %vm905, %v715, 0.0
      %v1003 = vadd.f32 %v1001, %v1002
      %v1004 = vsel %vm905, %v718, 0.0
      %v1005 = vadd.f32 %v1003, %v1004
      %v1006 = vsel %vm905, %v723, 0.0
      %v1007 = vadd.f32 %v1005, %v1006
      %v1008 = vsel %vm905, %v726, 0.0
      %v1009 = vadd.f32 %v1007, %v1008
      %v1010 = vsel %vm905, %v731, 0.0
      %v1011 = vadd.f32 %v1009, %v1010
      %v1012 = vsel %vm905, %v734, 0.0
      %v1013 = vadd.f32 %v1011, %v1012
      %v1014 = vsel %vm905, %v739, 0.0
      %v1015 = vadd.f32 %v1013, %v1014
      %v1016 = vsel %vm905, %v742, 0.0
      %v1017 = vadd.f32 %v1015, %v1016
      %v1018 = vsel %vm905, %v747, 0.0
      %v1019 = vadd.f32 %v1017, %v1018
      %v1020 = vsel %vm905, %v750, 0.0
      %v1021 = vadd.f32 %v1019, %v1020
      %v1022 = vsel %vm905, %v755, 0.0
      %v1023 = vadd.f32 %v1021, %v1022
      %v1024 = vsel %vm905, %v758, 0.0
      %v1025 = vadd.f32 %v1023, %v1024
      %v1026 = vsel %vm905, %v763, 0.0
      %v1027 = vadd.f32 %v1025, %v1026
      %v1028 = vsel %vm905, %v766, 0.0
      %v1029 = vadd.f32 %v1027, %v1028
      %v1030 = vsel %vm905, %v771, 0.0
      %v1031 = vadd.f32 %v1029, %v1030
      %v1032 = vsel %vm905, %v774, 0.0
      %v1033 = vadd.f32 %v1031, %v1032
      %v1034 = vsel %vm905, %v779, 0.0
      %v1035 = vadd.f32 %v1033, %v1034
      %v1036 = vsel %vm905, %v782, 0.0
      %v1037 = vadd.f32 %v1035, %v1036
      %v1038 = vsel %vm905, %v787, 0.0
      %v1039 = vadd.f32 %v1037, %v1038
      %v1040 = vsel %vm905, %v790, 0.0
      %v1041 = vadd.f32 %v1039, %v1040
      %v1042 = vsel %vm905, %v795, 0.0
      %v1043 = vadd.f32 %v1041, %v1042
      %v1044 = vsel %vm905, %v798, 0.0
      %v1045 = vadd.f32 %v1043, %v1044
      %v1046 = vsel %vm905, %v803, 0.0
      %v1047 = vadd.f32 %v1045, %v1046
      %v1048 = vsel %vm905, %v806, 0.0
      %v1049 = vadd.f32 %v1047, %v1048
      %v1050 = vsel %vm905, %v811, 0.0
      %v1051 = vadd.f32 %v1049, %v1050
      %v1052 = vsel %vm905, %v814, 0.0
      %v1053 = vadd.f32 %v1051, %v1052
      %v1054 = vsel %vm905, %v819, 0.0
      %v1055 = vadd.f32 %v1053, %v1054
      %v1056 = vsel %vm905, %v822, 0.0
      %v1057 = vadd.f32 %v1055, %v1056
      %v1058 = vsel %vm905, %v827, 0.0
      %v1059 = vadd.f32 %v1057, %v1058
      %v1060 = vsel %vm905, %v830, 0.0
      %v1061 = vadd.f32 %v1059, %v1060
      %v1062 = vsel %vm905, %v835, 0.0
      %v1063 = vadd.f32 %v1061, %v1062
      %v1064 = vsel %vm905, %v838, 0.0
      %v1065 = vadd.f32 %v1063, %v1064
      %v1066 = vsel %vm905, %v843, 0.0
      %v1067 = vadd.f32 %v1065, %v1066
      %v1068 = vsel %vm905, %v846, 0.0
      %v1069 = vadd.f32 %v1067, %v1068
      %v1070 = vsel %vm905, %v851, 0.0
      %v1071 = vadd.f32 %v1069, %v1070
      %v1072 = vsel %vm905, %v854, 0.0
      %v1073 = vadd.f32 %v1071, %v1072
      %v1074 = vsel %vm905, %v859, 0.0
      %v1075 = vadd.f32 %v1073, %v1074
      %v1076 = vsel %vm905, %v862, 0.0
      %v1077 = vadd.f32 %v1075, %v1076
      %v1078 = vsel %vm905, %v867, 0.0
      %v1079 = vadd.f32 %v1077, %v1078
      %v1080 = vsel %vm905, %v870, 0.0
      %v1081 = vadd.f32 %v1079, %v1080
      %v1082 = vsel %vm905, %v875, 0.0
      %v1083 = vadd.f32 %v1081, %v1082
      %v1084 = vsel %vm905, %v878, 0.0
      %v1085 = vadd.f32 %v1083, %v1084
      %v1086 = vsel %vm905, %v883, 0.0
      %v1087 = vadd.f32 %v1085, %v1086
      %v1088 = vsel %vm905, %v886, 0.0
      %v1089 = vadd.f32 %v1087, %v1088
      %v1090 = vsel %vm905, %v891, 0.0
      %v1091 = vadd.f32 %v1089, %v1090
      %v1092 = vsel %vm905, %v894, 0.0
      %v1093 = vadd.f32 %v1091, %v1092
      %v1094 = vsel %vm905, %v899, 0.0
      %v1095 = vadd.f32 %v1093, %v1094
      %v1096 = vsel %vm905, %v902, 0.0
      %v1097 = vadd.f32 %v1095, %v1096
      %v1098 = vrot.slane %v1097, 4
      %v1099 = vadd.f32 %v1097, %v1098
      %v1100 = vrot.slane %v1099, 2
      %v1101 = vadd.f32 %v1099, %v1100
      %v1102 = vrot.slane %v1101, 1
      %v1103 = vadd.f32 %v1101, %v1102
      %v1104 = vadd.f32 %v970, %v1103
      %vm1105 = vcmask 122880
      %1106 = vst.msk [vmem:[%s4] sm:$0x1] %vm1105, %v1104
      %v1107 = vld [vmem:[%s5] sm:$0x1]
      %v1108 = vmul.f32 %v651, %v651
      %v1109 = vmul.f32 %v654, %v654
      %v1110 = vmul.f32 %v659, %v659
      %v1111 = vmul.f32 %v662, %v662
      %v1112 = vmul.f32 %v667, %v667
      %v1113 = vmul.f32 %v670, %v670
      %v1114 = vmul.f32 %v675, %v675
      %v1115 = vmul.f32 %v678, %v678
      %v1116 = vmul.f32 %v683, %v683
      %v1117 = vmul.f32 %v686, %v686
      %v1118 = vmul.f32 %v691, %v691
      %v1119 = vmul.f32 %v694, %v694
      %v1120 = vmul.f32 %v699, %v699
      %v1121 = vmul.f32 %v702, %v702
      %v1122 = vmul.f32 %v707, %v707
      %v1123 = vmul.f32 %v710, %v710
      %v1124 = vmul.f32 %v715, %v715
      %v1125 = vmul.f32 %v718, %v718
      %v1126 = vmul.f32 %v723, %v723
      %v1127 = vmul.f32 %v726, %v726
      %v1128 = vmul.f32 %v731, %v731
      %v1129 = vmul.f32 %v734, %v734
      %v1130 = vmul.f32 %v739, %v739
      %v1131 = vmul.f32 %v742, %v742
      %v1132 = vmul.f32 %v747, %v747
      %v1133 = vmul.f32 %v750, %v750
      %v1134 = vmul.f32 %v755, %v755
      %v1135 = vmul.f32 %v758, %v758
      %v1136 = vmul.f32 %v763, %v763
      %v1137 = vmul.f32 %v766, %v766
      %v1138 = vmul.f32 %v771, %v771
      %v1139 = vmul.f32 %v774, %v774
      %v1140 = vmul.f32 %v779, %v779
      %v1141 = vmul.f32 %v782, %v782
      %v1142 = vmul.f32 %v787, %v787
      %v1143 = vmul.f32 %v790, %v790
      %v1144 = vmul.f32 %v795, %v795
      %v1145 = vmul.f32 %v798, %v798
      %v1146 = vmul.f32 %v803, %v803
      %v1147 = vmul.f32 %v806, %v806
      %v1148 = vmul.f32 %v811, %v811
      %v1149 = vmul.f32 %v814, %v814
      %v1150 = vmul.f32 %v819, %v819
      %v1151 = vmul.f32 %v822, %v822
      %v1152 = vmul.f32 %v827, %v827
      %v1153 = vmul.f32 %v830, %v830
      %v1154 = vmul.f32 %v835, %v835
      %v1155 = vmul.f32 %v838, %v838
      %v1156 = vmul.f32 %v843, %v843
      %v1157 = vmul.f32 %v846, %v846
      %v1158 = vmul.f32 %v851, %v851
      %v1159 = vmul.f32 %v854, %v854
      %v1160 = vmul.f32 %v859, %v859
      %v1161 = vmul.f32 %v862, %v862
      %v1162 = vmul.f32 %v867, %v867
      %v1163 = vmul.f32 %v870, %v870
      %v1164 = vmul.f32 %v875, %v875
      %v1165 = vmul.f32 %v878, %v878
      %v1166 = vmul.f32 %v883, %v883
      %v1167 = vmul.f32 %v886, %v886
      %v1168 = vmul.f32 %v891, %v891
      %v1169 = vmul.f32 %v894, %v894
      %v1170 = vmul.f32 %v899, %v899
      %v1171 = vmul.f32 %v902, %v902
      %v1172 = vsel %vm905, %v1108, 0.0
      %v1173 = vsel %vm905, %v1109, 0.0
      %v1174 = vadd.f32 %v1172, %v1173
      %v1175 = vsel %vm905, %v1110, 0.0
      %v1176 = vadd.f32 %v1174, %v1175
      %v1177 = vsel %vm905, %v1111, 0.0
      %v1178 = vadd.f32 %v1176, %v1177
      %v1179 = vsel %vm905, %v1112, 0.0
      %v1180 = vadd.f32 %v1178, %v1179
      %v1181 = vsel %vm905, %v1113, 0.0
      %v1182 = vadd.f32 %v1180, %v1181
      %v1183 = vsel %vm905, %v1114, 0.0
      %v1184 = vadd.f32 %v1182, %v1183
      %v1185 = vsel %vm905, %v1115, 0.0
      %v1186 = vadd.f32 %v1184, %v1185
      %v1187 = vsel %vm905, %v1116, 0.0
      %v1188 = vadd.f32 %v1186, %v1187
      %v1189 = vsel %vm905, %v1117, 0.0
      %v1190 = vadd.f32 %v1188, %v1189
      %v1191 = vsel %vm905, %v1118, 0.0
      %v1192 = vadd.f32 %v1190, %v1191
      %v1193 = vsel %vm905, %v1119, 0.0
      %v1194 = vadd.f32 %v1192, %v1193
      %v1195 = vsel %vm905, %v1120, 0.0
      %v1196 = vadd.f32 %v1194, %v1195
      %v1197 = vsel %vm905, %v1121, 0.0
      %v1198 = vadd.f32 %v1196, %v1197
      %v1199 = vsel %vm905, %v1122, 0.0
      %v1200 = vadd.f32 %v1198, %v1199
      %v1201 = vsel %vm905, %v1123, 0.0
      %v1202 = vadd.f32 %v1200, %v1201
      %v1203 = vsel %vm905, %v1124, 0.0
      %v1204 = vadd.f32 %v1202, %v1203
      %v1205 = vsel %vm905, %v1125, 0.0
      %v1206 = vadd.f32 %v1204, %v1205
      %v1207 = vsel %vm905, %v1126, 0.0
      %v1208 = vadd.f32 %v1206, %v1207
      %v1209 = vsel %vm905, %v1127, 0.0
      %v1210 = vadd.f32 %v1208, %v1209
      %v1211 = vsel %vm905, %v1128, 0.0
      %v1212 = vadd.f32 %v1210, %v1211
      %v1213 = vsel %vm905, %v1129, 0.0
      %v1214 = vadd.f32 %v1212, %v1213
      %v1215 = vsel %vm905, %v1130, 0.0
      %v1216 = vadd.f32 %v1214, %v1215
      %v1217 = vsel %vm905, %v1131, 0.0
      %v1218 = vadd.f32 %v1216, %v1217
      %v1219 = vsel %vm905, %v1132, 0.0
      %v1220 = vadd.f32 %v1218, %v1219
      %v1221 = vsel %vm905, %v1133, 0.0
      %v1222 = vadd.f32 %v1220, %v1221
      %v1223 = vsel %vm905, %v1134, 0.0
      %v1224 = vadd.f32 %v1222, %v1223
      %v1225 = vsel %vm905, %v1135, 0.0
      %v1226 = vadd.f32 %v1224, %v1225
      %v1227 = vsel %vm905, %v1136, 0.0
      %v1228 = vadd.f32 %v1226, %v1227
      %v1229 = vsel %vm905, %v1137, 0.0
      %v1230 = vadd.f32 %v1228, %v1229
      %v1231 = vsel %vm905, %v1138, 0.0
      %v1232 = vadd.f32 %v1230, %v1231
      %v1233 = vsel %vm905, %v1139, 0.0
      %v1234 = vadd.f32 %v1232, %v1233
      %v1235 = vsel %vm905, %v1140, 0.0
      %v1236 = vadd.f32 %v1234, %v1235
      %v1237 = vsel %vm905, %v1141, 0.0
      %v1238 = vadd.f32 %v1236, %v1237
      %v1239 = vsel %vm905, %v1142, 0.0
      %v1240 = vadd.f32 %v1238, %v1239
      %v1241 = vsel %vm905, %v1143, 0.0
      %v1242 = vadd.f32 %v1240, %v1241
      %v1243 = vsel %vm905, %v1144, 0.0
      %v1244 = vadd.f32 %v1242, %v1243
      %v1245 = vsel %vm905, %v1145, 0.0
      %v1246 = vadd.f32 %v1244, %v1245
      %v1247 = vsel %vm905, %v1146, 0.0
      %v1248 = vadd.f32 %v1246, %v1247
      %v1249 = vsel %vm905, %v1147, 0.0
      %v1250 = vadd.f32 %v1248, %v1249
      %v1251 = vsel %vm905, %v1148, 0.0
      %v1252 = vadd.f32 %v1250, %v1251
      %v1253 = vsel %vm905, %v1149, 0.0
      %v1254 = vadd.f32 %v1252, %v1253
      %v1255 = vsel %vm905, %v1150, 0.0
      %v1256 = vadd.f32 %v1254, %v1255
      %v1257 = vsel %vm905, %v1151, 0.0
      %v1258 = vadd.f32 %v1256, %v1257
      %v1259 = vsel %vm905, %v1152, 0.0
      %v1260 = vadd.f32 %v1258, %v1259
      %v1261 = vsel %vm905, %v1153, 0.0
      %v1262 = vadd.f32 %v1260, %v1261
      %v1263 = vsel %vm905, %v1154, 0.0
      %v1264 = vadd.f32 %v1262, %v1263
      %v1265 = vsel %vm905, %v1155, 0.0
      %v1266 = vadd.f32 %v1264, %v1265
      %v1267 = vsel %vm905, %v1156, 0.0
      %v1268 = vadd.f32 %v1266, %v1267
      %v1269 = vsel %vm905, %v1157, 0.0
      %v1270 = vadd.f32 %v1268, %v1269
      %v1271 = vsel %vm905, %v1158, 0.0
      %v1272 = vadd.f32 %v1270, %v1271
      %v1273 = vsel %vm905, %v1159, 0.0
      %v1274 = vadd.f32 %v1272, %v1273
      %v1275 = vsel %vm905, %v1160, 0.0
      %v1276 = vadd.f32 %v1274, %v1275
      %v1277 = vsel %vm905, %v1161, 0.0
      %v1278 = vadd.f32 %v1276, %v1277
      %v1279 = vsel %vm905, %v1162, 0.0
      %v1280 = vadd.f32 %v1278, %v1279
      %v1281 = vsel %vm905, %v1163, 0.0
      %v1282 = vadd.f32 %v1280, %v1281
      %v1283 = vsel %vm905, %v1164, 0.0
      %v1284 = vadd.f32 %v1282, %v1283
      %v1285 = vsel %vm905, %v1165, 0.0
      %v1286 = vadd.f32 %v1284, %v1285
      %v1287 = vsel %vm905, %v1166, 0.0
      %v1288 = vadd.f32 %v1286, %v1287
      %v1289 = vsel %vm905, %v1167, 0.0
      %v1290 = vadd.f32 %v1288, %v1289
      %v1291 = vsel %vm905, %v1168, 0.0
      %v1292 = vadd.f32 %v1290, %v1291
      %v1293 = vsel %vm905, %v1169, 0.0
      %v1294 = vadd.f32 %v1292, %v1293
      %v1295 = vsel %vm905, %v1170, 0.0
      %v1296 = vadd.f32 %v1294, %v1295
      %v1297 = vsel %vm905, %v1171, 0.0
      %v1298 = vadd.f32 %v1296, %v1297
      %v1299 = vrot.slane %v1298, 4
      %v1300 = vadd.f32 %v1298, %v1299
      %v1301 = vrot.slane %v1300, 2
      %v1302 = vadd.f32 %v1300, %v1301
      %v1303 = vrot.slane %v1302, 1
      %v1304 = vadd.f32 %v1302, %v1303
      %v1305 = vadd.f32 %v1107, %v1304
      %1306 = vst.msk [vmem:[%s5] sm:$0x1] %vm1105, %v1305
      %s1307 = smul.u32 64, %s22
      %p1308 = scmp.lt.s32.totalorder %s21, 3
      %s1309 = scalar_select %p1308, %s21, 3
      %p1310 = scmp.lt.s32.totalorder %s1307, 63
      %s1311 = scalar_select %p1310, %s1307, 63
      %s1312 = smul.addr %s1309, 64
      %s1313 = sadd.s32 %s1311, %s1312
      %s1314 = smul.addr %s1313, 8
      %s1315 = scalar_lea.vmem %s3, %s1314
      // Predicated region
      $region37: #{generator_forward.15} parent=31 // pred_check
        %p1316 = pneg %p124
      $region38: #{generator_forward.15} parent=31 // pred_check_branch
        %1318 = sbr.rel (%p1316) target = $region40
      $region39: #{generator_forward.15} parent=31 // pred_region
        %s1319 = smul.u32 64, %s22
      $region40: #{generator_forward.15} parent=31 // pred_fallthru
        _
      // Predicated region
      $region41: #{generator_forward.15} parent=31 // pred_check
        %p1320 = pneg %p145
      $region42: #{generator_forward.15} parent=31 // pred_check_branch
        %1322 = sbr.rel (%p1320) target = $region44
      $region43: #{generator_forward.15} parent=31 // pred_region
        _
      $region44: #{generator_forward.15} parent=31 // pred_fallthru
        _
      // Predicated region
      $region45: #{generator_forward.15} parent=31 // pred_check
        %p1323 = pneg %p166
      $region46: #{generator_forward.15} parent=31 // pred_check_branch
        %1325 = sbr.rel (%p1323) target = $region48
      $region47: #{generator_forward.15} parent=31 // pred_region
        _
      $region48: #{generator_forward.15} parent=31 // pred_fallthru
        _
      // Predicated region
      $region49: #{generator_forward.15} parent=31 // pred_check
        %p1326 = pneg %p145
      $region50: #{generator_forward.15} parent=31 // pred_check_branch
        %1328 = sbr.rel (%p1326) target = $region52
      $region51: #{generator_forward.15} parent=31 // pred_region
        _
      $region52: #{generator_forward.15} parent=31 // pred_fallthru
        _
      // Predicated region
      $region53: #{generator_forward.15} parent=31 // pred_check
        %p1329 = pneg %p166
      $region54: #{generator_forward.15} parent=31 // pred_check_branch
        %1331 = sbr.rel (%p1329) target = $region56
      $region55: #{generator_forward.15} parent=31 // pred_region
        _
      $region56: #{generator_forward.15} parent=31 // pred_fallthru
        _
    $region32: #{generator_forward.15} parent=5 // pred_fallthru
      _
    %p1332 = scmp.le.s32.totalorder 2, %s12
    // Predicated region
    $region57: #{generator_forward.15} parent=5 // pred_check
      %p1333 = pneg %p1332
    $region58: #{generator_forward.15} parent=5 // pred_check_branch
      %1335 = sbr.rel (%p1333) target = $region60
    $region59: #{generator_forward.15} parent=5 // pred_region
      %s1336 = ssub.s32 %s12, 2
      // Predicated region
      $region61: #{generator_forward.15} parent=59 // pred_check
        %p1337 = pneg %p130
      $region62: #{generator_forward.15} parent=59 // pred_check_branch
        %1339 = sbr.rel (%p1337) target = $region64
      $region63: #{generator_forward.15} parent=59 // pred_region
        %s1340 = smul.u32 64, %s24
        %p1341 = scmp.lt.s32.totalorder %s23, 3
        %s1342 = scalar_select %p1341, %s23, 3
        %p1343 = scmp.lt.s32.totalorder %s1340, 63
        %s1344 = scalar_select %p1343, %s1340, 63
        %s1345 = smul.addr %s1342, 64
        %s1346 = sadd.s32 %s1344, %s1345
        %s1347 = smul.addr %s1346, 8
        %s1348 = scalar_lea.vmem %s3, %s1347
      $region64: #{generator_forward.15} parent=59 // pred_fallthru
        _
    $region60: #{generator_forward.15} parent=5 // pred_fallthru
      _
  $region6: #{generator_forward.15} parent=0 // loop_footer
    %s16 = sadd.s32 1, %s12
  $region7: #{generator_forward.15} parent=0 // loop_footer_branch
    %11 = sbr.rel target = $region3
  $region8: #{generator_forward.15} parent=0 // loop_exit
    _

// kernel: generator_forward.17
$region0: #{generator_forward.17}
  #allocation0 [shape = 'u32[]', space=smem, size = 0x4, offset = 0x4, fixed_abs, tag = 'smem constant byte address 0x4 - core index']
  #allocation1 [shape = 'u32[144,128]{1,0:T(1,128)}', space=vmem, size = 0x12000, scoped, tag = 'internal scratch']
  #allocation2 [shape = 'f32[1,1]{1,0:T(1,128)S(1)}', space=vmem, size = 0x200, scoped, tag = 'scoped memory for generator_forward.17']
  %s0 = inlined_call_operand.vmem [shape: bf16[4,1,64], index: 0, kind: input, shape index: {}]
  %s1 = inlined_call_operand.vmem [shape: bf16[4,64,2048], index: 1, kind: input, shape index: {}]
  %s2 = inlined_call_operand.<no memory space> [shape: f32[1,1], index: 2, kind: input, shape index: {}]
  %s3 = inlined_call_operand.vmem [shape: f32[4,1,2048], index: 3, kind: output, shape index: {}]
  %s4 = sld [smem:[#allocation0]]
  $region68: #{generator_forward.17} parent=0
    _
  %s6 = ssub.s32 1, %s4
  %s7 = scalar_select 0, %s6, %s4
  %v8 = vstv %s2
  %9 = vst [vmem:[#allocation2] sm:$0x1] %v8
  $region1: #{generator_forward.17} parent=0
    #allocation3 [shape = 'u8[131072]{0}', space=vmem, size = 0x20000, scoped, tag = 'input window, operand 1']
    loop: start=0, step=1, limit=18
    $region2: #{generator_forward.17} parent=1 // loop_pre_header
      _
    $region3: #{generator_forward.17} parent=1 // loop_header
      %s11 = sphi 0, %s15
      %p12 = scmp.ge.s32.totalorder %s11, 18
      %s18 = sphi 0, %s30
      %s19 = sphi 0, %s26
      %s20 = sphi 0, %s18
      %s21 = sphi 0, %s19
      %s22 = sphi 0, %s20
      %s23 = sphi 0, %s21
      %s33 = sphi 0, %s35
      %s36 = sphi 0, %s33
      %s37 = sphi 0, %s36
      %s53 = sphi 0, %s37
      %s61 = sphi 0, %s63
      %s64 = sphi 0, %s61
      %s65 = sphi 0, %s64
      %s81 = sphi 0, %s65
      %s85 = sphi 0, %s85
      %s87 = sphi 0, %s85
      %s88 = sphi 0, %s87
      %s102 = sphi 0, %s88
      %s110 = sphi 0, %s112
      %s113 = sphi 0, %s110
      %s114 = sphi 0, %s113
      %s130 = sphi 0, %s114
    $region4: #{generator_forward.17} parent=1 // loop_header_branch
      %14 = sbr.rel (%p12) target = $region8
    $region5: #{generator_forward.17} parent=1 // loop_body
      %s16 = ssub.s32 %s11, 1
      %s17 = ssub.s32 %s11, 2
      %s24 = sadd.s32 1, %s19
      %p25 = scmp.ge.s32.totalorder %s24, 4
      %s26 = scalar_select %p25, 0, %s24
      %s27 = sadd.s32 1, %s18
      %s28 = scalar_select %p25, %s27, %s18
      %p29 = scmp.ge.s32.totalorder %s28, 4
      %s30 = scalar_select %p29, 0, %s28
      %s31 = ssub.s32 %s18, %s30
      %p32 = scmp.eq.s32.totalorder %s31, 0
      %s34 = sadd.s32 %s33, 1
      %s35 = scalar_select %p32, %s33, %s34
      %p38 = pneg %p32
      %p39 = scmp.eq.s32.totalorder %s11, 15
      %p40 = por %p38, %p39
      %p41 = scmp.ne.s32.totalorder %s33, %s36
      %p42 = scmp.eq.s32.totalorder %s11, 0
      %p43 = por %p41, %p42
      %p44 = scmp.ne.s32.totalorder %s33, %s36
      %p45 = scmp.eq.s32.totalorder %s16, 15
      %p46 = por %p44, %p45
      %p47 = scmp.ne.s32.totalorder %s36, %s37
      %p48 = scmp.eq.s32.totalorder %s16, 0
      %p49 = por %p47, %p48
      %p50 = scmp.ne.s32.totalorder %s36, %s37
      %p51 = scmp.eq.s32.totalorder %s17, 15
      %p52 = por %p50, %p51
      %p54 = scmp.ne.s32.totalorder %s37, %s53
      %p55 = scmp.eq.s32.totalorder %s17, 0
      %p56 = por %p54, %p55
      %s57 = ssub.s32 %s18, %s30
      %s58 = ssub.s32 %s19, %s26
      %s59 = sor.u32 %s57, %s58
      %p60 = scmp.eq.s32.totalorder %s59, 0
      %s62 = sadd.s32 %s61, 1
      %s63 = scalar_select %p60, %s61, %s62
      %p66 = pneg %p60
      %p67 = scmp.eq.s32.totalorder %s11, 15
      %p68 = por %p66, %p67
      %p69 = scmp.ne.s32.totalorder %s61, %s64
      %p70 = scmp.eq.s32.totalorder %s11, 0
      %p71 = por %p69, %p70
      %p72 = scmp.ne.s32.totalorder %s61, %s64
      %p73 = scmp.eq.s32.totalorder %s16, 15
      %p74 = por %p72, %p73
      %p75 = scmp.ne.s32.totalorder %s64, %s65
      %p76 = scmp.eq.s32.totalorder %s16, 0
      %p77 = por %p75, %p76
      %p78 = scmp.ne.s32.totalorder %s64, %s65
      %p79 = scmp.eq.s32.totalorder %s17, 15
      %p80 = por %p78, %p79
      %p82 = scmp.ne.s32.totalorder %s65, %s81
      %p83 = scmp.eq.s32.totalorder %s17, 0
      %p84 = por %p82, %p83
      %s86 = sadd.s32 %s85, 1
      %p89 = scmp.eq.s32.totalorder %s11, 15
      %p90 = scmp.ne.s32.totalorder %s85, %s87
      %p91 = scmp.eq.s32.totalorder %s11, 0
      %p92 = por %p90, %p91
      %p93 = scmp.ne.s32.totalorder %s85, %s87
      %p94 = scmp.eq.s32.totalorder %s16, 15
      %p95 = por %p93, %p94
      %p96 = scmp.ne.s32.totalorder %s87, %s88
      %p97 = scmp.eq.s32.totalorder %s16, 0
      %p98 = por %p96, %p97
      %p99 = scmp.ne.s32.totalorder %s87, %s88
      %p100 = scmp.eq.s32.totalorder %s17, 15
      %p101 = por %p99, %p100
      %p103 = scmp.ne.s32.totalorder %s88, %s102
      %p104 = scmp.eq.s32.totalorder %s17, 0
      %p105 = por %p103, %p104
      %s106 = ssub.s32 %s18, %s30
      %s107 = ssub.s32 %s19, %s26
      %s108 = sor.u32 %s106, %s107
      %p109 = scmp.eq.s32.totalorder %s108, 0
      %s111 = sadd.s32 %s110, 1
      %s112 = scalar_select %p109, %s110, %s111
      %p115 = pneg %p109
      %p116 = scmp.eq.s32.totalorder %s11, 15
      %p117 = por %p115, %p116
      %p118 = scmp.ne.s32.totalorder %s110, %s113
      %p119 = scmp.eq.s32.totalorder %s11, 0
      %p120 = por %p118, %p119
      %p121 = scmp.ne.s32.totalorder %s110, %s113
      %p122 = scmp.eq.s32.totalorder %s16, 15
      %p123 = por %p121, %p122
      %p124 = scmp.ne.s32.totalorder %s113, %s114
      %p125 = scmp.eq.s32.totalorder %s16, 0
      %p126 = por %p124, %p125
      %p127 = scmp.ne.s32.totalorder %s113, %s114
      %p128 = scmp.eq.s32.totalorder %s17, 15
      %p129 = por %p127, %p128
      %p131 = scmp.ne.s32.totalorder %s114, %s130
      %p132 = scmp.eq.s32.totalorder %s17, 0
      %p133 = por %p131, %p132
      %p134 = scmp.le.s32.totalorder 1, %s11
      %p135 = scmp.lt.s32.totalorder %s11, 17
      %p136 = pnand %p134, %p135
      %p137 = pneg %p136
      // Predicated region
      $region9: #{generator_forward.17} parent=5 // pred_check
        _
      $region10: #{generator_forward.17} parent=5 // pred_check_branch
        %139 = sbr.rel (%p136) target = $region12
      $region11: #{generator_forward.17} parent=5 // pred_region
        %s140 = ssub.s32 %s11, 1
        // Predicated region
        $region13: #{generator_forward.17} parent=11 // pred_check
          %p141 = pneg %p98
        $region14: #{generator_forward.17} parent=11 // pred_check_branch
          %143 = sbr.rel (%p141) target = $region16
        $region15: #{generator_forward.17} parent=11 // pred_region
          _
        $region16: #{generator_forward.17} parent=11 // pred_fallthru
          _
      $region12: #{generator_forward.17} parent=5 // pred_fallthru
        _
      %p144 = scmp.lt.s32.totalorder %s11, 16
      // Predicated region
      $region17: #{generator_forward.17} parent=5 // pred_check
        %p145 = pneg %p144
      $region18: #{generator_forward.17} parent=5 // pred_check_branch
        %147 = sbr.rel (%p145) target = $region20
      $region19: #{generator_forward.17} parent=5 // pred_region
        // Predicated region
        $region21: #{generator_forward.17} parent=19 // pred_check
          %p148 = pneg %p43
        $region22: #{generator_forward.17} parent=19 // pred_check_branch
          %150 = sbr.rel (%p148) target = $region24
        $region23: #{generator_forward.17} parent=19 // pred_region
          %p151 = scmp.lt.s32.totalorder %s18, 3
          %s152 = scalar_select %p151, %s18, 3
          %s153 = scalar_lea.vmem %s0, %s152
        $region24: #{generator_forward.17} parent=19 // pred_fallthru
          _
        // Predicated region
        $region25: #{generator_forward.17} parent=19 // pred_check
          %p154 = pneg %p71
        $region26: #{generator_forward.17} parent=19 // pred_check_branch
          %156 = sbr.rel (%p154) target = $region28
        $region27: #{generator_forward.17} parent=19 // pred_region
          %s157 = sand.u32 %s61, 1
          %s158 = sand.u32 %s61, 1
          %s159 = smul.addr %s158, 128
          %s160 = scalar_lea.vmem [#allocation3], %s159
          %s161 = smul.u32 4, %s19
          %s162 = smul.addr %s18, 128
          %s163 = sadd.s32 %s161, %s162
          %s164 = smul.addr %s163, 4
          %s165 = scalar_lea.vmem %s1, %s164
          // Predicated region
          $region29: #{generator_forward.17} parent=27 // pred_check
            _
          $region30: #{generator_forward.17} parent=27 // pred_check_branch
            %167 = sbr.rel (0) target = $region32
          $region31: #{generator_forward.17} parent=27 // pred_region
            // Predicated region
            $region33: #{generator_forward.17} parent=31 // pred_check
              _
            $region34: #{generator_forward.17} parent=31 // pred_check_branch
              %169 = sbr.rel (0) target = $region36
            $region35: #{generator_forward.17} parent=31 // pred_region
              loop: start=0, step=1, limit=1
              $region37: #{generator_forward.17} parent=35 // loop_pre_header
                _
              $region38: #{generator_forward.17} parent=35 // loop_header
                %s171 = sphi 0, %s175
                %p172 = scmp.ge.s32.totalorder %s171, 1
                %s176 = sphi %s165, %s165
                %s177 = sphi %s160, %s160
              $region39: #{generator_forward.17} parent=35 // loop_header_branch
                %174 = sbr.rel (%p172) target = $region43
              $region40: #{generator_forward.17} parent=35 // loop_body
                %v178 = vld [vmem:[%s176] sm:$0xff]
                %179 = vst [vmem:[%s177] sm:$0xff] %v178
                %v180 = vld [vmem:[%s176 + $0x8] sm:$0xff]
                %181 = vst [vmem:[%s177 + $0x8] sm:$0xff] %v180
                %v182 = vld [vmem:[%s176 + $0x40] sm:$0xff]
                %183 = vst [vmem:[%s177 + $0x10] sm:$0xff] %v182
                %v184 = vld [vmem:[%s176 + $0x48] sm:$0xff]
                %185 = vst [vmem:[%s177 + $0x18] sm:$0xff] %v184
                %v186 = vld [vmem:[%s176 + $0x80] sm:$0xff]
                %187 = vst [vmem:[%s177 + $0x20] sm:$0xff] %v186
                %v188 = vld [vmem:[%s176 + $0x88] sm:$0xff]
                %189 = vst [vmem:[%s177 + $0x28] sm:$0xff] %v188
                %v190 = vld [vmem:[%s176 + $0xc0] sm:$0xff]
                %191 = vst [vmem:[%s177 + $0x30] sm:$0xff] %v190
                %v192 = vld [vmem:[%s176 + $0xc8] sm:$0xff]
                %193 = vst [vmem:[%s177 + $0x38] sm:$0xff] %v192
                %v194 = vld [vmem:[%s176 + $0x100] sm:$0xff]
                %195 = vst [vmem:[%s177 + $0x40] sm:$0xff] %v194
                %v196 = vld [vmem:[%s176 + $0x108] sm:$0xff]
                %197 = vst [vmem:[%s177 + $0x48] sm:$0xff] %v196
                %v198 = vld [vmem:[%s176 + $0x140] sm:$0xff]
                %199 = vst [vmem:[%s177 + $0x50] sm:$0xff] %v198
                %v200 = vld [vmem:[%s176 + $0x148] sm:$0xff]
                %201 = vst [vmem:[%s177 + $0x58] sm:$0xff] %v200
                %v202 = vld [vmem:[%s176 + $0x180] sm:$0xff]
                %203 = vst [vmem:[%s177 + $0x60] sm:$0xff] %v202
                %v204 = vld [vmem:[%s176 + $0x188] sm:$0xff]
                %205 = vst [vmem:[%s177 + $0x68] sm:$0xff] %v204
                %v206 = vld [vmem:[%s176 + $0x1c0] sm:$0xff]
                %207 = vst [vmem:[%s177 + $0x70] sm:$0xff] %v206
                %v208 = vld [vmem:[%s176 + $0x1c8] sm:$0xff]
                %209 = vst [vmem:[%s177 + $0x78] sm:$0xff] %v208
              $region41: #{generator_forward.17} parent=35 // loop_footer
                %s175 = sadd.s32 1, %s171
              $region42: #{generator_forward.17} parent=35 // loop_footer_branch
                %170 = sbr.rel target = $region38
              $region43: #{generator_forward.17} parent=35 // loop_exit
                _
            $region36: #{generator_forward.17} parent=31 // pred_fallthru
              _
            // Predicated region
            $region44: #{generator_forward.17} parent=31 // pred_check
              _
            $region45: #{generator_forward.17} parent=31 // pred_check_branch
              %211 = sbr.rel target = $region47
            $region46: #{generator_forward.17} parent=31 // pred_region
              _
            $region47: #{generator_forward.17} parent=31 // pred_fallthru
              _
          $region32: #{generator_forward.17} parent=27 // pred_fallthru
            _
          %212 = vnop
        $region28: #{generator_forward.17} parent=19 // pred_fallthru
          _
      $region20: #{generator_forward.17} parent=5 // pred_fallthru
        _
      %p213 = scmp.le.s32.totalorder 1, %s11
      %p214 = scmp.lt.s32.totalorder %s11, 17
      %p215 = pnand %p213, %p214
      %p216 = pneg %p215
      // Predicated region
      $region48: #{generator_forward.17} parent=5 // pred_check
        _
      $region49: #{generator_forward.17} parent=5 // pred_check_branch
        %218 = sbr.rel (%p215) target = $region51
      $region50: #{generator_forward.17} parent=5 // pred_region
        %s219 = ssub.s32 %s11, 1
        %s220 = sand.u32 %s64, 1
        %s221 = sand.u32 %s64, 1
        %s222 = smul.addr %s221, 128
        %s223 = scalar_lea.vmem [#allocation3], %s222
        // Predicated region
        $region52: #{generator_forward.17} parent=50 // pred_check
          %p224 = pneg %p77
        $region53: #{generator_forward.17} parent=50 // pred_check_branch
          %226 = sbr.rel (%p224) target = $region55
        $region54: #{generator_forward.17} parent=50 // pred_region
          _
        $region55: #{generator_forward.17} parent=50 // pred_fallthru
          _
        %p227 = scmp.lt.s32.totalorder %s20, 3
        %s228 = scalar_select %p227, %s20, 3
        %s229 = scalar_lea.vmem %s0, %s228
        %p230 = pneg %p49
        %p231 = pneg %p46
        %s232 = sand.u32 %s64, 1
        %s233 = sand.u32 %s64, 1
        %s234 = smul.addr %s233, 128
        %s235 = scalar_lea.vmem [#allocation3], %s234
        %p236 = pneg %p77
        %p237 = pneg %p74
        %p238 = pneg %p98
        %p239 = pneg %p95
        %p240 = pneg %p126
        %p241 = pneg %p123
        %s242 = smul.u32 4, %s21
        %p243 = scmp.lt.s32.totalorder %s20, 3
        %s244 = scalar_select %p243, %s20, 3
        %p245 = scmp.lt.s32.totalorder %s242, 15
        %s246 = scalar_select %p245, %s242, 15
        %s247 = smul.addr %s244, 16
        %s248 = sadd.s32 %s246, %s247
        %s249 = scalar_lea.vmem %s3, %s248
        %p250 = scmp.lt.s32.totalorder %s20, 3
        %s251 = scalar_select %p250, %s20, 3
        %s252 = scalar_lea.vmem %s0, %s251
        %s253 = smul.u32 4, %s21
        %s254 = smul.u32 4, %s21
        %p255 = scmp.lt.s32.totalorder %s20, 3
        %s256 = scalar_select %p255, %s20, 3
        %p257 = scmp.lt.s32.totalorder %s254, 15
        %s258 = scalar_select %p257, %s254, 15
        %s259 = smul.addr %s256, 16
        %s260 = sadd.s32 %s258, %s259
        %s261 = scalar_lea.vmem %s3, %s260
        %s262 = smul.u32 4, %s21
        %v264 = vld [vmem:[%s252] sm:$0x1]
        %v265 = vld [vmem:[%s223] sm:$0xff]
        %v266 = vld [vmem:[%s223 + $0x8] sm:$0xff]
        %v267 = vld [vmem:[%s223 + $0x10] sm:$0xff]
        %v268 = vld [vmem:[%s223 + $0x18] sm:$0xff]
        %v269 = vld [vmem:[%s223 + $0x20] sm:$0xff]
        %v270 = vld [vmem:[%s223 + $0x28] sm:$0xff]
        %v271 = vld [vmem:[%s223 + $0x30] sm:$0xff]
        %v272 = vld [vmem:[%s223 + $0x38] sm:$0xff]
        %v273 = vld [vmem:[%s223 + $0x40] sm:$0xff]
        %v274 = vld [vmem:[%s223 + $0x48] sm:$0xff]
        %v275 = vld [vmem:[%s223 + $0x50] sm:$0xff]
        %v276 = vld [vmem:[%s223 + $0x58] sm:$0xff]
        %v277 = vld [vmem:[%s223 + $0x60] sm:$0xff]
        %v278 = vld [vmem:[%s223 + $0x68] sm:$0xff]
        %v279 = vld [vmem:[%s223 + $0x70] sm:$0xff]
        %v280 = vld [vmem:[%s223 + $0x78] sm:$0xff]
        %v281 = vld [vmem:[#allocation2] sm:$0x1]
        %283 = vset.pattern.permute.xlu0 0
        %284 = vperm.xlu0 %283, %v281
        %v285 = vpop.permute.xlu0 %284
        %v287 = vlaneseq
        %v288 = vshrl.u32 %v287, 7
        %v289 = vsub.s32 0, %v288
        %v290 = vrot.slane %v285, %v289
        %v307 = vunpack.c.l.b16 %v265
        %v308 = vunpack.c.h.b16 %v265
        %v309 = vunpack.c.l.b16 %v266
        %v310 = vunpack.c.h.b16 %v266
        %v311 = vunpack.c.l.b16 %v267
        %v312 = vunpack.c.h.b16 %v267
        %v313 = vunpack.c.l.b16 %v268
        %v314 = vunpack.c.h.b16 %v268
        %v315 = vunpack.c.l.b16 %v269
        %v316 = vunpack.c.h.b16 %v269
        %v317 = vunpack.c.l.b16 %v270
        %v318 = vunpack.c.h.b16 %v270
        %v319 = vunpack.c.l.b16 %v271
        %v320 = vunpack.c.h.b16 %v271
        %v321 = vunpack.c.l.b16 %v272
        %v322 = vunpack.c.h.b16 %v272
        %v323 = vunpack.c.l.b16 %v273
        %v324 = vunpack.c.h.b16 %v273
        %v325 = vunpack.c.l.b16 %v274
        %v326 = vunpack.c.h.b16 %v274
        %v327 = vunpack.c.l.b16 %v275
        %v328 = vunpack.c.h.b16 %v275
        %v329 = vunpack.c.l.b16 %v276
        %v330 = vunpack.c.h.b16 %v276
        %v331 = vunpack.c.l.b16 %v277
        %v332 = vunpack.c.h.b16 %v277
        %v333 = vunpack.c.l.b16 %v278
        %v334 = vunpack.c.h.b16 %v278
        %v335 = vunpack.c.l.b16 %v279
        %v336 = vunpack.c.h.b16 %v279
        %v337 = vunpack.c.l.b16 %v280
        %v338 = vunpack.c.h.b16 %v280
        %v339 = vpack.c.b16 %v311, %v307
        %v340 = vpack.c.b16 %v312, %v308
        %v341 = vpack.c.b16 %v313, %v309
        %v342 = vpack.c.b16 %v314, %v310
        %v343 = vpack.c.b16 %v319, %v315
        %v344 = vpack.c.b16 %v320, %v316
        %v345 = vpack.c.b16 %v321, %v317
        %v346 = vpack.c.b16 %v322, %v318
        %v347 = vpack.c.b16 %v327, %v323
        %v348 = vpack.c.b16 %v328, %v324
        %v349 = vpack.c.b16 %v329, %v325
        %v350 = vpack.c.b16 %v330, %v326
        %v351 = vpack.c.b16 %v335, %v331
        %v352 = vpack.c.b16 %v336, %v332
        %v353 = vpack.c.b16 %v337, %v333
        %v354 = vpack.c.b16 %v338, %v334
        %vm371 = vcmask 523264
        %v373 = vsel %vm371, %v264, 0
        %375 = vmatprep.subr.bf16.mxu0 %v340
        %376 = vmatpush1.bf16.msra.mxu0 %v339
        %377 = vmatprep.subr.bf16.mxu0 %v344
        %378 = vmatpush1.bf16.msra.mxu0 %v343
        %379 = vmatprep.subr.bf16.mxu0 %v348
        %380 = vmatpush1.bf16.msra.mxu0 %v347
        %381 = vmatprep.subr.bf16.mxu0 %v352
        %382 = vmatpush1.bf16.msra.mxu0 %v351
        %383 = vmatprep.subr.bf16.mxu0 0
        %384 = vmatpush1.bf16.msra.mxu0 0
        %385 = vmatprep.subr.bf16.mxu0 0
        %386 = vmatpush1.bf16.msra.mxu0 0
        %387 = vmatprep.subr.bf16.mxu0 0
        %388 = vmatpush1.bf16.msra.mxu0 0
        %389 = vmatprep.subr.bf16.mxu0 0
        %390 = vmatpush1.bf16.msra.mxu0 0
        %391 = vmatprep.subr.bf16.mxu0 0
        %392 = vmatpush1.bf16.msra.mxu0 0
        %393 = vmatprep.subr.bf16.mxu0 0
        %394 = vmatpush1.bf16.msra.mxu0 0
        %395 = vmatprep.subr.bf16.mxu0 0
        %396 = vmatpush1.bf16.msra.mxu0 0
        %397 = vmatprep.subr.bf16.mxu0 0
        %398 = vmatpush1.bf16.msra.mxu0 0
        %399 = vmatprep.subr.bf16.mxu0 0
        %400 = vmatpush1.bf16.msra.mxu0 0
        %401 = vmatprep.subr.bf16.mxu0 0
        %402 = vmatpush1.bf16.msra.mxu0 0
        %403 = vmatprep.subr.bf16.mxu0 0
        %404 = vmatpush1.bf16.msra.mxu0 0
        %405 = vmatprep.subr.bf16.mxu0 0
        %406 = vmatpush1.bf16.msra.mxu0 0
        %407 = vmatprep.mubr.bf16.mxu0 0
        %408 = vmatmul.mubr.bf16.gmra.mrb[0].mxu0 %v373
        %v409 = vpop.f32.mrb[0].mxu0
        %v410 = vadd.f32 %v290, %v409
        %v411 = vpop.f32.mrb[0].mxu0
        %v412 = vadd.f32 %v290, %v411
        %v413 = vpop.f32.mrb[0].mxu0
        %v414 = vpop.f32.mrb[0].mxu0
        %415 = vdwg.mxu0
        %416 = vmatprep.subr.bf16.mxu0 %v342
        %417 = vmatpush1.bf16.msra.mxu0 %v341
        %418 = vmatprep.subr.bf16.mxu0 %v346
        %419 = vmatpush1.bf16.msra.mxu0 %v345
        %420 = vmatprep.subr.bf16.mxu0 %v350
        %421 = vmatpush1.bf16.msra.mxu0 %v349
        %422 = vmatprep.subr.bf16.mxu0 %v354
        %423 = vmatpush1.bf16.msra.mxu0 %v353
        %424 = vmatprep.subr.bf16.mxu0 0
        %425 = vmatpush1.bf16.msra.mxu0 0
        %426 = vmatprep.subr.bf16.mxu0 0
        %427 = vmatpush1.bf16.msra.mxu0 0
        %428 = vmatprep.subr.bf16.mxu0 0
        %429 = vmatpush1.bf16.msra.mxu0 0
        %430 = vmatprep.subr.bf16.mxu0 0
        %431 = vmatpush1.bf16.msra.mxu0 0
        %432 = vmatprep.subr.bf16.mxu0 0
        %433 = vmatpush1.bf16.msra.mxu0 0
        %434 = vmatprep.subr.bf16.mxu0 0
        %435 = vmatpush1.bf16.msra.mxu0 0
        %436 = vmatprep.subr.bf16.mxu0 0
        %437 = vmatpush1.bf16.msra.mxu0 0
        %438 = vmatprep.subr.bf16.mxu0 0
        %439 = vmatpush1.bf16.msra.mxu0 0
        %440 = vmatprep.subr.bf16.mxu0 0
        %441 = vmatpush1.bf16.msra.mxu0 0
        %442 = vmatprep.subr.bf16.mxu0 0
        %443 = vmatpush1.bf16.msra.mxu0 0
        %444 = vmatprep.subr.bf16.mxu0 0
        %445 = vmatpush1.bf16.msra.mxu0 0
        %446 = vmatprep.subr.bf16.mxu0 0
        %447 = vmatpush1.bf16.msra.mxu0 0
        %448 = vmatprep.mubr.bf16.mxu0 0
        %449 = vmatmul.mubr.bf16.gmra.mrb[0].mxu0 %v373
        %v450 = vpop.f32.mrb[0].mxu0
        %v451 = vadd.f32 %v290, %v450
        %v452 = vpop.f32.mrb[0].mxu0
        %v453 = vadd.f32 %v290, %v452
        %v454 = vpop.f32.mrb[0].mxu0
        %v455 = vpop.f32.mrb[0].mxu0
        %456 = vdwg.mxu0
        %v457 = vtanh.pop %v410
        %v458 = vtanh.pop %v412
        %v459 = vtanh.pop %v451
        %v460 = vtanh.pop %v453
        %v465 = vcombine.low %v457, %v458
        %v466 = vcombine.low %v459, %v460
        %v468 = vunpack.c.l.s4 1966171168
        %v469 = vunpack.c.0.s8 %v468
        %v470 = vlaneseq
        %v471 = vshrl.u32 %v470, 7
        %v472 = vsub.s32 %v469, %v471
        %v473 = vrot.slane %v465, %v472
        %v475 = vunpack.c.l.s4 1966171168
        %v476 = vunpack.c.0.s8 %v475
        %v477 = vlaneseq
        %v478 = vshrl.u32 %v477, 7
        %v479 = vsub.s32 %v476, %v478
        %v480 = vrot.slane %v466, %v479
        %v481 = vcombine.low %v473, %v480
        %v483 = vunpack.c.l.s4 1966171168
        %v484 = vunpack.c.0.s8 %v483
        %v485 = vlaneseq
        %v486 = vshrl.u32 %v485, 7
        %v487 = vsub.s32 %v484, %v486
        %v488 = vrot.slane %v481, %v487
        %v490 = vlaneseq
        %vm491 = vcmp.ge.s32.totalorder %v490, 0
        %vm492 = vcmp.lt.s32.totalorder %v490, 512
        %vm493 = vmand %vm491, %vm492
        %494 = vst.msk [vmem:[%s261] sm:$0xf] %vm493, %v488
        %s495 = smul.u32 4, %s21
        %p496 = scmp.lt.s32.totalorder %s20, 3
        %s497 = scalar_select %p496, %s20, 3
        %p498 = scmp.lt.s32.totalorder %s495, 15
        %s499 = scalar_select %p498, %s495, 15
        %s500 = smul.addr %s497, 16
        %s501 = sadd.s32 %s499, %s500
        %s502 = scalar_lea.vmem %s3, %s501
        // Predicated region
        $region56: #{generator_forward.17} parent=50 // pred_check
          %p503 = pneg %p123
        $region57: #{generator_forward.17} parent=50 // pred_check_branch
          %505 = sbr.rel (%p503) target = $region59
        $region58: #{generator_forward.17} parent=50 // pred_region
          %s506 = smul.u32 4, %s21
        $region59: #{generator_forward.17} parent=50 // pred_fallthru
          _
      $region51: #{generator_forward.17} parent=5 // pred_fallthru
        _
      %p507 = scmp.le.s32.totalorder 2, %s11
      // Predicated region
      $region60: #{generator_forward.17} parent=5 // pred_check
        %p508 = pneg %p507
      $region61: #{generator_forward.17} parent=5 // pred_check_branch
        %510 = sbr.rel (%p508) target = $region63
      $region62: #{generator_forward.17} parent=5 // pred_region
        %s511 = ssub.s32 %s11, 2
        // Predicated region
        $region64: #{generator_forward.17} parent=62 // pred_check
          %p512 = pneg %p129
        $region65: #{generator_forward.17} parent=62 // pred_check_branch
          %514 = sbr.rel (%p512) target = $region67
        $region66: #{generator_forward.17} parent=62 // pred_region
          %s515 = smul.u32 4, %s23
          %p516 = scmp.lt.s32.totalorder %s22, 3
          %s517 = scalar_select %p516, %s22, 3
          %p518 = scmp.lt.s32.totalorder %s515, 15
          %s519 = scalar_select %p518, %s515, 15
          %s520 = smul.addr %s517, 16
          %s521 = sadd.s32 %s519, %s520
          %s522 = scalar_lea.vmem %s3, %s521
        $region67: #{generator_forward.17} parent=62 // pred_fallthru
          _
      $region63: #{generator_forward.17} parent=5 // pred_fallthru
        _
    $region6: #{generator_forward.17} parent=1 // loop_footer
      %s15 = sadd.s32 1, %s11
    $region7: #{generator_forward.17} parent=1 // loop_footer_branch
      %10 = sbr.rel target = $region3
    $region8: #{generator_forward.17} parent=1 // loop_exit
      _

</llo_original>
